<compile_context>
chip_gen: v7x
topology: tpu7x:2x2x1
jax: 0.10.0
libtpu: 0.0.40
codegen_flags: <defaults>
</compile_context>

<pallas_src>
import jax
import jax.numpy as jnp
from jax import lax
from jax.experimental import pallas as pl
from jax.experimental.pallas import tpu as pltpu

_F32 = jnp.float32

# Leading-axis piece indices inside the (B, 8, Cpad, Tq) input slab.
_S0, _S2, _D1, _D3, _P00, _P01, _P10, _P11 = range(8)

# f32 keeps the per-src argmax bit-identical to the torch reference; bf16 is a
# v6e/v7x throughput knob (near-ties may flip).
_SCORE_DTYPE = jnp.float32


def _xcy2_kernel(slab_ref, fcw_ref, convw_ref, convb_ref, scal_ref, out_ref):
    d1 = slab_ref[0, _D1]          # (C, Tq) merge-1 dst tokens, t % 4 == 1, channel-major
    d3 = slab_ref[0, _D3]          # (C, Tq) merge-1 dst tokens, t % 4 == 3
    c, tq = d1.shape

    def norm_c(v):
        # l2-normalize over channels; tiny eps only guards all-zero tokens
        # (the torch reference has no eps and would emit NaN there).
        return v * lax.rsqrt(jnp.sum(v * v, axis=0, keepdims=True) + 1e-30)

    def mm(a, b):                  # MXU matmul with f32 accumulation
        return jnp.dot(a.astype(_SCORE_DTYPE), b.astype(_SCORE_DTYPE),
                       preferred_element_type=_F32)

    be = norm_c(d1)                # normalized dst halves, channel-major
    bo = norm_c(d3)

    ciota = lax.broadcasted_iota(jnp.int32, (tq, tq), 1).astype(_F32)  # dst index per column
    ones_row = jnp.ones((1, tq), _F32)

    # ---------------- merge pass 1 (bipartite soft matching, r == T//2) -------
    # Every src token (t even) merges into its best dst token (t odd).  Src is
    # streamed in channel-major chunks; the per-src argmax is chunk-local and
    # the one-hot scatter / counts accumulate, so this loop generalizes to many
    # chunks for large T (v7x VMEM cap) without a resident (Tq, Th) score set.
    num_e = jnp.zeros((c, tq), _F32)
    num_o = jnp.zeros((c, tq), _F32)
    cnt_e = jnp.zeros((1, tq), _F32)
    cnt_o = jnp.zeros((1, tq), _F32)
    for g in (_S0, _S2):
        sg = slab_ref[0, g]                          # (C, Tq) raw src chunk
        ag_t = jnp.transpose(norm_c(sg))             # (Tq, C) in-kernel XLU transpose
        s_e = mm(ag_t, be)                           # (Tq_src, Tq_dst) cosine scores
        s_o = mm(ag_t, bo)
        m_e = jnp.max(s_e, axis=-1, keepdims=True)
        m_o = jnp.max(s_o, axis=-1, keepdims=True)
        # first-index argmax within each half (torch .max tie-break)
        i_e = jnp.min(jnp.where(s_e == m_e, ciota, float(tq)), axis=-1, keepdims=True)
        i_o = jnp.min(jnp.where(s_o == m_o, ciota, float(tq)), axis=-1, keepdims=True)
        # global first-index over the interleaved dst axis (even half j=2k, odd j=2k+1)
        pick_e = jnp.logical_or(m_e > m_o,
                                jnp.logical_and(m_e == m_o, i_e <= i_o))
        hot_e = jnp.logical_and(ciota == i_e, pick_e).astype(_F32)             # (Tq, Tq)
        hot_o = jnp.logical_and(ciota == i_o, jnp.logical_not(pick_e)).astype(_F32)
        num_e = num_e + mm(sg, hot_e)                # scatter src values (MXU)
        num_o = num_o + mm(sg, hot_o)
        cnt_e = cnt_e + mm(ones_row, hot_e)          # per-dst src counts (M=1 MXU)
        cnt_o = cnt_o + mm(ones_row, hot_o)

    # scatter_reduce(mean, include_self=True): dst <- (dst + sum src) / (1 + count)
    dst1_e = (d1 + num_e) / (1.0 + cnt_e)            # (C, Tq) merged, t % 4 == 1 slots
    dst1_o = (d3 + num_o) / (1.0 + cnt_o)            # (C, Tq) merged, t % 4 == 3 slots

    # ---------------- merge pass 2: src = even merged positions, dst = odd ----
    a2_t = jnp.transpose(norm_c(dst1_e))             # (Tq, C)
    s2 = mm(a2_t, norm_c(dst1_o))                    # (Tq_src, Tq_dst)
    m2 = jnp.max(s2, axis=-1, keepdims=True)
    i2 = jnp.min(jnp.where(s2 == m2, ciota, float(tq)), axis=-1, keepdims=True)
    hot2 = (ciota == i2).astype(_F32)
    x_sim = (dst1_o + mm(dst1_e, hot2)) / (1.0 + mm(ones_row, hot2))   # (C, Tq)

    # ---------------- learnable token pruning + structured 2x2 avg-pool -------
    fcw = fcw_ref[...]                 # (1, C) pruning-fc weight row (zero-padded)
    eff_bias = scal_ref[0]             # fc bias - threshold (temperature == 1)
    w_sim = scal_ref[1]                # ReLU6-normalized fusion weights
    w_prn = scal_ref[2]

    pooled = jnp.zeros((c, tq), _F32)
    for p in (_P00, _P01, _P10, _P11):
        xp = slab_ref[0, p]                                            # (C, Tq)
        gate = jax.nn.sigmoid(
            jnp.dot(fcw, xp, preferred_element_type=_F32) + eff_bias)  # (1, Tq)
        pooled = pooled + jnp.where(gate > 0.5, xp * gate, 0.0)
    pooled = 0.25 * pooled

    # ---------------- adaptive fusion + 1x1 conv (channel matmul) -------------
    fused = w_sim * x_sim + w_prn * pooled                             # (C, Tq)
    out = jnp.dot(convw_ref[...], fused, preferred_element_type=_F32)  # (out_ch, Tq)
    out_ref[0] = (out + convb_ref[...]).astype(out_ref.dtype)


@jax.jit
def xcy2_forward(x, params):
    B, C, H, W = x.shape
    assert H % 2 == 0 and W % 4 == 0, "fused kernel assumes even H and W % 4 == 0"
    Ho, Wo = H // 2, W // 2
    Tq = Ho * Wo                         # merged / pooled token count = T // 4
    out_ch = params["conv_w"].shape[0]
    eps = 1e-8

    # Zero-pad channels to a sublane multiple (exactly neutral through norms,
    # scores, scatter-means, pruning gate and the 1x1 conv).
    Cp = ((C + 7) // 8) * 8
    xf = jnp.pad(x.astype(jnp.float32), ((0, 0), (0, Cp - C), (0, 0), (0, 0)))

    # One channel-major slab per batch (token t = h*W + w; W % 4 == 0 ⇒ t%4 == w%4):
    #   [src chunk w%4==0, src chunk w%4==2,  dst half w%4==1, dst half w%4==3,
    #    pool phase (h even,w even), (h even,w odd), (h odd,w even), (h odd,w odd)]
    pieces = [
        xf[:, :, :, 0::4], xf[:, :, :, 2::4],          # merge-1 src chunks (t even)
        xf[:, :, :, 1::4], xf[:, :, :, 3::4],          # merge-1 dst halves (t odd)
        xf[:, :, 0::2, 0::2], xf[:, :, 0::2, 1::2],    # avg_pool2d 2x2 phases
        xf[:, :, 1::2, 0::2], xf[:, :, 1::2, 1::2],
    ]
    slab = jnp.stack([p.reshape(B, Cp, Tq) for p in pieces], axis=1)   # (B, 8, Cp, Tq)

    # Tiny parameter glue: ReLU6-normalized fusion weights, threshold folded
    # into the pruning-fc bias, 1x1 conv weight as an (out_ch, C) channel matmul.
    w = jnp.clip(params["fusion_w"], 0.0, 6.0)
    wn = w / (jnp.sum(w) + eps)
    scalars = jnp.stack([params["fc_b"][0] - params["threshold"],
                         wn[0], wn[1]]).astype(jnp.float32)
    fcw = jnp.pad(params["fc_w"].reshape(1, C).astype(jnp.float32),
                  ((0, 0), (0, Cp - C)))
    convw = jnp.pad(params["conv_w"].reshape(out_ch, C).astype(jnp.float32),
                    ((0, 0), (0, Cp - C)))
    convb = params["conv_b"].reshape(out_ch, 1).astype(jnp.float32)

    out_tok = pl.pallas_call(
        _xcy2_kernel,
        out_shape=jax.ShapeDtypeStruct((B, out_ch, Tq), jnp.float32),
        grid=(B,),
        in_specs=[
            pl.BlockSpec((1, 8, Cp, Tq), lambda b: (b, 0, 0, 0)),       # packed slab
            pl.BlockSpec((1, Cp), lambda b: (0, 0)),                    # pruning fc weight
            pl.BlockSpec((out_ch, Cp), lambda b: (0, 0)),               # 1x1 conv weight
            pl.BlockSpec((out_ch, 1), lambda b: (0, 0)),                # conv bias
            pl.BlockSpec(memory_space=pltpu.MemorySpace.SMEM),          # 3 fused scalars
        ],
        out_specs=pl.BlockSpec((1, out_ch, Tq), lambda b: (b, 0, 0)),
        compiler_params=pltpu.CompilerParams(
            dimension_semantics=("parallel",),
            vmem_limit_bytes=64 * 1024 * 1024),
    )(slab, fcw, convw, convb, scalars)

    # (B, out_ch, Tq) is already channel-major NCHW for the (Ho, Wo) grid.
    return out_tok.reshape(B, out_ch, Ho, Wo)


def init_params(key, in_ch, out_ch):
    k1, k2, k3, k4 = jax.random.split(key, 4)
    return dict(
        conv_w=0.1 * jax.random.normal(k1, (out_ch, in_ch, 1, 1), jnp.float32),
        conv_b=0.1 * jax.random.normal(k2, (out_ch,), jnp.float32),
        fc_w=0.1 * jax.random.normal(k3, (1, in_ch), jnp.float32),
        fc_b=0.1 * jax.random.normal(k4, (1,), jnp.float32),
        threshold=jnp.float32(0.0),            # LearnableTokenPruning.threshold
        fusion_w=jnp.ones((2,), jnp.float32),  # AdaptiveFusion.weights
    )


if __name__ == "__main__":
    key = jax.random.PRNGKey(0)
    kx, kp = jax.random.split(key)

    B, C, H, W = 2, 4, 16, 16
    out_ch = 8
    x = jax.random.normal(kx, (B, C, H, W), jnp.float32)
    params = init_params(kp, C, out_ch)

    out = xcy2_forward(x, params)
    jax.block_until_ready(out)
    assert out.shape == (B, out_ch, H // 2, W // 2), out.shape
    assert bool(jnp.all(jnp.isfinite(out)))
    print("KERNEL_OK")
</pallas_src>

<mosaic_0001>
module attributes {stable_mosaic.version = 11 : i64} {
  func.func @_xcy2_kernel(%arg0: i32, %arg1: memref<1x8x8x64xf32, #tpu.memory_space<vmem>>, %arg2: memref<1x8xf32, #tpu.memory_space<vmem>>, %arg3: memref<8x8xf32, #tpu.memory_space<vmem>>, %arg4: memref<8x1xf32, #tpu.memory_space<vmem>>, %arg5: memref<3xf32, #tpu.memory_space<smem>>, %arg6: memref<1x8x64xf32, #tpu.memory_space<vmem>>) attributes {dimension_semantics = [#tpu.dimension_semantics<parallel>], iteration_bounds = array<i64: 2>, scalar_prefetch = 0 : i64, scratch_operands = 0 : i64, tpu.core_type = #tpu.core_type<tc>, window_params = [{transform_indices = @transform_0, window_bounds = array<i64: 1, 8, 8, 64>}, {pipeline_mode = #tpu.pipeline_mode<synchronous>, transform_indices = @transform_1, window_bounds = array<i64: 1, 8>}, {pipeline_mode = #tpu.pipeline_mode<synchronous>, transform_indices = @transform_2, window_bounds = array<i64: 8, 8>}, {pipeline_mode = #tpu.pipeline_mode<synchronous>, transform_indices = @transform_3, window_bounds = array<i64: 8, 1>}, {transform_indices = @transform_4, window_bounds = array<i64: 3>}, {transform_indices = @transform_5, window_bounds = array<i64: 1, 8, 64>}]} {
    %c0 = arith.constant 0 : index
    %c2 = arith.constant 2 : index
    %c0_0 = arith.constant 0 : index
    %c0_1 = arith.constant 0 : index
    %0 = vector.load %arg1[%c0, %c2, %c0_0, %c0_1] : memref<1x8x8x64xf32, #tpu.memory_space<vmem>>, vector<1x1x8x64xf32>
    %1 = vector.shape_cast %0 : vector<1x1x8x64xf32> to vector<8x64xf32>
    %c0_2 = arith.constant 0 : index
    %c3 = arith.constant 3 : index
    %c0_3 = arith.constant 0 : index
    %c0_4 = arith.constant 0 : index
    %2 = vector.load %arg1[%c0_2, %c3, %c0_3, %c0_4] : memref<1x8x8x64xf32, #tpu.memory_space<vmem>>, vector<1x1x8x64xf32>
    %3 = vector.shape_cast %2 : vector<1x1x8x64xf32> to vector<8x64xf32>
    %4 = arith.mulf %1, %1 : vector<8x64xf32>
    %cst = arith.constant dense<0.000000e+00> : vector<64xf32>
    %5 = vector.multi_reduction <add>, %4, %cst [0] : vector<8x64xf32> to vector<64xf32>
    %6 = vector.shape_cast %5 : vector<64xf32> to vector<1x64xf32>
    %cst_5 = arith.constant 1.000000e-30 : f32
    %7 = vector.broadcast %cst_5 : f32 to vector<1x64xf32>
    %8 = arith.addf %6, %7 : vector<1x64xf32>
    %9 = math.rsqrt %8 : vector<1x64xf32>
    %10 = vector.broadcast %9 : vector<1x64xf32> to vector<8x64xf32>
    %11 = arith.mulf %1, %10 : vector<8x64xf32>
    %12 = arith.mulf %3, %3 : vector<8x64xf32>
    %cst_6 = arith.constant dense<0.000000e+00> : vector<64xf32>
    %13 = vector.multi_reduction <add>, %12, %cst_6 [0] : vector<8x64xf32> to vector<64xf32>
    %14 = vector.shape_cast %13 : vector<64xf32> to vector<1x64xf32>
    %cst_7 = arith.constant 1.000000e-30 : f32
    %15 = vector.broadcast %cst_7 : f32 to vector<1x64xf32>
    %16 = arith.addf %14, %15 : vector<1x64xf32>
    %17 = math.rsqrt %16 : vector<1x64xf32>
    %18 = vector.broadcast %17 : vector<1x64xf32> to vector<8x64xf32>
    %19 = arith.mulf %3, %18 : vector<8x64xf32>
    %20 = tpu.iota {dimensions = array<i32: 1>} : vector<64x64xi32>
    %21 = arith.sitofp %20 : vector<64x64xi32> to vector<64x64xf32>
    %cst_8 = arith.constant 1.000000e+00 : f32
    %22 = vector.broadcast %cst_8 : f32 to vector<1x64xf32>
    %cst_9 = arith.constant 0.000000e+00 : f32
    %23 = vector.broadcast %cst_9 : f32 to vector<8x64xf32>
    %cst_10 = arith.constant 0.000000e+00 : f32
    %24 = vector.broadcast %cst_10 : f32 to vector<8x64xf32>
    %cst_11 = arith.constant 0.000000e+00 : f32
    %25 = vector.broadcast %cst_11 : f32 to vector<1x64xf32>
    %cst_12 = arith.constant 0.000000e+00 : f32
    %26 = vector.broadcast %cst_12 : f32 to vector<1x64xf32>
    %c0_13 = arith.constant 0 : index
    %c0_14 = arith.constant 0 : index
    %c0_15 = arith.constant 0 : index
    %c0_16 = arith.constant 0 : index
    %27 = vector.load %arg1[%c0_13, %c0_14, %c0_15, %c0_16] : memref<1x8x8x64xf32, #tpu.memory_space<vmem>>, vector<1x1x8x64xf32>
    %28 = vector.shape_cast %27 : vector<1x1x8x64xf32> to vector<8x64xf32>
    %29 = arith.mulf %28, %28 : vector<8x64xf32>
    %cst_17 = arith.constant dense<0.000000e+00> : vector<64xf32>
    %30 = vector.multi_reduction <add>, %29, %cst_17 [0] : vector<8x64xf32> to vector<64xf32>
    %31 = vector.shape_cast %30 : vector<64xf32> to vector<1x64xf32>
    %cst_18 = arith.constant 1.000000e-30 : f32
    %32 = vector.broadcast %cst_18 : f32 to vector<1x64xf32>
    %33 = arith.addf %31, %32 : vector<1x64xf32>
    %34 = math.rsqrt %33 : vector<1x64xf32>
    %35 = vector.broadcast %34 : vector<1x64xf32> to vector<8x64xf32>
    %36 = arith.mulf %28, %35 : vector<8x64xf32>
    %37 = tpu.transpose %36, [1, 0] : vector<8x64xf32> -> vector<64x8xf32>
    %cst_19 = arith.constant dense<0.000000e+00> : vector<64x64xf32>
    %38 = tpu.matmul %37, %11, %cst_19 {dimension_numbers = #tpu.dot_dimension_numbers<[1], [0], [0], [1], [0, 0, 1, 1], [], []>} : vector<64x8xf32>, vector<8x64xf32>, vector<64x64xf32> -> vector<64x64xf32>
    %cst_20 = arith.constant dense<0.000000e+00> : vector<64x64xf32>
    %39 = tpu.matmul %37, %19, %cst_20 {dimension_numbers = #tpu.dot_dimension_numbers<[1], [0], [0], [1], [0, 0, 1, 1], [], []>} : vector<64x8xf32>, vector<8x64xf32>, vector<64x64xf32> -> vector<64x64xf32>
    %cst_21 = arith.constant dense<0xFF800000> : vector<64xf32>
    %40 = vector.multi_reduction <maximumf>, %38, %cst_21 [1] : vector<64x64xf32> to vector<64xf32>
    %41 = vector.shape_cast %40 : vector<64xf32> to vector<64x1xf32>
    %cst_22 = arith.constant dense<0xFF800000> : vector<64xf32>
    %42 = vector.multi_reduction <maximumf>, %39, %cst_22 [1] : vector<64x64xf32> to vector<64xf32>
    %43 = vector.shape_cast %42 : vector<64xf32> to vector<64x1xf32>
    %44 = vector.broadcast %41 : vector<64x1xf32> to vector<64x64xf32>
    %45 = arith.cmpf oeq, %38, %44 : vector<64x64xf32>
    %cst_23 = arith.constant 6.400000e+01 : f32
    %46 = vector.broadcast %cst_23 : f32 to vector<64x64xf32>
    %47 = arith.select %45, %21, %46 : vector<64x64xi1>, vector<64x64xf32>
    %cst_24 = arith.constant dense<0x7F800000> : vector<64xf32>
    %48 = vector.multi_reduction <minimumf>, %47, %cst_24 [1] : vector<64x64xf32> to vector<64xf32>
    %49 = vector.shape_cast %48 : vector<64xf32> to vector<64x1xf32>
    %50 = vector.broadcast %43 : vector<64x1xf32> to vector<64x64xf32>
    %51 = arith.cmpf oeq, %39, %50 : vector<64x64xf32>
    %cst_25 = arith.constant 6.400000e+01 : f32
    %52 = vector.broadcast %cst_25 : f32 to vector<64x64xf32>
    %53 = arith.select %51, %21, %52 : vector<64x64xi1>, vector<64x64xf32>
    %cst_26 = arith.constant dense<0x7F800000> : vector<64xf32>
    %54 = vector.multi_reduction <minimumf>, %53, %cst_26 [1] : vector<64x64xf32> to vector<64xf32>
    %55 = vector.shape_cast %54 : vector<64xf32> to vector<64x1xf32>
    %56 = arith.cmpf ogt, %41, %43 : vector<64x1xf32>
    %57 = arith.cmpf oeq, %41, %43 : vector<64x1xf32>
    %58 = arith.cmpf ole, %49, %55 : vector<64x1xf32>
    %59 = arith.andi %57, %58 : vector<64x1xi1>
    %60 = arith.ori %56, %59 : vector<64x1xi1>
    %61 = vector.broadcast %49 : vector<64x1xf32> to vector<64x64xf32>
    %62 = arith.cmpf oeq, %21, %61 : vector<64x64xf32>
    %63 = vector.broadcast %60 : vector<64x1xi1> to vector<64x64xi1>
    %64 = arith.andi %62, %63 : vector<64x64xi1>
    %65 = arith.extui %64 : vector<64x64xi1> to vector<64x64xi32>
    %66 = arith.sitofp %65 : vector<64x64xi32> to vector<64x64xf32>
    %67 = vector.broadcast %55 : vector<64x1xf32> to vector<64x64xf32>
    %68 = arith.cmpf oeq, %21, %67 : vector<64x64xf32>
    %cst_27 = arith.constant dense<true> : vector<64x1xi1>
    %69 = arith.xori %60, %cst_27 : vector<64x1xi1>
    %70 = vector.broadcast %69 : vector<64x1xi1> to vector<64x64xi1>
    %71 = arith.andi %68, %70 : vector<64x64xi1>
    %72 = arith.extui %71 : vector<64x64xi1> to vector<64x64xi32>
    %73 = arith.sitofp %72 : vector<64x64xi32> to vector<64x64xf32>
    %cst_28 = arith.constant dense<0.000000e+00> : vector<8x64xf32>
    %74 = tpu.matmul %28, %66, %cst_28 {dimension_numbers = #tpu.dot_dimension_numbers<[1], [0], [0], [1], [0, 0, 1, 1], [], []>} : vector<8x64xf32>, vector<64x64xf32>, vector<8x64xf32> -> vector<8x64xf32>
    %75 = arith.addf %23, %74 : vector<8x64xf32>
    %cst_29 = arith.constant dense<0.000000e+00> : vector<8x64xf32>
    %76 = tpu.matmul %28, %73, %cst_29 {dimension_numbers = #tpu.dot_dimension_numbers<[1], [0], [0], [1], [0, 0, 1, 1], [], []>} : vector<8x64xf32>, vector<64x64xf32>, vector<8x64xf32> -> vector<8x64xf32>
    %77 = arith.addf %24, %76 : vector<8x64xf32>
    %cst_30 = arith.constant dense<0.000000e+00> : vector<1x64xf32>
    %78 = tpu.matmul %22, %66, %cst_30 {dimension_numbers = #tpu.dot_dimension_numbers<[1], [0], [0], [1], [0, 0, 1, 1], [], []>} : vector<1x64xf32>, vector<64x64xf32>, vector<1x64xf32> -> vector<1x64xf32>
    %79 = arith.addf %25, %78 : vector<1x64xf32>
    %cst_31 = arith.constant dense<0.000000e+00> : vector<1x64xf32>
    %80 = tpu.matmul %22, %73, %cst_31 {dimension_numbers = #tpu.dot_dimension_numbers<[1], [0], [0], [1], [0, 0, 1, 1], [], []>} : vector<1x64xf32>, vector<64x64xf32>, vector<1x64xf32> -> vector<1x64xf32>
    %81 = arith.addf %26, %80 : vector<1x64xf32>
    %c0_32 = arith.constant 0 : index
    %c1 = arith.constant 1 : index
    %c0_33 = arith.constant 0 : index
    %c0_34 = arith.constant 0 : index
    %82 = vector.load %arg1[%c0_32, %c1, %c0_33, %c0_34] : memref<1x8x8x64xf32, #tpu.memory_space<vmem>>, vector<1x1x8x64xf32>
    %83 = vector.shape_cast %82 : vector<1x1x8x64xf32> to vector<8x64xf32>
    %84 = arith.mulf %83, %83 : vector<8x64xf32>
    %cst_35 = arith.constant dense<0.000000e+00> : vector<64xf32>
    %85 = vector.multi_reduction <add>, %84, %cst_35 [0] : vector<8x64xf32> to vector<64xf32>
    %86 = vector.shape_cast %85 : vector<64xf32> to vector<1x64xf32>
    %cst_36 = arith.constant 1.000000e-30 : f32
    %87 = vector.broadcast %cst_36 : f32 to vector<1x64xf32>
    %88 = arith.addf %86, %87 : vector<1x64xf32>
    %89 = math.rsqrt %88 : vector<1x64xf32>
    %90 = vector.broadcast %89 : vector<1x64xf32> to vector<8x64xf32>
    %91 = arith.mulf %83, %90 : vector<8x64xf32>
    %92 = tpu.transpose %91, [1, 0] : vector<8x64xf32> -> vector<64x8xf32>
    %cst_37 = arith.constant dense<0.000000e+00> : vector<64x64xf32>
    %93 = tpu.matmul %92, %11, %cst_37 {dimension_numbers = #tpu.dot_dimension_numbers<[1], [0], [0], [1], [0, 0, 1, 1], [], []>} : vector<64x8xf32>, vector<8x64xf32>, vector<64x64xf32> -> vector<64x64xf32>
    %cst_38 = arith.constant dense<0.000000e+00> : vector<64x64xf32>
    %94 = tpu.matmul %92, %19, %cst_38 {dimension_numbers = #tpu.dot_dimension_numbers<[1], [0], [0], [1], [0, 0, 1, 1], [], []>} : vector<64x8xf32>, vector<8x64xf32>, vector<64x64xf32> -> vector<64x64xf32>
    %cst_39 = arith.constant dense<0xFF800000> : vector<64xf32>
    %95 = vector.multi_reduction <maximumf>, %93, %cst_39 [1] : vector<64x64xf32> to vector<64xf32>
    %96 = vector.shape_cast %95 : vector<64xf32> to vector<64x1xf32>
    %cst_40 = arith.constant dense<0xFF800000> : vector<64xf32>
    %97 = vector.multi_reduction <maximumf>, %94, %cst_40 [1] : vector<64x64xf32> to vector<64xf32>
    %98 = vector.shape_cast %97 : vector<64xf32> to vector<64x1xf32>
    %99 = vector.broadcast %96 : vector<64x1xf32> to vector<64x64xf32>
    %100 = arith.cmpf oeq, %93, %99 : vector<64x64xf32>
    %cst_41 = arith.constant 6.400000e+01 : f32
    %101 = vector.broadcast %cst_41 : f32 to vector<64x64xf32>
    %102 = arith.select %100, %21, %101 : vector<64x64xi1>, vector<64x64xf32>
    %cst_42 = arith.constant dense<0x7F800000> : vector<64xf32>
    %103 = vector.multi_reduction <minimumf>, %102, %cst_42 [1] : vector<64x64xf32> to vector<64xf32>
    %104 = vector.shape_cast %103 : vector<64xf32> to vector<64x1xf32>
    %105 = vector.broadcast %98 : vector<64x1xf32> to vector<64x64xf32>
    %106 = arith.cmpf oeq, %94, %105 : vector<64x64xf32>
    %cst_43 = arith.constant 6.400000e+01 : f32
    %107 = vector.broadcast %cst_43 : f32 to vector<64x64xf32>
    %108 = arith.select %106, %21, %107 : vector<64x64xi1>, vector<64x64xf32>
    %cst_44 = arith.constant dense<0x7F800000> : vector<64xf32>
    %109 = vector.multi_reduction <minimumf>, %108, %cst_44 [1] : vector<64x64xf32> to vector<64xf32>
    %110 = vector.shape_cast %109 : vector<64xf32> to vector<64x1xf32>
    %111 = arith.cmpf ogt, %96, %98 : vector<64x1xf32>
    %112 = arith.cmpf oeq, %96, %98 : vector<64x1xf32>
    %113 = arith.cmpf ole, %104, %110 : vector<64x1xf32>
    %114 = arith.andi %112, %113 : vector<64x1xi1>
    %115 = arith.ori %111, %114 : vector<64x1xi1>
    %116 = vector.broadcast %104 : vector<64x1xf32> to vector<64x64xf32>
    %117 = arith.cmpf oeq, %21, %116 : vector<64x64xf32>
    %118 = vector.broadcast %115 : vector<64x1xi1> to vector<64x64xi1>
    %119 = arith.andi %117, %118 : vector<64x64xi1>
    %120 = arith.extui %119 : vector<64x64xi1> to vector<64x64xi32>
    %121 = arith.sitofp %120 : vector<64x64xi32> to vector<64x64xf32>
    %122 = vector.broadcast %110 : vector<64x1xf32> to vector<64x64xf32>
    %123 = arith.cmpf oeq, %21, %122 : vector<64x64xf32>
    %cst_45 = arith.constant dense<true> : vector<64x1xi1>
    %124 = arith.xori %115, %cst_45 : vector<64x1xi1>
    %125 = vector.broadcast %124 : vector<64x1xi1> to vector<64x64xi1>
    %126 = arith.andi %123, %125 : vector<64x64xi1>
    %127 = arith.extui %126 : vector<64x64xi1> to vector<64x64xi32>
    %128 = arith.sitofp %127 : vector<64x64xi32> to vector<64x64xf32>
    %cst_46 = arith.constant dense<0.000000e+00> : vector<8x64xf32>
    %129 = tpu.matmul %83, %121, %cst_46 {dimension_numbers = #tpu.dot_dimension_numbers<[1], [0], [0], [1], [0, 0, 1, 1], [], []>} : vector<8x64xf32>, vector<64x64xf32>, vector<8x64xf32> -> vector<8x64xf32>
    %130 = arith.addf %75, %129 : vector<8x64xf32>
    %cst_47 = arith.constant dense<0.000000e+00> : vector<8x64xf32>
    %131 = tpu.matmul %83, %128, %cst_47 {dimension_numbers = #tpu.dot_dimension_numbers<[1], [0], [0], [1], [0, 0, 1, 1], [], []>} : vector<8x64xf32>, vector<64x64xf32>, vector<8x64xf32> -> vector<8x64xf32>
    %132 = arith.addf %77, %131 : vector<8x64xf32>
    %cst_48 = arith.constant dense<0.000000e+00> : vector<1x64xf32>
    %133 = tpu.matmul %22, %121, %cst_48 {dimension_numbers = #tpu.dot_dimension_numbers<[1], [0], [0], [1], [0, 0, 1, 1], [], []>} : vector<1x64xf32>, vector<64x64xf32>, vector<1x64xf32> -> vector<1x64xf32>
    %134 = arith.addf %79, %133 : vector<1x64xf32>
    %cst_49 = arith.constant dense<0.000000e+00> : vector<1x64xf32>
    %135 = tpu.matmul %22, %128, %cst_49 {dimension_numbers = #tpu.dot_dimension_numbers<[1], [0], [0], [1], [0, 0, 1, 1], [], []>} : vector<1x64xf32>, vector<64x64xf32>, vector<1x64xf32> -> vector<1x64xf32>
    %136 = arith.addf %81, %135 : vector<1x64xf32>
    %137 = arith.addf %1, %130 : vector<8x64xf32>
    %cst_50 = arith.constant 1.000000e+00 : f32
    %138 = vector.broadcast %cst_50 : f32 to vector<1x64xf32>
    %139 = arith.addf %138, %134 : vector<1x64xf32>
    %140 = vector.broadcast %139 : vector<1x64xf32> to vector<8x64xf32>
    %141 = arith.divf %137, %140 : vector<8x64xf32>
    %142 = arith.addf %3, %132 : vector<8x64xf32>
    %cst_51 = arith.constant 1.000000e+00 : f32
    %143 = vector.broadcast %cst_51 : f32 to vector<1x64xf32>
    %144 = arith.addf %143, %136 : vector<1x64xf32>
    %145 = vector.broadcast %144 : vector<1x64xf32> to vector<8x64xf32>
    %146 = arith.divf %142, %145 : vector<8x64xf32>
    %147 = arith.mulf %141, %141 : vector<8x64xf32>
    %cst_52 = arith.constant dense<0.000000e+00> : vector<64xf32>
    %148 = vector.multi_reduction <add>, %147, %cst_52 [0] : vector<8x64xf32> to vector<64xf32>
    %149 = vector.shape_cast %148 : vector<64xf32> to vector<1x64xf32>
    %cst_53 = arith.constant 1.000000e-30 : f32
    %150 = vector.broadcast %cst_53 : f32 to vector<1x64xf32>
    %151 = arith.addf %149, %150 : vector<1x64xf32>
    %152 = math.rsqrt %151 : vector<1x64xf32>
    %153 = vector.broadcast %152 : vector<1x64xf32> to vector<8x64xf32>
    %154 = arith.mulf %141, %153 : vector<8x64xf32>
    %155 = tpu.transpose %154, [1, 0] : vector<8x64xf32> -> vector<64x8xf32>
    %156 = arith.mulf %146, %146 : vector<8x64xf32>
    %cst_54 = arith.constant dense<0.000000e+00> : vector<64xf32>
    %157 = vector.multi_reduction <add>, %156, %cst_54 [0] : vector<8x64xf32> to vector<64xf32>
    %158 = vector.shape_cast %157 : vector<64xf32> to vector<1x64xf32>
    %cst_55 = arith.constant 1.000000e-30 : f32
    %159 = vector.broadcast %cst_55 : f32 to vector<1x64xf32>
    %160 = arith.addf %158, %159 : vector<1x64xf32>
    %161 = math.rsqrt %160 : vector<1x64xf32>
    %162 = vector.broadcast %161 : vector<1x64xf32> to vector<8x64xf32>
    %163 = arith.mulf %146, %162 : vector<8x64xf32>
    %cst_56 = arith.constant dense<0.000000e+00> : vector<64x64xf32>
    %164 = tpu.matmul %155, %163, %cst_56 {dimension_numbers = #tpu.dot_dimension_numbers<[1], [0], [0], [1], [0, 0, 1, 1], [], []>} : vector<64x8xf32>, vector<8x64xf32>, vector<64x64xf32> -> vector<64x64xf32>
    %cst_57 = arith.constant dense<0xFF800000> : vector<64xf32>
    %165 = vector.multi_reduction <maximumf>, %164, %cst_57 [1] : vector<64x64xf32> to vector<64xf32>
    %166 = vector.shape_cast %165 : vector<64xf32> to vector<64x1xf32>
    %167 = vector.broadcast %166 : vector<64x1xf32> to vector<64x64xf32>
    %168 = arith.cmpf oeq, %164, %167 : vector<64x64xf32>
    %cst_58 = arith.constant 6.400000e+01 : f32
    %169 = vector.broadcast %cst_58 : f32 to vector<64x64xf32>
    %170 = arith.select %168, %21, %169 : vector<64x64xi1>, vector<64x64xf32>
    %cst_59 = arith.constant dense<0x7F800000> : vector<64xf32>
    %171 = vector.multi_reduction <minimumf>, %170, %cst_59 [1] : vector<64x64xf32> to vector<64xf32>
    %172 = vector.shape_cast %171 : vector<64xf32> to vector<64x1xf32>
    %173 = vector.broadcast %172 : vector<64x1xf32> to vector<64x64xf32>
    %174 = arith.cmpf oeq, %21, %173 : vector<64x64xf32>
    %175 = arith.extui %174 : vector<64x64xi1> to vector<64x64xi32>
    %176 = arith.sitofp %175 : vector<64x64xi32> to vector<64x64xf32>
    %cst_60 = arith.constant dense<0.000000e+00> : vector<8x64xf32>
    %177 = tpu.matmul %141, %176, %cst_60 {dimension_numbers = #tpu.dot_dimension_numbers<[1], [0], [0], [1], [0, 0, 1, 1], [], []>} : vector<8x64xf32>, vector<64x64xf32>, vector<8x64xf32> -> vector<8x64xf32>
    %178 = arith.addf %146, %177 : vector<8x64xf32>
    %cst_61 = arith.constant dense<0.000000e+00> : vector<1x64xf32>
    %179 = tpu.matmul %22, %176, %cst_61 {dimension_numbers = #tpu.dot_dimension_numbers<[1], [0], [0], [1], [0, 0, 1, 1], [], []>} : vector<1x64xf32>, vector<64x64xf32>, vector<1x64xf32> -> vector<1x64xf32>
    %cst_62 = arith.constant 1.000000e+00 : f32
    %180 = vector.broadcast %cst_62 : f32 to vector<1x64xf32>
    %181 = arith.addf %180, %179 : vector<1x64xf32>
    %182 = vector.broadcast %181 : vector<1x64xf32> to vector<8x64xf32>
    %183 = arith.divf %178, %182 : vector<8x64xf32>
    %c0_63 = arith.constant 0 : index
    %c0_64 = arith.constant 0 : index
    %184 = vector.load %arg2[%c0_63, %c0_64] : memref<1x8xf32, #tpu.memory_space<vmem>>, vector<1x8xf32>
    %c0_65 = arith.constant 0 : index
    %185 = memref.load %arg5[%c0_65] : memref<3xf32, #tpu.memory_space<smem>>
    %c1_66 = arith.constant 1 : index
    %186 = memref.load %arg5[%c1_66] : memref<3xf32, #tpu.memory_space<smem>>
    %c2_67 = arith.constant 2 : index
    %187 = memref.load %arg5[%c2_67] : memref<3xf32, #tpu.memory_space<smem>>
    %cst_68 = arith.constant 0.000000e+00 : f32
    %188 = vector.broadcast %cst_68 : f32 to vector<8x64xf32>
    %c0_69 = arith.constant 0 : index
    %c4 = arith.constant 4 : index
    %c0_70 = arith.constant 0 : index
    %c0_71 = arith.constant 0 : index
    %189 = vector.load %arg1[%c0_69, %c4, %c0_70, %c0_71] : memref<1x8x8x64xf32, #tpu.memory_space<vmem>>, vector<1x1x8x64xf32>
    %190 = vector.shape_cast %189 : vector<1x1x8x64xf32> to vector<8x64xf32>
    %cst_72 = arith.constant dense<0.000000e+00> : vector<1x64xf32>
    %191 = tpu.matmul %184, %190, %cst_72 {dimension_numbers = #tpu.dot_dimension_numbers<[1], [0], [0], [1], [0, 0, 1, 1], [], []>} : vector<1x8xf32>, vector<8x64xf32>, vector<1x64xf32> -> vector<1x64xf32>
    %192 = vector.broadcast %185 : f32 to vector<1x64xf32>
    %193 = arith.addf %191, %192 : vector<1x64xf32>
    %194 = arith.negf %193 : vector<1x64xf32>
    %195 = math.exp %194 : vector<1x64xf32>
    %cst_73 = arith.constant 1.000000e+00 : f32
    %196 = vector.broadcast %cst_73 : f32 to vector<1x64xf32>
    %197 = arith.addf %196, %195 : vector<1x64xf32>
    %198 = arith.divf %196, %197 : vector<1x64xf32>
    %cst_74 = arith.constant 5.000000e-01 : f32
    %199 = vector.broadcast %cst_74 : f32 to vector<1x64xf32>
    %200 = arith.cmpf ogt, %198, %199 : vector<1x64xf32>
    %201 = vector.broadcast %198 : vector<1x64xf32> to vector<8x64xf32>
    %202 = arith.mulf %190, %201 : vector<8x64xf32>
    %cst_75 = arith.constant 0.000000e+00 : f32
    %203 = vector.shape_cast %200 : vector<1x64xi1> to vector<1x64xi1>
    %204 = vector.broadcast %203 : vector<1x64xi1> to vector<8x64xi1>
    %205 = vector.broadcast %cst_75 : f32 to vector<8x64xf32>
    %206 = arith.select %204, %202, %205 : vector<8x64xi1>, vector<8x64xf32>
    %207 = arith.addf %188, %206 : vector<8x64xf32>
    %c0_76 = arith.constant 0 : index
    %c5 = arith.constant 5 : index
    %c0_77 = arith.constant 0 : index
    %c0_78 = arith.constant 0 : index
    %208 = vector.load %arg1[%c0_76, %c5, %c0_77, %c0_78] : memref<1x8x8x64xf32, #tpu.memory_space<vmem>>, vector<1x1x8x64xf32>
    %209 = vector.shape_cast %208 : vector<1x1x8x64xf32> to vector<8x64xf32>
    %cst_79 = arith.constant dense<0.000000e+00> : vector<1x64xf32>
    %210 = tpu.matmul %184, %209, %cst_79 {dimension_numbers = #tpu.dot_dimension_numbers<[1], [0], [0], [1], [0, 0, 1, 1], [], []>} : vector<1x8xf32>, vector<8x64xf32>, vector<1x64xf32> -> vector<1x64xf32>
    %211 = vector.broadcast %185 : f32 to vector<1x64xf32>
    %212 = arith.addf %210, %211 : vector<1x64xf32>
    %213 = arith.negf %212 : vector<1x64xf32>
    %214 = math.exp %213 : vector<1x64xf32>
    %cst_80 = arith.constant 1.000000e+00 : f32
    %215 = vector.broadcast %cst_80 : f32 to vector<1x64xf32>
    %216 = arith.addf %215, %214 : vector<1x64xf32>
    %217 = arith.divf %215, %216 : vector<1x64xf32>
    %cst_81 = arith.constant 5.000000e-01 : f32
    %218 = vector.broadcast %cst_81 : f32 to vector<1x64xf32>
    %219 = arith.cmpf ogt, %217, %218 : vector<1x64xf32>
    %220 = vector.broadcast %217 : vector<1x64xf32> to vector<8x64xf32>
    %221 = arith.mulf %209, %220 : vector<8x64xf32>
    %cst_82 = arith.constant 0.000000e+00 : f32
    %222 = vector.shape_cast %219 : vector<1x64xi1> to vector<1x64xi1>
    %223 = vector.broadcast %222 : vector<1x64xi1> to vector<8x64xi1>
    %224 = vector.broadcast %cst_82 : f32 to vector<8x64xf32>
    %225 = arith.select %223, %221, %224 : vector<8x64xi1>, vector<8x64xf32>
    %226 = arith.addf %207, %225 : vector<8x64xf32>
    %c0_83 = arith.constant 0 : index
    %c6 = arith.constant 6 : index
    %c0_84 = arith.constant 0 : index
    %c0_85 = arith.constant 0 : index
    %227 = vector.load %arg1[%c0_83, %c6, %c0_84, %c0_85] : memref<1x8x8x64xf32, #tpu.memory_space<vmem>>, vector<1x1x8x64xf32>
    %228 = vector.shape_cast %227 : vector<1x1x8x64xf32> to vector<8x64xf32>
    %cst_86 = arith.constant dense<0.000000e+00> : vector<1x64xf32>
    %229 = tpu.matmul %184, %228, %cst_86 {dimension_numbers = #tpu.dot_dimension_numbers<[1], [0], [0], [1], [0, 0, 1, 1], [], []>} : vector<1x8xf32>, vector<8x64xf32>, vector<1x64xf32> -> vector<1x64xf32>
    %230 = vector.broadcast %185 : f32 to vector<1x64xf32>
    %231 = arith.addf %229, %230 : vector<1x64xf32>
    %232 = arith.negf %231 : vector<1x64xf32>
    %233 = math.exp %232 : vector<1x64xf32>
    %cst_87 = arith.constant 1.000000e+00 : f32
    %234 = vector.broadcast %cst_87 : f32 to vector<1x64xf32>
    %235 = arith.addf %234, %233 : vector<1x64xf32>
    %236 = arith.divf %234, %235 : vector<1x64xf32>
    %cst_88 = arith.constant 5.000000e-01 : f32
    %237 = vector.broadcast %cst_88 : f32 to vector<1x64xf32>
    %238 = arith.cmpf ogt, %236, %237 : vector<1x64xf32>
    %239 = vector.broadcast %236 : vector<1x64xf32> to vector<8x64xf32>
    %240 = arith.mulf %228, %239 : vector<8x64xf32>
    %cst_89 = arith.constant 0.000000e+00 : f32
    %241 = vector.shape_cast %238 : vector<1x64xi1> to vector<1x64xi1>
    %242 = vector.broadcast %241 : vector<1x64xi1> to vector<8x64xi1>
    %243 = vector.broadcast %cst_89 : f32 to vector<8x64xf32>
    %244 = arith.select %242, %240, %243 : vector<8x64xi1>, vector<8x64xf32>
    %245 = arith.addf %226, %244 : vector<8x64xf32>
    %c0_90 = arith.constant 0 : index
    %c7 = arith.constant 7 : index
    %c0_91 = arith.constant 0 : index
    %c0_92 = arith.constant 0 : index
    %246 = vector.load %arg1[%c0_90, %c7, %c0_91, %c0_92] : memref<1x8x8x64xf32, #tpu.memory_space<vmem>>, vector<1x1x8x64xf32>
    %247 = vector.shape_cast %246 : vector<1x1x8x64xf32> to vector<8x64xf32>
    %cst_93 = arith.constant dense<0.000000e+00> : vector<1x64xf32>
    %248 = tpu.matmul %184, %247, %cst_93 {dimension_numbers = #tpu.dot_dimension_numbers<[1], [0], [0], [1], [0, 0, 1, 1], [], []>} : vector<1x8xf32>, vector<8x64xf32>, vector<1x64xf32> -> vector<1x64xf32>
    %249 = vector.broadcast %185 : f32 to vector<1x64xf32>
    %250 = arith.addf %248, %249 : vector<1x64xf32>
    %251 = arith.negf %250 : vector<1x64xf32>
    %252 = math.exp %251 : vector<1x64xf32>
    %cst_94 = arith.constant 1.000000e+00 : f32
    %253 = vector.broadcast %cst_94 : f32 to vector<1x64xf32>
    %254 = arith.addf %253, %252 : vector<1x64xf32>
    %255 = arith.divf %253, %254 : vector<1x64xf32>
    %cst_95 = arith.constant 5.000000e-01 : f32
    %256 = vector.broadcast %cst_95 : f32 to vector<1x64xf32>
    %257 = arith.cmpf ogt, %255, %256 : vector<1x64xf32>
    %258 = vector.broadcast %255 : vector<1x64xf32> to vector<8x64xf32>
    %259 = arith.mulf %247, %258 : vector<8x64xf32>
    %cst_96 = arith.constant 0.000000e+00 : f32
    %260 = vector.shape_cast %257 : vector<1x64xi1> to vector<1x64xi1>
    %261 = vector.broadcast %260 : vector<1x64xi1> to vector<8x64xi1>
    %262 = vector.broadcast %cst_96 : f32 to vector<8x64xf32>
    %263 = arith.select %261, %259, %262 : vector<8x64xi1>, vector<8x64xf32>
    %264 = arith.addf %245, %263 : vector<8x64xf32>
    %cst_97 = arith.constant 2.500000e-01 : f32
    %265 = vector.broadcast %cst_97 : f32 to vector<8x64xf32>
    %266 = arith.mulf %265, %264 : vector<8x64xf32>
    %267 = vector.broadcast %186 : f32 to vector<8x64xf32>
    %268 = arith.mulf %267, %183 : vector<8x64xf32>
    %269 = vector.broadcast %187 : f32 to vector<8x64xf32>
    %270 = arith.mulf %269, %266 : vector<8x64xf32>
    %271 = arith.addf %268, %270 : vector<8x64xf32>
    %c0_98 = arith.constant 0 : index
    %c0_99 = arith.constant 0 : index
    %272 = vector.load %arg3[%c0_98, %c0_99] : memref<8x8xf32, #tpu.memory_space<vmem>>, vector<8x8xf32>
    %cst_100 = arith.constant dense<0.000000e+00> : vector<8x64xf32>
    %273 = tpu.matmul %272, %271, %cst_100 {dimension_numbers = #tpu.dot_dimension_numbers<[1], [0], [0], [1], [0, 0, 1, 1], [], []>} : vector<8x8xf32>, vector<8x64xf32>, vector<8x64xf32> -> vector<8x64xf32>
    %c0_101 = arith.constant 0 : index
    %c0_102 = arith.constant 0 : index
    %274 = vector.load %arg4[%c0_101, %c0_102] : memref<8x1xf32, #tpu.memory_space<vmem>>, vector<8x1xf32>
    %275 = vector.broadcast %274 : vector<8x1xf32> to vector<8x64xf32>
    %276 = arith.addf %273, %275 : vector<8x64xf32>
    %c0_103 = arith.constant 0 : index
    %c0_104 = arith.constant 0 : index
    %c0_105 = arith.constant 0 : index
    %277 = vector.load %arg6[%c0_103, %c0_104, %c0_105] : memref<1x8x64xf32, #tpu.memory_space<vmem>>, vector<1x8x64xf32>
    %278 = vector.shape_cast %277 : vector<1x8x64xf32> to vector<8x64xf32>
    %279 = vector.shape_cast %276 : vector<8x64xf32> to vector<1x8x64xf32>
    tpu.vector_store %arg6[%c0_103, %c0_104, %c0_105], %279 {strides = array<i32>} : memref<1x8x64xf32, #tpu.memory_space<vmem>>, vector<1x8x64xf32>,
    return
  }
  func.func @transform_0(%arg0: i32) -> (i32, i32, i32, i32) {
    %c0_i32 = arith.constant 0 : i32
    %c0_i32_0 = arith.constant 0 : i32
    %c0_i32_1 = arith.constant 0 : i32
    %c0_i32_2 = arith.constant 0 : i32
    return %arg0, %c0_i32, %c0_i32_0, %c0_i32_1 : i32, i32, i32, i32
  }
  func.func @transform_1(%arg0: i32) -> (i32, i32) {
    %c0_i32 = arith.constant 0 : i32
    %c0_i32_0 = arith.constant 0 : i32
    %c0_i32_1 = arith.constant 0 : i32
    return %c0_i32, %c0_i32_0 : i32, i32
  }
  func.func @transform_2(%arg0: i32) -> (i32, i32) {
    %c0_i32 = arith.constant 0 : i32
    %c0_i32_0 = arith.constant 0 : i32
    %c0_i32_1 = arith.constant 0 : i32
    return %c0_i32, %c0_i32_0 : i32, i32
  }
  func.func @transform_3(%arg0: i32) -> (i32, i32) {
    %c0_i32 = arith.constant 0 : i32
    %c0_i32_0 = arith.constant 0 : i32
    %c0_i32_1 = arith.constant 0 : i32
    return %c0_i32, %c0_i32_0 : i32, i32
  }
  func.func @transform_4(%arg0: i32) -> i32 {
    %c0_i32 = arith.constant 0 : i32
    %c0_i32_0 = arith.constant 0 : i32
    return %c0_i32 : i32
  }
  func.func @transform_5(%arg0: i32) -> (i32, i32, i32) {
    %c0_i32 = arith.constant 0 : i32
    %c0_i32_0 = arith.constant 0 : i32
    %c0_i32_1 = arith.constant 0 : i32
    return %arg0, %c0_i32, %c0_i32_0 : i32, i32, i32
  }
}

</mosaic_0001>

<llo_original>
// kernel: xcy2_forward.1
$region0: #{xcy2_forward.1}
  #allocation0 [shape = 'u32[]', space=smem, size = 0x4, offset = 0x4, fixed_abs, tag = 'smem constant byte address 0x4 - core index']
  #allocation1 [shape = 'u32[144,128]{1,0:T(1,128)}', space=vmem, size = 0x12000, scoped, tag = 'internal scratch']
  %s0 = inlined_call_operand.hbm [shape: f32[2,8,8,64], index: 0, kind: input, shape index: {}]
  %s1 = inlined_call_operand.hbm [shape: f32[1,8], index: 1, kind: input, shape index: {}]
  %s2 = inlined_call_operand.hbm [shape: f32[8,8], index: 2, kind: input, shape index: {}]
  %s3 = inlined_call_operand.hbm [shape: f32[8,1], index: 3, kind: input, shape index: {}]
  %s4 = inlined_call_operand.hbm [shape: f32[3], index: 4, kind: input, shape index: {}]
  %s5 = inlined_call_operand.hbm [shape: f32[2,8,64], index: 5, kind: output, shape index: {}]
  %s6 = sld [smem:[#allocation0]]
  $region73: #{xcy2_forward.1} parent=0
    _
  %s8 = ssub.s32 1, %s6
  %s9 = scalar_select 0, %s8, %s6
  $region1: #{xcy2_forward.1} parent=0
    #allocation2 [shape = 'u8[65536]{0}', space=vmem, size = 0x10000, scoped, tag = 'input window, operand 0']
    #allocation3 [shape = 's32[2]{0}', space=sflag, size = 0x8, scoped, tag = 'scoped memory for xcy2_forward.1']
    #allocation4 [shape = 's32[2]{0}', space=sflag, size = 0x8, scoped, tag = 'scoped memory for xcy2_forward.1']
    #allocation5 [shape = 's32[2]{0}', space=sflag, size = 0x8, scoped, tag = 'scoped memory for xcy2_forward.1']
    #allocation6 [shape = 'u8[512]{0}', space=vmem, size = 0x400, scoped, tag = 'input window, operand 1, single buffered']
    #allocation7 [shape = 's32[1]{0}', space=sflag, size = 0x4, scoped, tag = 'scoped memory for xcy2_forward.1']
    #allocation8 [shape = 'u8[4096]{0}', space=vmem, size = 0x1000, scoped, tag = 'input window, operand 2, single buffered']
    #allocation9 [shape = 'u8[4096]{0}', space=vmem, size = 0x1000, scoped, tag = 'input window, operand 3, single buffered']
    #allocation10 [shape = 's32[1]{0}', space=sflag, size = 0x4, scoped, tag = 'scoped memory for xcy2_forward.1']
    #allocation11 [shape = 'u8[512]{0}', space=smem, size = 0x200, scoped, tag = 'input window, operand 4, single buffered']
    #allocation12 [shape = 'u8[8192]{0}', space=vmem, size = 0x2000, scoped, tag = 'output window, operand 0']
    %10 = vsyncpa [#allocation3], 0
    %s11 = scalar_lea.sflag [#allocation3], 1
    %12 = vsyncpa %s11, 0
    %13 = vsyncpa [#allocation7], 0
    %14 = vsyncpa [#allocation10], 0
    %15 = vsyncpa [#allocation5], 0
    %16 = vsyncpa [#allocation4], 0
    %s17 = scalar_lea.sflag [#allocation4], 1
    %18 = vsyncpa %s17, 0
    loop: start=0, step=1, limit=4
    $region2: #{xcy2_forward.1} parent=1 // loop_pre_header
      _
    $region3: #{xcy2_forward.1} parent=1 // loop_header
      %s20 = sphi 0, %s24
      %p21 = scmp.ge.s32.totalorder %s20, 4
      %s30 = sphi 0, %s32
      %s33 = sphi 0, %s30
      %s34 = sphi 0, %s33
      %s50 = sphi 0, %s34
      %s54 = sphi 0, %s54
      %s56 = sphi 0, %s54
      %s57 = sphi 0, %s56
      %s71 = sphi 0, %s57
      %s75 = sphi 0, %s75
      %s77 = sphi 0, %s75
      %s78 = sphi 0, %s77
      %s92 = sphi 0, %s78
      %s96 = sphi 0, %s96
      %s98 = sphi 0, %s96
      %s99 = sphi 0, %s98
      %s113 = sphi 0, %s99
      %s117 = sphi 0, %s117
      %s119 = sphi 0, %s117
      %s120 = sphi 0, %s119
      %s134 = sphi 0, %s120
      %s140 = sphi 0, %s142
      %s143 = sphi 0, %s140
      %s144 = sphi 0, %s143
      %s160 = sphi 0, %s144
    $region4: #{xcy2_forward.1} parent=1 // loop_header_branch
      %23 = sbr.rel (%p21) target = $region8
    $region5: #{xcy2_forward.1} parent=1 // loop_body
      %s25 = ssub.s32 %s20, 1
      %s26 = ssub.s32 %s20, 2
      %s27 = sadd.s32 %s20, 1
      %s28 = ssub.s32 %s20, %s27
      %p29 = scmp.eq.s32.totalorder %s28, 0
      %s31 = sadd.s32 %s30, 1
      %s32 = scalar_select %p29, %s30, %s31
      %p35 = pneg %p29
      %p36 = scmp.eq.s32.totalorder %s20, 1
      %p37 = por %p35, %p36
      %p38 = scmp.ne.s32.totalorder %s30, %s33
      %p39 = scmp.eq.s32.totalorder %s20, 0
      %p40 = por %p38, %p39
      %p41 = scmp.ne.s32.totalorder %s30, %s33
      %p42 = scmp.eq.s32.totalorder %s25, 1
      %p43 = por %p41, %p42
      %p44 = scmp.ne.s32.totalorder %s33, %s34
      %p45 = scmp.eq.s32.totalorder %s25, 0
      %p46 = por %p44, %p45
      %p47 = scmp.ne.s32.totalorder %s33, %s34
      %p48 = scmp.eq.s32.totalorder %s26, 1
      %p49 = por %p47, %p48
      %p51 = scmp.ne.s32.totalorder %s34, %s50
      %p52 = scmp.eq.s32.totalorder %s26, 0
      %p53 = por %p51, %p52
      %s55 = sadd.s32 %s54, 1
      %p58 = scmp.eq.s32.totalorder %s20, 1
      %p59 = scmp.ne.s32.totalorder %s54, %s56
      %p60 = scmp.eq.s32.totalorder %s20, 0
      %p61 = por %p59, %p60
      %p62 = scmp.ne.s32.totalorder %s54, %s56
      %p63 = scmp.eq.s32.totalorder %s25, 1
      %p64 = por %p62, %p63
      %p65 = scmp.ne.s32.totalorder %s56, %s57
      %p66 = scmp.eq.s32.totalorder %s25, 0
      %p67 = por %p65, %p66
      %p68 = scmp.ne.s32.totalorder %s56, %s57
      %p69 = scmp.eq.s32.totalorder %s26, 1
      %p70 = por %p68, %p69
      %p72 = scmp.ne.s32.totalorder %s57, %s71
      %p73 = scmp.eq.s32.totalorder %s26, 0
      %p74 = por %p72, %p73
      %s76 = sadd.s32 %s75, 1
      %p79 = scmp.eq.s32.totalorder %s20, 1
      %p80 = scmp.ne.s32.totalorder %s75, %s77
      %p81 = scmp.eq.s32.totalorder %s20, 0
      %p82 = por %p80, %p81
      %p83 = scmp.ne.s32.totalorder %s75, %s77
      %p84 = scmp.eq.s32.totalorder %s25, 1
      %p85 = por %p83, %p84
      %p86 = scmp.ne.s32.totalorder %s77, %s78
      %p87 = scmp.eq.s32.totalorder %s25, 0
      %p88 = por %p86, %p87
      %p89 = scmp.ne.s32.totalorder %s77, %s78
      %p90 = scmp.eq.s32.totalorder %s26, 1
      %p91 = por %p89, %p90
      %p93 = scmp.ne.s32.totalorder %s78, %s92
      %p94 = scmp.eq.s32.totalorder %s26, 0
      %p95 = por %p93, %p94
      %s97 = sadd.s32 %s96, 1
      %p100 = scmp.eq.s32.totalorder %s20, 1
      %p101 = scmp.ne.s32.totalorder %s96, %s98
      %p102 = scmp.eq.s32.totalorder %s20, 0
      %p103 = por %p101, %p102
      %p104 = scmp.ne.s32.totalorder %s96, %s98
      %p105 = scmp.eq.s32.totalorder %s25, 1
      %p106 = por %p104, %p105
      %p107 = scmp.ne.s32.totalorder %s98, %s99
      %p108 = scmp.eq.s32.totalorder %s25, 0
      %p109 = por %p107, %p108
      %p110 = scmp.ne.s32.totalorder %s98, %s99
      %p111 = scmp.eq.s32.totalorder %s26, 1
      %p112 = por %p110, %p111
      %p114 = scmp.ne.s32.totalorder %s99, %s113
      %p115 = scmp.eq.s32.totalorder %s26, 0
      %p116 = por %p114, %p115
      %s118 = sadd.s32 %s117, 1
      %p121 = scmp.eq.s32.totalorder %s20, 1
      %p122 = scmp.ne.s32.totalorder %s117, %s119
      %p123 = scmp.eq.s32.totalorder %s20, 0
      %p124 = por %p122, %p123
      %p125 = scmp.ne.s32.totalorder %s117, %s119
      %p126 = scmp.eq.s32.totalorder %s25, 1
      %p127 = por %p125, %p126
      %p128 = scmp.ne.s32.totalorder %s119, %s120
      %p129 = scmp.eq.s32.totalorder %s25, 0
      %p130 = por %p128, %p129
      %p131 = scmp.ne.s32.totalorder %s119, %s120
      %p132 = scmp.eq.s32.totalorder %s26, 1
      %p133 = por %p131, %p132
      %p135 = scmp.ne.s32.totalorder %s120, %s134
      %p136 = scmp.eq.s32.totalorder %s26, 0
      %p137 = por %p135, %p136
      %s138 = ssub.s32 %s20, %s27
      %p139 = scmp.eq.s32.totalorder %s138, 0
      %s141 = sadd.s32 %s140, 1
      %s142 = scalar_select %p139, %s140, %s141
      %p145 = pneg %p139
      %p146 = scmp.eq.s32.totalorder %s20, 1
      %p147 = por %p145, %p146
      %p148 = scmp.ne.s32.totalorder %s140, %s143
      %p149 = scmp.eq.s32.totalorder %s20, 0
      %p150 = por %p148, %p149
      %p151 = scmp.ne.s32.totalorder %s140, %s143
      %p152 = scmp.eq.s32.totalorder %s25, 1
      %p153 = por %p151, %p152
      %p154 = scmp.ne.s32.totalorder %s143, %s144
      %p155 = scmp.eq.s32.totalorder %s25, 0
      %p156 = por %p154, %p155
      %p157 = scmp.ne.s32.totalorder %s143, %s144
      %p158 = scmp.eq.s32.totalorder %s26, 1
      %p159 = por %p157, %p158
      %p161 = scmp.ne.s32.totalorder %s144, %s160
      %p162 = scmp.eq.s32.totalorder %s26, 0
      %p163 = por %p161, %p162
      %p164 = scmp.le.s32.totalorder 1, %s20
      %p165 = scmp.lt.s32.totalorder %s20, 3
      %p166 = pnand %p164, %p165
      %p167 = pneg %p166
      // Predicated region
      $region9: #{xcy2_forward.1} parent=5 // pred_check
        _
      $region10: #{xcy2_forward.1} parent=5 // pred_check_branch
        %169 = sbr.rel (%p166) target = $region12
      $region11: #{xcy2_forward.1} parent=5 // pred_region
        %s170 = ssub.s32 %s20, 1
        // Predicated region
        $region13: #{xcy2_forward.1} parent=11 // pred_check
          %p171 = pneg %p67
        $region14: #{xcy2_forward.1} parent=11 // pred_check_branch
          %173 = sbr.rel (%p171) target = $region16
        $region15: #{xcy2_forward.1} parent=11 // pred_region
          %s175 = ssub.s32 16, 16
          %176 = vsyncadd [#allocation7], %s175
          %s178 = sshll.u32 [#allocation6], 4
          %s179 = int_to_ptr.vmem [resolvable:$true] %s178
          %181 = dma.hbm_to_vmem [thread:$0]  %s1, 16, %s179, [#allocation7]
        $region16: #{xcy2_forward.1} parent=11 // pred_fallthru
          _
        // Predicated region
        $region17: #{xcy2_forward.1} parent=11 // pred_check
          %p182 = pneg %p88
        $region18: #{xcy2_forward.1} parent=11 // pred_check_branch
          %184 = sbr.rel (%p182) target = $region20
        $region19: #{xcy2_forward.1} parent=11 // pred_region
          %s186 = ssub.s32 128, 128
          %187 = vsyncadd [#allocation7], %s186
          %s189 = sshll.u32 [#allocation8], 4
          %s190 = int_to_ptr.vmem [resolvable:$true] %s189
          %192 = dma.hbm_to_vmem [thread:$0]  %s2, 128, %s190, [#allocation7]
        $region20: #{xcy2_forward.1} parent=11 // pred_fallthru
          _
        // Predicated region
        $region21: #{xcy2_forward.1} parent=11 // pred_check
          %p193 = pneg %p109
        $region22: #{xcy2_forward.1} parent=11 // pred_check_branch
          %195 = sbr.rel (%p193) target = $region24
        $region23: #{xcy2_forward.1} parent=11 // pred_region
          %s197 = ssub.s32 128, 128
          %198 = vsyncadd [#allocation10], %s197
          %s200 = sshll.u32 [#allocation9], 4
          %s201 = int_to_ptr.vmem [resolvable:$true] %s200
          %203 = dma.hbm_to_vmem [thread:$0]  %s3, 128, %s201, [#allocation10]
        $region24: #{xcy2_forward.1} parent=11 // pred_fallthru
          _
        // Predicated region
        $region25: #{xcy2_forward.1} parent=11 // pred_check
          %p204 = pneg %p130
        $region26: #{xcy2_forward.1} parent=11 // pred_check_branch
          %206 = sbr.rel (%p204) target = $region28
        $region27: #{xcy2_forward.1} parent=11 // pred_region
          %s208 = ssub.s32 16, 16
          %209 = vsyncadd [#allocation5], %s208
          %212 = dma.hbm_to_smem %s4, 16, [#allocation11], [#allocation5]
        $region28: #{xcy2_forward.1} parent=11 // pred_fallthru
          _
      $region12: #{xcy2_forward.1} parent=5 // pred_fallthru
        _
      %p213 = scmp.lt.s32.totalorder %s20, 2
      // Predicated region
      $region29: #{xcy2_forward.1} parent=5 // pred_check
        %p214 = pneg %p213
      $region30: #{xcy2_forward.1} parent=5 // pred_check_branch
        %216 = sbr.rel (%p214) target = $region32
      $region31: #{xcy2_forward.1} parent=5 // pred_region
        // Predicated region
        $region33: #{xcy2_forward.1} parent=31 // pred_check
          %p217 = pneg %p40
        $region34: #{xcy2_forward.1} parent=31 // pred_check_branch
          %219 = sbr.rel (%p217) target = $region36
        $region35: #{xcy2_forward.1} parent=31 // pred_region
          %s220 = sand.u32 %s30, 1
          %s221 = scalar_lea.sflag [#allocation3], %s220
          %s222 = sand.u32 %s30, 1
          %s223 = smul.addr %s222, 64
          %s224 = scalar_lea.vmem [#allocation2], %s223
          %s226 = ssub.s32 1024, 1024
          %227 = vsyncadd %s221, %s226
          %s228 = smul.addr %s20, 8
          %s229 = smul.addr %s228, 128
          %s230 = scalar_lea.hbm %s0, %s229
          %s231 = sshll.u32 %s224, 4
          %s232 = int_to_ptr.vmem [resolvable:$true] %s231
          %237 = dma.hbm_to_vmem [thread:$0]  %s230, 1024, %s232, %s221, 128, 128, 8
        $region36: #{xcy2_forward.1} parent=31 // pred_fallthru
          _
      $region32: #{xcy2_forward.1} parent=5 // pred_fallthru
        _
      %p238 = scmp.le.s32.totalorder 1, %s20
      %p239 = scmp.lt.s32.totalorder %s20, 3
      %p240 = pnand %p238, %p239
      %p241 = pneg %p240
      // Predicated region
      $region37: #{xcy2_forward.1} parent=5 // pred_check
        _
      $region38: #{xcy2_forward.1} parent=5 // pred_check_branch
        %243 = sbr.rel (%p240) target = $region40
      $region39: #{xcy2_forward.1} parent=5 // pred_region
        %s244 = ssub.s32 %s20, 1
        %s245 = sand.u32 %s33, 1
        %s246 = scalar_lea.sflag [#allocation3], %s245
        %s247 = sand.u32 %s33, 1
        %s248 = smul.addr %s247, 64
        %s249 = scalar_lea.vmem [#allocation2], %s248
        // Predicated region
        $region41: #{xcy2_forward.1} parent=39 // pred_check
          %p250 = pneg %p46
        $region42: #{xcy2_forward.1} parent=39 // pred_check_branch
          %252 = sbr.rel (%p250) target = $region44
        $region43: #{xcy2_forward.1} parent=39 // pred_region
          %253 = dma.done %s246, 1024
        $region44: #{xcy2_forward.1} parent=39 // pred_fallthru
          _
        // Predicated region
        $region45: #{xcy2_forward.1} parent=39 // pred_check
          %p254 = pneg %p67
        $region46: #{xcy2_forward.1} parent=39 // pred_check_branch
          %256 = sbr.rel (%p254) target = $region48
        $region47: #{xcy2_forward.1} parent=39 // pred_region
          %257 = dma.done [#allocation7], 16
        $region48: #{xcy2_forward.1} parent=39 // pred_fallthru
          _
        // Predicated region
        $region49: #{xcy2_forward.1} parent=39 // pred_check
          %p258 = pneg %p88
        $region50: #{xcy2_forward.1} parent=39 // pred_check_branch
          %260 = sbr.rel (%p258) target = $region52
        $region51: #{xcy2_forward.1} parent=39 // pred_region
          %261 = dma.done [#allocation7], 128
        $region52: #{xcy2_forward.1} parent=39 // pred_fallthru
          _
        // Predicated region
        $region53: #{xcy2_forward.1} parent=39 // pred_check
          %p262 = pneg %p109
        $region54: #{xcy2_forward.1} parent=39 // pred_check_branch
          %264 = sbr.rel (%p262) target = $region56
        $region55: #{xcy2_forward.1} parent=39 // pred_region
          %265 = dma.done [#allocation10], 128
        $region56: #{xcy2_forward.1} parent=39 // pred_fallthru
          _
        // Predicated region
        $region57: #{xcy2_forward.1} parent=39 // pred_check
          %p266 = pneg %p130
        $region58: #{xcy2_forward.1} parent=39 // pred_check_branch
          %268 = sbr.rel (%p266) target = $region60
        $region59: #{xcy2_forward.1} parent=39 // pred_region
          %269 = dma.done [#allocation5], 16
        $region60: #{xcy2_forward.1} parent=39 // pred_fallthru
          _
        %270 = sfence
        %s271 = sand.u32 %s33, 1
        %s272 = scalar_lea.sflag [#allocation3], %s271
        %s273 = sand.u32 %s33, 1
        %s274 = smul.addr %s273, 64
        %s275 = scalar_lea.vmem [#allocation2], %s274
        %p276 = pneg %p46
        %p277 = pneg %p43
        %p278 = pneg %p67
        %p279 = pneg %p64
        %p280 = pneg %p88
        %p281 = pneg %p85
        %p282 = pneg %p109
        %p283 = pneg %p106
        %p284 = pneg %p130
        %p285 = pneg %p127
        %p286 = pneg %p156
        %p287 = pneg %p153
        %s288 = sand.u32 %s143, 1
        %s289 = scalar_lea.sflag [#allocation4], %s288
        %s290 = sand.u32 %s143, 1
        %s291 = smul.addr %s290, 8
        %s292 = scalar_lea.vmem [#allocation12], %s291
        %s293 = scalar_lea.vmem %s249, 16 [#allocation2]
        %v294 = vld [vmem:[%s293] sm:$0xff]
        %s295 = scalar_lea.vmem %s249, 24 [#allocation2]
        %v296 = vld [vmem:[%s295] sm:$0xff]
        %v297 = vmul.f32 %v294, %v294
        %vm298 = vcmask 523264
        %v299 = vsel %vm298, %v297, 0.0
        %v300 = vrot.slane %v299, 4
        %v301 = vadd.f32 %v299, %v300
        %v302 = vrot.slane %v301, 2
        %v303 = vadd.f32 %v301, %v302
        %v304 = vrot.slane %v303, 1
        %v305 = vadd.f32 %v303, %v304
        %v306 = vadd.f32 %v305, 1e-30
        %v307 = vrsqrt.pop %v306
        %v308 = vmul.f32 %v294, %v307
        %v309 = vmul.f32 %v296, %v296
        %v310 = vsel %vm298, %v309, 0.0
        %v311 = vrot.slane %v310, 4
        %v312 = vadd.f32 %v310, %v311
        %v313 = vrot.slane %v312, 2
        %v314 = vadd.f32 %v312, %v313
        %v315 = vrot.slane %v314, 1
        %v316 = vadd.f32 %v314, %v315
        %v317 = vadd.f32 %v316, 1e-30
        %v318 = vrsqrt.pop %v317
        %v319 = vmul.f32 %v296, %v318
        %v320 = vlaneseq
        %v321 = vand.u32 %v320, 127
        %v322 = vcvt.s32.f32 %v321
        %v323 = vld [vmem:[%s249] sm:$0xff]
        %v324 = vmul.f32 %v323, %v323
        %v325 = vsel %vm298, %v324, 0.0
        %v326 = vrot.slane %v325, 4
        %v327 = vadd.f32 %v325, %v326
        %v328 = vrot.slane %v327, 2
        %v329 = vadd.f32 %v327, %v328
        %v330 = vrot.slane %v329, 1
        %v331 = vadd.f32 %v329, %v330
        %v332 = vadd.f32 %v331, 1e-30
        %v333 = vrsqrt.pop %v332
        %v334 = vmul.f32 %v323, %v333
        %335 = vxpose.xlu0.b32.start [1/16] %v334, 128
        %336 = vxpose.xlu0.b32.cont [2/16] 0.0, 128
        %337 = vxpose.xlu0.b32.cont [3/16] 0.0, 128
        %338 = vxpose.xlu0.b32.cont [4/16] 0.0, 128
        %339 = vxpose.xlu0.b32.cont [5/16] 0.0, 128
        %340 = vxpose.xlu0.b32.cont [6/16] 0.0, 128
        %341 = vxpose.xlu0.b32.cont [7/16] 0.0, 128
        %342 = vxpose.xlu0.b32.cont [8/16] 0.0, 128
        %343 = vxpose.xlu0.b32.cont [9/16] 0.0, 128
        %344 = vxpose.xlu0.b32.cont [10/16] 0.0, 128
        %345 = vxpose.xlu0.b32.cont [11/16] 0.0, 128
        %346 = vxpose.xlu0.b32.cont [12/16] 0.0, 128
        %347 = vxpose.xlu0.b32.cont [13/16] 0.0, 128
        %348 = vxpose.xlu0.b32.cont [14/16] 0.0, 128
        %349 = vxpose.xlu0.b32.cont [15/16] 0.0, 128
        %350 = vxpose.xlu0.b32.end [16/16] 0.0, 128
        %v351 = vpop.trf.xlu0
        %v352 = vpop.trf.xlu0
        %v353 = vpop.trf.xlu0
        %v354 = vpop.trf.xlu0
        %v355 = vpop.trf.xlu0
        %v356 = vpop.trf.xlu0
        %v357 = vpop.trf.xlu0
        %v358 = vpop.trf.xlu0
        %v359 = vpop.trf.xlu0
        %v360 = vpop.trf.xlu0
        %v361 = vpop.trf.xlu0
        %v362 = vpop.trf.xlu0
        %v363 = vpop.trf.xlu0
        %v364 = vpop.trf.xlu0
        %v365 = vpop.trf.xlu0
        %v366 = vpop.trf.xlu0
        %vm367 = vcmask 64512
        %v369 = vsel %vm367, %v351, 0
        %v372 = vsel %vm367, %v352, 0
        %v375 = vsel %vm367, %v353, 0
        %v378 = vsel %vm367, %v354, 0
        %v381 = vsel %vm367, %v355, 0
        %v384 = vsel %vm367, %v356, 0
        %v387 = vsel %vm367, %v357, 0
        %v390 = vsel %vm367, %v358, 0
        %392 = vmatprep.subr.mxu0 0.0
        %393 = vmatpush1.msra.mxu0 %v308
        %394 = vmatprep.subr.mxu0 0.0
        %395 = vmatpush1.msra.mxu0 0.0
        %396 = vmatprep.subr.mxu0 0.0
        %397 = vmatpush1.msra.mxu0 0.0
        %398 = vmatprep.subr.mxu0 0.0
        %399 = vmatpush1.msra.mxu0 0.0
        %400 = vmatprep.subr.mxu0 0.0
        %401 = vmatpush1.msra.mxu0 0.0
        %402 = vmatprep.subr.mxu0 0.0
        %403 = vmatpush1.msra.mxu0 0.0
        %404 = vmatprep.subr.mxu0 0.0
        %405 = vmatpush1.msra.mxu0 0.0
        %406 = vmatprep.subr.mxu0 0.0
        %407 = vmatpush1.msra.mxu0 0.0
        %408 = vmatprep.subr.mxu0 0.0
        %409 = vmatpush1.msra.mxu0 0.0
        %410 = vmatprep.subr.mxu0 0.0
        %411 = vmatpush1.msra.mxu0 0.0
        %412 = vmatprep.subr.mxu0 0.0
        %413 = vmatpush1.msra.mxu0 0.0
        %414 = vmatprep.subr.mxu0 0.0
        %415 = vmatpush1.msra.mxu0 0.0
        %416 = vmatprep.subr.mxu0 0.0
        %417 = vmatpush1.msra.mxu0 0.0
        %418 = vmatprep.subr.mxu0 0.0
        %419 = vmatpush1.msra.mxu0 0.0
        %420 = vmatprep.subr.mxu0 0.0
        %421 = vmatpush1.msra.mxu0 0.0
        %422 = vmatprep.subr.mxu0 0.0
        %423 = vmatpush1.msra.mxu0 0.0
        %424 = vmatprep.subr.mxu0 0.0
        %425 = vmatpush1.msra.mxu0 0.0
        %426 = vmatprep.subr.mxu0 0.0
        %427 = vmatpush1.msra.mxu0 0.0
        %428 = vmatprep.subr.mxu0 0.0
        %429 = vmatpush1.msra.mxu0 0.0
        %430 = vmatprep.subr.mxu0 0.0
        %431 = vmatpush1.msra.mxu0 0.0
        %432 = vmatprep.subr.mxu0 0.0
        %433 = vmatpush1.msra.mxu0 0.0
        %434 = vmatprep.subr.mxu0 0.0
        %435 = vmatpush1.msra.mxu0 0.0
        %436 = vmatprep.subr.mxu0 0.0
        %437 = vmatpush1.msra.mxu0 0.0
        %438 = vmatprep.subr.mxu0 0.0
        %439 = vmatpush1.msra.mxu0 0.0
        %440 = vmatprep.subr.mxu0 0.0
        %441 = vmatpush1.msra.mxu0 0.0
        %442 = vmatprep.subr.mxu0 0.0
        %443 = vmatpush1.msra.mxu0 0.0
        %444 = vmatprep.subr.mxu0 0.0
        %445 = vmatpush1.msra.mxu0 0.0
        %446 = vmatprep.subr.mxu0 0.0
        %447 = vmatpush1.msra.mxu0 0.0
        %448 = vmatprep.subr.mxu0 0.0
        %449 = vmatpush1.msra.mxu0 0.0
        %450 = vmatprep.subr.mxu0 0.0
        %451 = vmatpush1.msra.mxu0 0.0
        %452 = vmatprep.subr.mxu0 0.0
        %453 = vmatpush1.msra.mxu0 0.0
        %454 = vmatprep.subr.mxu0 0.0
        %455 = vmatpush1.msra.mxu0 0.0
        %456 = vmatprep.mubr.f32.mxu0 0.0
        %457 = vmatmul.mubr.f32.gmra.mrb[0].mxu0 %v369
        %v458 = vpop.f32.mrb[0].mxu0
        %v459 = vadd.f32 0.0, %v458
        %v460 = vpop.f32.mrb[0].mxu0
        %461 = vmatprep.mubr.f32.mxu0 0.0
        %462 = vmatmul.mubr.f32.gmra.mrb[0].mxu0 %v372
        %v463 = vpop.f32.mrb[0].mxu0
        %v464 = vadd.f32 0.0, %v463
        %v465 = vpop.f32.mrb[0].mxu0
        %466 = vmatprep.mubr.f32.mxu0 0.0
        %467 = vmatmul.mubr.f32.gmra.mrb[0].mxu0 %v375
        %v468 = vpop.f32.mrb[0].mxu0
        %v469 = vadd.f32 0.0, %v468
        %v470 = vpop.f32.mrb[0].mxu0
        %471 = vmatprep.mubr.f32.mxu0 0.0
        %472 = vmatmul.mubr.f32.gmra.mrb[0].mxu0 %v378
        %v473 = vpop.f32.mrb[0].mxu0
        %v474 = vadd.f32 0.0, %v473
        %v475 = vpop.f32.mrb[0].mxu0
        %476 = vmatprep.mubr.f32.mxu0 0.0
        %477 = vmatmul.mubr.f32.gmra.mrb[0].mxu0 %v381
        %v478 = vpop.f32.mrb[0].mxu0
        %v479 = vadd.f32 0.0, %v478
        %v480 = vpop.f32.mrb[0].mxu0
        %481 = vmatprep.mubr.f32.mxu0 0.0
        %482 = vmatmul.mubr.f32.gmra.mrb[0].mxu0 %v384
        %v483 = vpop.f32.mrb[0].mxu0
        %v484 = vadd.f32 0.0, %v483
        %v485 = vpop.f32.mrb[0].mxu0
        %486 = vmatprep.mubr.f32.mxu0 0.0
        %487 = vmatmul.mubr.f32.gmra.mrb[0].mxu0 %v387
        %v488 = vpop.f32.mrb[0].mxu0
        %v489 = vadd.f32 0.0, %v488
        %v490 = vpop.f32.mrb[0].mxu0
        %491 = vmatprep.mubr.f32.mxu0 0.0
        %492 = vmatmul.mubr.f32.gmra.mrb[0].mxu0 %v390
        %v493 = vpop.f32.mrb[0].mxu0
        %v494 = vadd.f32 0.0, %v493
        %v495 = vpop.f32.mrb[0].mxu0
        %496 = vdwg.mxu0
        %497 = vmatprep.subr.mxu0 0.0
        %498 = vmatpush1.msra.mxu0 %v319
        %499 = vmatprep.subr.mxu0 0.0
        %500 = vmatpush1.msra.mxu0 0.0
        %501 = vmatprep.subr.mxu0 0.0
        %502 = vmatpush1.msra.mxu0 0.0
        %503 = vmatprep.subr.mxu0 0.0
        %504 = vmatpush1.msra.mxu0 0.0
        %505 = vmatprep.subr.mxu0 0.0
        %506 = vmatpush1.msra.mxu0 0.0
        %507 = vmatprep.subr.mxu0 0.0
        %508 = vmatpush1.msra.mxu0 0.0
        %509 = vmatprep.subr.mxu0 0.0
        %510 = vmatpush1.msra.mxu0 0.0
        %511 = vmatprep.subr.mxu0 0.0
        %512 = vmatpush1.msra.mxu0 0.0
        %513 = vmatprep.subr.mxu0 0.0
        %514 = vmatpush1.msra.mxu0 0.0
        %515 = vmatprep.subr.mxu0 0.0
        %516 = vmatpush1.msra.mxu0 0.0
        %517 = vmatprep.subr.mxu0 0.0
        %518 = vmatpush1.msra.mxu0 0.0
        %519 = vmatprep.subr.mxu0 0.0
        %520 = vmatpush1.msra.mxu0 0.0
        %521 = vmatprep.subr.mxu0 0.0
        %522 = vmatpush1.msra.mxu0 0.0
        %523 = vmatprep.subr.mxu0 0.0
        %524 = vmatpush1.msra.mxu0 0.0
        %525 = vmatprep.subr.mxu0 0.0
        %526 = vmatpush1.msra.mxu0 0.0
        %527 = vmatprep.subr.mxu0 0.0
        %528 = vmatpush1.msra.mxu0 0.0
        %529 = vmatprep.subr.mxu0 0.0
        %530 = vmatpush1.msra.mxu0 0.0
        %531 = vmatprep.subr.mxu0 0.0
        %532 = vmatpush1.msra.mxu0 0.0
        %533 = vmatprep.subr.mxu0 0.0
        %534 = vmatpush1.msra.mxu0 0.0
        %535 = vmatprep.subr.mxu0 0.0
        %536 = vmatpush1.msra.mxu0 0.0
        %537 = vmatprep.subr.mxu0 0.0
        %538 = vmatpush1.msra.mxu0 0.0
        %539 = vmatprep.subr.mxu0 0.0
        %540 = vmatpush1.msra.mxu0 0.0
        %541 = vmatprep.subr.mxu0 0.0
        %542 = vmatpush1.msra.mxu0 0.0
        %543 = vmatprep.subr.mxu0 0.0
        %544 = vmatpush1.msra.mxu0 0.0
        %545 = vmatprep.subr.mxu0 0.0
        %546 = vmatpush1.msra.mxu0 0.0
        %547 = vmatprep.subr.mxu0 0.0
        %548 = vmatpush1.msra.mxu0 0.0
        %549 = vmatprep.subr.mxu0 0.0
        %550 = vmatpush1.msra.mxu0 0.0
        %551 = vmatprep.subr.mxu0 0.0
        %552 = vmatpush1.msra.mxu0 0.0
        %553 = vmatprep.subr.mxu0 0.0
        %554 = vmatpush1.msra.mxu0 0.0
        %555 = vmatprep.subr.mxu0 0.0
        %556 = vmatpush1.msra.mxu0 0.0
        %557 = vmatprep.subr.mxu0 0.0
        %558 = vmatpush1.msra.mxu0 0.0
        %559 = vmatprep.subr.mxu0 0.0
        %560 = vmatpush1.msra.mxu0 0.0
        %561 = vmatprep.mubr.f32.mxu0 0.0
        %562 = vmatmul.mubr.f32.gmra.mrb[0].mxu0 %v369
        %v563 = vpop.f32.mrb[0].mxu0
        %v564 = vadd.f32 0.0, %v563
        %v565 = vpop.f32.mrb[0].mxu0
        %566 = vmatprep.mubr.f32.mxu0 0.0
        %567 = vmatmul.mubr.f32.gmra.mrb[0].mxu0 %v372
        %v568 = vpop.f32.mrb[0].mxu0
        %v569 = vadd.f32 0.0, %v568
        %v570 = vpop.f32.mrb[0].mxu0
        %571 = vmatprep.mubr.f32.mxu0 0.0
        %572 = vmatmul.mubr.f32.gmra.mrb[0].mxu0 %v375
        %v573 = vpop.f32.mrb[0].mxu0
        %v574 = vadd.f32 0.0, %v573
        %v575 = vpop.f32.mrb[0].mxu0
        %576 = vmatprep.mubr.f32.mxu0 0.0
        %577 = vmatmul.mubr.f32.gmra.mrb[0].mxu0 %v378
        %v578 = vpop.f32.mrb[0].mxu0
        %v579 = vadd.f32 0.0, %v578
        %v580 = vpop.f32.mrb[0].mxu0
        %581 = vmatprep.mubr.f32.mxu0 0.0
        %582 = vmatmul.mubr.f32.gmra.mrb[0].mxu0 %v381
        %v583 = vpop.f32.mrb[0].mxu0
        %v584 = vadd.f32 0.0, %v583
        %v585 = vpop.f32.mrb[0].mxu0
        %586 = vmatprep.mubr.f32.mxu0 0.0
        %587 = vmatmul.mubr.f32.gmra.mrb[0].mxu0 %v384
        %v588 = vpop.f32.mrb[0].mxu0
        %v589 = vadd.f32 0.0, %v588
        %v590 = vpop.f32.mrb[0].mxu0
        %591 = vmatprep.mubr.f32.mxu0 0.0
        %592 = vmatmul.mubr.f32.gmra.mrb[0].mxu0 %v387
        %v593 = vpop.f32.mrb[0].mxu0
        %v594 = vadd.f32 0.0, %v593
        %v595 = vpop.f32.mrb[0].mxu0
        %596 = vmatprep.mubr.f32.mxu0 0.0
        %597 = vmatmul.mubr.f32.gmra.mrb[0].mxu0 %v390
        %v598 = vpop.f32.mrb[0].mxu0
        %v599 = vadd.f32 0.0, %v598
        %v600 = vpop.f32.mrb[0].mxu0
        %601 = vdwg.mxu0
        %v602 = vsel %vm298, %v459, -inf
        %603 = vmax.xlane.f32.xlu0 %v602
        %v604 = vpop.xlane.xlu0 %603
        %v605 = vsel %vm298, %v464, -inf
        %606 = vmax.xlane.f32.xlu0 %v605
        %v607 = vpop.xlane.xlu0 %606
        %v608 = vsel %vm298, %v469, -inf
        %609 = vmax.xlane.f32.xlu0 %v608
        %v610 = vpop.xlane.xlu0 %609
        %v611 = vsel %vm298, %v474, -inf
        %612 = vmax.xlane.f32.xlu0 %v611
        %v613 = vpop.xlane.xlu0 %612
        %v614 = vsel %vm298, %v479, -inf
        %615 = vmax.xlane.f32.xlu0 %v614
        %v616 = vpop.xlane.xlu0 %615
        %v617 = vsel %vm298, %v484, -inf
        %618 = vmax.xlane.f32.xlu0 %v617
        %v619 = vpop.xlane.xlu0 %618
        %v620 = vsel %vm298, %v489, -inf
        %621 = vmax.xlane.f32.xlu0 %v620
        %v622 = vpop.xlane.xlu0 %621
        %v623 = vsel %vm298, %v494, -inf
        %624 = vmax.xlane.f32.xlu0 %v623
        %v625 = vpop.xlane.xlu0 %624
        %v626 = vsel %vm298, %v564, -inf
        %627 = vmax.xlane.f32.xlu0 %v626
        %v628 = vpop.xlane.xlu0 %627
        %v629 = vsel %vm298, %v569, -inf
        %630 = vmax.xlane.f32.xlu0 %v629
        %v631 = vpop.xlane.xlu0 %630
        %v632 = vsel %vm298, %v574, -inf
        %633 = vmax.xlane.f32.xlu0 %v632
        %v634 = vpop.xlane.xlu0 %633
        %v635 = vsel %vm298, %v579, -inf
        %636 = vmax.xlane.f32.xlu0 %v635
        %v637 = vpop.xlane.xlu0 %636
        %v638 = vsel %vm298, %v584, -inf
        %639 = vmax.xlane.f32.xlu0 %v638
        %v640 = vpop.xlane.xlu0 %639
        %v641 = vsel %vm298, %v589, -inf
        %642 = vmax.xlane.f32.xlu0 %v641
        %v643 = vpop.xlane.xlu0 %642
        %v644 = vsel %vm298, %v594, -inf
        %645 = vmax.xlane.f32.xlu0 %v644
        %v646 = vpop.xlane.xlu0 %645
        %v647 = vsel %vm298, %v599, -inf
        %648 = vmax.xlane.f32.xlu0 %v647
        %v649 = vpop.xlane.xlu0 %648
        %vm650 = vcmp.eq.f32.partialorder %v459, %v604
        %vm651 = vcmp.eq.f32.partialorder %v464, %v607
        %vm652 = vcmp.eq.f32.partialorder %v469, %v610
        %vm653 = vcmp.eq.f32.partialorder %v474, %v613
        %vm654 = vcmp.eq.f32.partialorder %v479, %v616
        %vm655 = vcmp.eq.f32.partialorder %v484, %v619
        %vm656 = vcmp.eq.f32.partialorder %v489, %v622
        %vm657 = vcmp.eq.f32.partialorder %v494, %v625
        %v658 = vsel %vm650, %v322, 64.0
        %v659 = vsel %vm651, %v322, 64.0
        %v660 = vsel %vm652, %v322, 64.0
        %v661 = vsel %vm653, %v322, 64.0
        %v662 = vsel %vm654, %v322, 64.0
        %v663 = vsel %vm655, %v322, 64.0
        %v664 = vsel %vm656, %v322, 64.0
        %v665 = vsel %vm657, %v322, 64.0
        %v666 = vsel %vm298, %v658, inf
        %667 = vmin.xlane.f32.xlu0 %v666
        %v668 = vpop.xlane.xlu0 %667
        %v669 = vsel %vm298, %v659, inf
        %670 = vmin.xlane.f32.xlu0 %v669
        %v671 = vpop.xlane.xlu0 %670
        %v672 = vsel %vm298, %v660, inf
        %673 = vmin.xlane.f32.xlu0 %v672
        %v674 = vpop.xlane.xlu0 %673
        %v675 = vsel %vm298, %v661, inf
        %676 = vmin.xlane.f32.xlu0 %v675
        %v677 = vpop.xlane.xlu0 %676
        %v678 = vsel %vm298, %v662, inf
        %679 = vmin.xlane.f32.xlu0 %v678
        %v680 = vpop.xlane.xlu0 %679
        %v681 = vsel %vm298, %v663, inf
        %682 = vmin.xlane.f32.xlu0 %v681
        %v683 = vpop.xlane.xlu0 %682
        %v684 = vsel %vm298, %v664, inf
        %685 = vmin.xlane.f32.xlu0 %v684
        %v686 = vpop.xlane.xlu0 %685
        %v687 = vsel %vm298, %v665, inf
        %688 = vmin.xlane.f32.xlu0 %v687
        %v689 = vpop.xlane.xlu0 %688
        %vm690 = vcmp.eq.f32.partialorder %v564, %v628
        %vm691 = vcmp.eq.f32.partialorder %v569, %v631
        %vm692 = vcmp.eq.f32.partialorder %v574, %v634
        %vm693 = vcmp.eq.f32.partialorder %v579, %v637
        %vm694 = vcmp.eq.f32.partialorder %v584, %v640
        %vm695 = vcmp.eq.f32.partialorder %v589, %v643
        %vm696 = vcmp.eq.f32.partialorder %v594, %v646
        %vm697 = vcmp.eq.f32.partialorder %v599, %v649
        %v698 = vsel %vm690, %v322, 64.0
        %v699 = vsel %vm691, %v322, 64.0
        %v700 = vsel %vm692, %v322, 64.0
        %v701 = vsel %vm693, %v322, 64.0
        %v702 = vsel %vm694, %v322, 64.0
        %v703 = vsel %vm695, %v322, 64.0
        %v704 = vsel %vm696, %v322, 64.0
        %v705 = vsel %vm697, %v322, 64.0
        %v706 = vsel %vm298, %v698, inf
        %707 = vmin.xlane.f32.xlu0 %v706
        %v708 = vpop.xlane.xlu0 %707
        %v709 = vsel %vm298, %v699, inf
        %710 = vmin.xlane.f32.xlu0 %v709
        %v711 = vpop.xlane.xlu0 %710
        %v712 = vsel %vm298, %v700, inf
        %713 = vmin.xlane.f32.xlu0 %v712
        %v714 = vpop.xlane.xlu0 %713
        %v715 = vsel %vm298, %v701, inf
        %716 = vmin.xlane.f32.xlu0 %v715
        %v717 = vpop.xlane.xlu0 %716
        %v718 = vsel %vm298, %v702, inf
        %719 = vmin.xlane.f32.xlu0 %v718
        %v720 = vpop.xlane.xlu0 %719
        %v721 = vsel %vm298, %v703, inf
        %722 = vmin.xlane.f32.xlu0 %v721
        %v723 = vpop.xlane.xlu0 %722
        %v724 = vsel %vm298, %v704, inf
        %725 = vmin.xlane.f32.xlu0 %v724
        %v726 = vpop.xlane.xlu0 %725
        %v727 = vsel %vm298, %v705, inf
        %728 = vmin.xlane.f32.xlu0 %v727
        %v729 = vpop.xlane.xlu0 %728
        %vm730 = vcmp.gt.f32.partialorder %v604, %v628
        %vm731 = vcmp.gt.f32.partialorder %v607, %v631
        %vm732 = vcmp.gt.f32.partialorder %v610, %v634
        %vm733 = vcmp.gt.f32.partialorder %v613, %v637
        %vm734 = vcmp.gt.f32.partialorder %v616, %v640
        %vm735 = vcmp.gt.f32.partialorder %v619, %v643
        %vm736 = vcmp.gt.f32.partialorder %v622, %v646
        %vm737 = vcmp.gt.f32.partialorder %v625, %v649
        %vm738 = vcmp.eq.f32.partialorder %v604, %v628
        %vm739 = vcmp.eq.f32.partialorder %v607, %v631
        %vm740 = vcmp.eq.f32.partialorder %v610, %v634
        %vm741 = vcmp.eq.f32.partialorder %v613, %v637
        %vm742 = vcmp.eq.f32.partialorder %v616, %v640
        %vm743 = vcmp.eq.f32.partialorder %v619, %v643
        %vm744 = vcmp.eq.f32.partialorder %v622, %v646
        %vm745 = vcmp.eq.f32.partialorder %v625, %v649
        %vm746 = vcmp.le.f32.partialorder %v668, %v708
        %vm747 = vcmp.le.f32.partialorder %v671, %v711
        %vm748 = vcmp.le.f32.partialorder %v674, %v714
        %vm749 = vcmp.le.f32.partialorder %v677, %v717
        %vm750 = vcmp.le.f32.partialorder %v680, %v720
        %vm751 = vcmp.le.f32.partialorder %v683, %v723
        %vm752 = vcmp.le.f32.partialorder %v686, %v726
        %vm753 = vcmp.le.f32.partialorder %v689, %v729
        %vm754 = vmand %vm738, %vm746
        %vm755 = vmand %vm739, %vm747
        %vm756 = vmand %vm740, %vm748
        %vm757 = vmand %vm741, %vm749
        %vm758 = vmand %vm742, %vm750
        %vm759 = vmand %vm743, %vm751
        %vm760 = vmand %vm744, %vm752
        %vm761 = vmand %vm745, %vm753
        %vm762 = vmor %vm730, %vm754
        %vm763 = vmor %vm731, %vm755
        %vm764 = vmor %vm732, %vm756
        %vm765 = vmor %vm733, %vm757
        %vm766 = vmor %vm734, %vm758
        %vm767 = vmor %vm735, %vm759
        %vm768 = vmor %vm736, %vm760
        %vm769 = vmor %vm737, %vm761
        %vm770 = vcmp.eq.f32.partialorder %v322, %v668
        %vm771 = vcmp.eq.f32.partialorder %v322, %v671
        %vm772 = vcmp.eq.f32.partialorder %v322, %v674
        %vm773 = vcmp.eq.f32.partialorder %v322, %v677
        %vm774 = vcmp.eq.f32.partialorder %v322, %v680
        %vm775 = vcmp.eq.f32.partialorder %v322, %v683
        %vm776 = vcmp.eq.f32.partialorder %v322, %v686
        %vm777 = vcmp.eq.f32.partialorder %v322, %v689
        %v778 = vsel %vm762, 1, 0
        %v779 = vsel %vm763, 1, 0
        %v780 = vsel %vm764, 1, 0
        %v781 = vsel %vm765, 1, 0
        %v782 = vsel %vm766, 1, 0
        %v783 = vsel %vm767, 1, 0
        %v784 = vsel %vm768, 1, 0
        %v785 = vsel %vm769, 1, 0
        %vm786 = vcmp.eq.s32.totalorder %v778, 1
        %vm787 = vcmp.eq.s32.totalorder %v779, 1
        %vm788 = vcmp.eq.s32.totalorder %v780, 1
        %vm789 = vcmp.eq.s32.totalorder %v781, 1
        %vm790 = vcmp.eq.s32.totalorder %v782, 1
        %vm791 = vcmp.eq.s32.totalorder %v783, 1
        %vm792 = vcmp.eq.s32.totalorder %v784, 1
        %vm793 = vcmp.eq.s32.totalorder %v785, 1
        %vm794 = vmand %vm770, %vm786
        %vm795 = vmand %vm771, %vm787
        %vm796 = vmand %vm772, %vm788
        %vm797 = vmand %vm773, %vm789
        %vm798 = vmand %vm774, %vm790
        %vm799 = vmand %vm775, %vm791
        %vm800 = vmand %vm776, %vm792
        %vm801 = vmand %vm777, %vm793
        %v802 = vsel %vm794, 1, 0
        %v803 = vsel %vm795, 1, 0
        %v804 = vsel %vm796, 1, 0
        %v805 = vsel %vm797, 1, 0
        %v806 = vsel %vm798, 1, 0
        %v807 = vsel %vm799, 1, 0
        %v808 = vsel %vm800, 1, 0
        %v809 = vsel %vm801, 1, 0
        %v810 = vcvt.s32.f32 %v802
        %v811 = vcvt.s32.f32 %v803
        %v812 = vcvt.s32.f32 %v804
        %v813 = vcvt.s32.f32 %v805
        %v814 = vcvt.s32.f32 %v806
        %v815 = vcvt.s32.f32 %v807
        %v816 = vcvt.s32.f32 %v808
        %v817 = vcvt.s32.f32 %v809
        %vm818 = vcmp.eq.f32.partialorder %v322, %v708
        %vm819 = vcmp.eq.f32.partialorder %v322, %v711
        %vm820 = vcmp.eq.f32.partialorder %v322, %v714
        %vm821 = vcmp.eq.f32.partialorder %v322, %v717
        %vm822 = vcmp.eq.f32.partialorder %v322, %v720
        %vm823 = vcmp.eq.f32.partialorder %v322, %v723
        %vm824 = vcmp.eq.f32.partialorder %v322, %v726
        %vm825 = vcmp.eq.f32.partialorder %v322, %v729
        %vm826 = vmxor %vm762, 1
        %vm827 = vmxor %vm763, 1
        %vm828 = vmxor %vm764, 1
        %vm829 = vmxor %vm765, 1
        %vm830 = vmxor %vm766, 1
        %vm831 = vmxor %vm767, 1
        %vm832 = vmxor %vm768, 1
        %vm833 = vmxor %vm769, 1
        %v834 = vsel %vm826, 1, 0
        %v835 = vsel %vm827, 1, 0
        %v836 = vsel %vm828, 1, 0
        %v837 = vsel %vm829, 1, 0
        %v838 = vsel %vm830, 1, 0
        %v839 = vsel %vm831, 1, 0
        %v840 = vsel %vm832, 1, 0
        %v841 = vsel %vm833, 1, 0
        %vm842 = vcmp.eq.s32.totalorder %v834, 1
        %vm843 = vcmp.eq.s32.totalorder %v835, 1
        %vm844 = vcmp.eq.s32.totalorder %v836, 1
        %vm845 = vcmp.eq.s32.totalorder %v837, 1
        %vm846 = vcmp.eq.s32.totalorder %v838, 1
        %vm847 = vcmp.eq.s32.totalorder %v839, 1
        %vm848 = vcmp.eq.s32.totalorder %v840, 1
        %vm849 = vcmp.eq.s32.totalorder %v841, 1
        %vm850 = vmand %vm818, %vm842
        %vm851 = vmand %vm819, %vm843
        %vm852 = vmand %vm820, %vm844
        %vm853 = vmand %vm821, %vm845
        %vm854 = vmand %vm822, %vm846
        %vm855 = vmand %vm823, %vm847
        %vm856 = vmand %vm824, %vm848
        %vm857 = vmand %vm825, %vm849
        %v858 = vsel %vm850, 1, 0
        %v859 = vsel %vm851, 1, 0
        %v860 = vsel %vm852, 1, 0
        %v861 = vsel %vm853, 1, 0
        %v862 = vsel %vm854, 1, 0
        %v863 = vsel %vm855, 1, 0
        %v864 = vsel %vm856, 1, 0
        %v865 = vsel %vm857, 1, 0
        %v866 = vcvt.s32.f32 %v858
        %v867 = vcvt.s32.f32 %v859
        %v868 = vcvt.s32.f32 %v860
        %v869 = vcvt.s32.f32 %v861
        %v870 = vcvt.s32.f32 %v862
        %v871 = vcvt.s32.f32 %v863
        %v872 = vcvt.s32.f32 %v864
        %v873 = vcvt.s32.f32 %v865
        %s874 = scalar_lea.vmem %s249, 8 [#allocation2]
        %v875 = vld [vmem:[%s874] sm:$0xff]
        %v876 = vmul.f32 %v875, %v875
        %v877 = vsel %vm298, %v876, 0.0
        %v878 = vrot.slane %v877, 4
        %v879 = vadd.f32 %v877, %v878
        %v880 = vrot.slane %v879, 2
        %v881 = vadd.f32 %v879, %v880
        %v882 = vrot.slane %v881, 1
        %v883 = vadd.f32 %v881, %v882
        %v884 = vadd.f32 %v883, 1e-30
        %v885 = vrsqrt.pop %v884
        %v886 = vmul.f32 %v875, %v885
        %887 = vxpose.xlu0.b32.start [1/16] %v886, 128
        %888 = vxpose.xlu0.b32.cont [2/16] 0.0, 128
        %889 = vxpose.xlu0.b32.cont [3/16] 0.0, 128
        %890 = vxpose.xlu0.b32.cont [4/16] 0.0, 128
        %891 = vxpose.xlu0.b32.cont [5/16] 0.0, 128
        %892 = vxpose.xlu0.b32.cont [6/16] 0.0, 128
        %893 = vxpose.xlu0.b32.cont [7/16] 0.0, 128
        %894 = vxpose.xlu0.b32.cont [8/16] 0.0, 128
        %895 = vxpose.xlu0.b32.cont [9/16] 0.0, 128
        %896 = vxpose.xlu0.b32.cont [10/16] 0.0, 128
        %897 = vxpose.xlu0.b32.cont [11/16] 0.0, 128
        %898 = vxpose.xlu0.b32.cont [12/16] 0.0, 128
        %899 = vxpose.xlu0.b32.cont [13/16] 0.0, 128
        %900 = vxpose.xlu0.b32.cont [14/16] 0.0, 128
        %901 = vxpose.xlu0.b32.cont [15/16] 0.0, 128
        %902 = vxpose.xlu0.b32.end [16/16] 0.0, 128
        %v903 = vpop.trf.xlu0
        %v904 = vpop.trf.xlu0
        %v905 = vpop.trf.xlu0
        %v906 = vpop.trf.xlu0
        %v907 = vpop.trf.xlu0
        %v908 = vpop.trf.xlu0
        %v909 = vpop.trf.xlu0
        %v910 = vpop.trf.xlu0
        %v911 = vpop.trf.xlu0
        %v912 = vpop.trf.xlu0
        %v913 = vpop.trf.xlu0
        %v914 = vpop.trf.xlu0
        %v915 = vpop.trf.xlu0
        %v916 = vpop.trf.xlu0
        %v917 = vpop.trf.xlu0
        %v918 = vpop.trf.xlu0
        %v920 = vsel %vm367, %v903, 0
        %v923 = vsel %vm367, %v904, 0
        %v926 = vsel %vm367, %v905, 0
        %v929 = vsel %vm367, %v906, 0
        %v932 = vsel %vm367, %v907, 0
        %v935 = vsel %vm367, %v908, 0
        %v938 = vsel %vm367, %v909, 0
        %v941 = vsel %vm367, %v910, 0
        %943 = vmatprep.subr.mxu0 0.0
        %944 = vmatpush1.msra.mxu0 %v308
        %945 = vmatprep.subr.mxu0 0.0
        %946 = vmatpush1.msra.mxu0 0.0
        %947 = vmatprep.subr.mxu0 0.0
        %948 = vmatpush1.msra.mxu0 0.0
        %949 = vmatprep.subr.mxu0 0.0
        %950 = vmatpush1.msra.mxu0 0.0
        %951 = vmatprep.subr.mxu0 0.0
        %952 = vmatpush1.msra.mxu0 0.0
        %953 = vmatprep.subr.mxu0 0.0
        %954 = vmatpush1.msra.mxu0 0.0
        %955 = vmatprep.subr.mxu0 0.0
        %956 = vmatpush1.msra.mxu0 0.0
        %957 = vmatprep.subr.mxu0 0.0
        %958 = vmatpush1.msra.mxu0 0.0
        %959 = vmatprep.subr.mxu0 0.0
        %960 = vmatpush1.msra.mxu0 0.0
        %961 = vmatprep.subr.mxu0 0.0
        %962 = vmatpush1.msra.mxu0 0.0
        %963 = vmatprep.subr.mxu0 0.0
        %964 = vmatpush1.msra.mxu0 0.0
        %965 = vmatprep.subr.mxu0 0.0
        %966 = vmatpush1.msra.mxu0 0.0
        %967 = vmatprep.subr.mxu0 0.0
        %968 = vmatpush1.msra.mxu0 0.0
        %969 = vmatprep.subr.mxu0 0.0
        %970 = vmatpush1.msra.mxu0 0.0
        %971 = vmatprep.subr.mxu0 0.0
        %972 = vmatpush1.msra.mxu0 0.0
        %973 = vmatprep.subr.mxu0 0.0
        %974 = vmatpush1.msra.mxu0 0.0
        %975 = vmatprep.subr.mxu0 0.0
        %976 = vmatpush1.msra.mxu0 0.0
        %977 = vmatprep.subr.mxu0 0.0
        %978 = vmatpush1.msra.mxu0 0.0
        %979 = vmatprep.subr.mxu0 0.0
        %980 = vmatpush1.msra.mxu0 0.0
        %981 = vmatprep.subr.mxu0 0.0
        %982 = vmatpush1.msra.mxu0 0.0
        %983 = vmatprep.subr.mxu0 0.0
        %984 = vmatpush1.msra.mxu0 0.0
        %985 = vmatprep.subr.mxu0 0.0
        %986 = vmatpush1.msra.mxu0 0.0
        %987 = vmatprep.subr.mxu0 0.0
        %988 = vmatpush1.msra.mxu0 0.0
        %989 = vmatprep.subr.mxu0 0.0
        %990 = vmatpush1.msra.mxu0 0.0
        %991 = vmatprep.subr.mxu0 0.0
        %992 = vmatpush1.msra.mxu0 0.0
        %993 = vmatprep.subr.mxu0 0.0
        %994 = vmatpush1.msra.mxu0 0.0
        %995 = vmatprep.subr.mxu0 0.0
        %996 = vmatpush1.msra.mxu0 0.0
        %997 = vmatprep.subr.mxu0 0.0
        %998 = vmatpush1.msra.mxu0 0.0
        %999 = vmatprep.subr.mxu0 0.0
        %1000 = vmatpush1.msra.mxu0 0.0
        %1001 = vmatprep.subr.mxu0 0.0
        %1002 = vmatpush1.msra.mxu0 0.0
        %1003 = vmatprep.subr.mxu0 0.0
        %1004 = vmatpush1.msra.mxu0 0.0
        %1005 = vmatprep.subr.mxu0 0.0
        %1006 = vmatpush1.msra.mxu0 0.0
        %1007 = vmatprep.mubr.f32.mxu0 0.0
        %1008 = vmatmul.mubr.f32.gmra.mrb[0].mxu0 %v920
        %v1009 = vpop.f32.mrb[0].mxu0
        %v1010 = vadd.f32 0.0, %v1009
        %v1011 = vpop.f32.mrb[0].mxu0
        %1012 = vmatprep.mubr.f32.mxu0 0.0
        %1013 = vmatmul.mubr.f32.gmra.mrb[0].mxu0 %v923
        %v1014 = vpop.f32.mrb[0].mxu0
        %v1015 = vadd.f32 0.0, %v1014
        %v1016 = vpop.f32.mrb[0].mxu0
        %1017 = vmatprep.mubr.f32.mxu0 0.0
        %1018 = vmatmul.mubr.f32.gmra.mrb[0].mxu0 %v926
        %v1019 = vpop.f32.mrb[0].mxu0
        %v1020 = vadd.f32 0.0, %v1019
        %v1021 = vpop.f32.mrb[0].mxu0
        %1022 = vmatprep.mubr.f32.mxu0 0.0
        %1023 = vmatmul.mubr.f32.gmra.mrb[0].mxu0 %v929
        %v1024 = vpop.f32.mrb[0].mxu0
        %v1025 = vadd.f32 0.0, %v1024
        %v1026 = vpop.f32.mrb[0].mxu0
        %1027 = vmatprep.mubr.f32.mxu0 0.0
        %1028 = vmatmul.mubr.f32.gmra.mrb[0].mxu0 %v932
        %v1029 = vpop.f32.mrb[0].mxu0
        %v1030 = vadd.f32 0.0, %v1029
        %v1031 = vpop.f32.mrb[0].mxu0
        %1032 = vmatprep.mubr.f32.mxu0 0.0
        %1033 = vmatmul.mubr.f32.gmra.mrb[0].mxu0 %v935
        %v1034 = vpop.f32.mrb[0].mxu0
        %v1035 = vadd.f32 0.0, %v1034
        %v1036 = vpop.f32.mrb[0].mxu0
        %1037 = vmatprep.mubr.f32.mxu0 0.0
        %1038 = vmatmul.mubr.f32.gmra.mrb[0].mxu0 %v938
        %v1039 = vpop.f32.mrb[0].mxu0
        %v1040 = vadd.f32 0.0, %v1039
        %v1041 = vpop.f32.mrb[0].mxu0
        %1042 = vmatprep.mubr.f32.mxu0 0.0
        %1043 = vmatmul.mubr.f32.gmra.mrb[0].mxu0 %v941
        %v1044 = vpop.f32.mrb[0].mxu0
        %v1045 = vadd.f32 0.0, %v1044
        %v1046 = vpop.f32.mrb[0].mxu0
        %1047 = vdwg.mxu0
        %1048 = vmatprep.subr.mxu0 0.0
        %1049 = vmatpush1.msra.mxu0 %v319
        %1050 = vmatprep.subr.mxu0 0.0
        %1051 = vmatpush1.msra.mxu0 0.0
        %1052 = vmatprep.subr.mxu0 0.0
        %1053 = vmatpush1.msra.mxu0 0.0
        %1054 = vmatprep.subr.mxu0 0.0
        %1055 = vmatpush1.msra.mxu0 0.0
        %1056 = vmatprep.subr.mxu0 0.0
        %1057 = vmatpush1.msra.mxu0 0.0
        %1058 = vmatprep.subr.mxu0 0.0
        %1059 = vmatpush1.msra.mxu0 0.0
        %1060 = vmatprep.subr.mxu0 0.0
        %1061 = vmatpush1.msra.mxu0 0.0
        %1062 = vmatprep.subr.mxu0 0.0
        %1063 = vmatpush1.msra.mxu0 0.0
        %1064 = vmatprep.subr.mxu0 0.0
        %1065 = vmatpush1.msra.mxu0 0.0
        %1066 = vmatprep.subr.mxu0 0.0
        %1067 = vmatpush1.msra.mxu0 0.0
        %1068 = vmatprep.subr.mxu0 0.0
        %1069 = vmatpush1.msra.mxu0 0.0
        %1070 = vmatprep.subr.mxu0 0.0
        %1071 = vmatpush1.msra.mxu0 0.0
        %1072 = vmatprep.subr.mxu0 0.0
        %1073 = vmatpush1.msra.mxu0 0.0
        %1074 = vmatprep.subr.mxu0 0.0
        %1075 = vmatpush1.msra.mxu0 0.0
        %1076 = vmatprep.subr.mxu0 0.0
        %1077 = vmatpush1.msra.mxu0 0.0
        %1078 = vmatprep.subr.mxu0 0.0
        %1079 = vmatpush1.msra.mxu0 0.0
        %1080 = vmatprep.subr.mxu0 0.0
        %1081 = vmatpush1.msra.mxu0 0.0
        %1082 = vmatprep.subr.mxu0 0.0
        %1083 = vmatpush1.msra.mxu0 0.0
        %1084 = vmatprep.subr.mxu0 0.0
        %1085 = vmatpush1.msra.mxu0 0.0
        %1086 = vmatprep.subr.mxu0 0.0
        %1087 = vmatpush1.msra.mxu0 0.0
        %1088 = vmatprep.subr.mxu0 0.0
        %1089 = vmatpush1.msra.mxu0 0.0
        %1090 = vmatprep.subr.mxu0 0.0
        %1091 = vmatpush1.msra.mxu0 0.0
        %1092 = vmatprep.subr.mxu0 0.0
        %1093 = vmatpush1.msra.mxu0 0.0
        %1094 = vmatprep.subr.mxu0 0.0
        %1095 = vmatpush1.msra.mxu0 0.0
        %1096 = vmatprep.subr.mxu0 0.0
        %1097 = vmatpush1.msra.mxu0 0.0
        %1098 = vmatprep.subr.mxu0 0.0
        %1099 = vmatpush1.msra.mxu0 0.0
        %1100 = vmatprep.subr.mxu0 0.0
        %1101 = vmatpush1.msra.mxu0 0.0
        %1102 = vmatprep.subr.mxu0 0.0
        %1103 = vmatpush1.msra.mxu0 0.0
        %1104 = vmatprep.subr.mxu0 0.0
        %1105 = vmatpush1.msra.mxu0 0.0
        %1106 = vmatprep.subr.mxu0 0.0
        %1107 = vmatpush1.msra.mxu0 0.0
        %1108 = vmatprep.subr.mxu0 0.0
        %1109 = vmatpush1.msra.mxu0 0.0
        %1110 = vmatprep.subr.mxu0 0.0
        %1111 = vmatpush1.msra.mxu0 0.0
        %1112 = vmatprep.mubr.f32.mxu0 0.0
        %1113 = vmatmul.mubr.f32.gmra.mrb[0].mxu0 %v920
        %v1114 = vpop.f32.mrb[0].mxu0
        %v1115 = vadd.f32 0.0, %v1114
        %v1116 = vpop.f32.mrb[0].mxu0
        %1117 = vmatprep.mubr.f32.mxu0 0.0
        %1118 = vmatmul.mubr.f32.gmra.mrb[0].mxu0 %v923
        %v1119 = vpop.f32.mrb[0].mxu0
        %v1120 = vadd.f32 0.0, %v1119
        %v1121 = vpop.f32.mrb[0].mxu0
        %1122 = vmatprep.mubr.f32.mxu0 0.0
        %1123 = vmatmul.mubr.f32.gmra.mrb[0].mxu0 %v926
        %v1124 = vpop.f32.mrb[0].mxu0
        %v1125 = vadd.f32 0.0, %v1124
        %v1126 = vpop.f32.mrb[0].mxu0
        %1127 = vmatprep.mubr.f32.mxu0 0.0
        %1128 = vmatmul.mubr.f32.gmra.mrb[0].mxu0 %v929
        %v1129 = vpop.f32.mrb[0].mxu0
        %v1130 = vadd.f32 0.0, %v1129
        %v1131 = vpop.f32.mrb[0].mxu0
        %1132 = vmatprep.mubr.f32.mxu0 0.0
        %1133 = vmatmul.mubr.f32.gmra.mrb[0].mxu0 %v932
        %v1134 = vpop.f32.mrb[0].mxu0
        %v1135 = vadd.f32 0.0, %v1134
        %v1136 = vpop.f32.mrb[0].mxu0
        %1137 = vmatprep.mubr.f32.mxu0 0.0
        %1138 = vmatmul.mubr.f32.gmra.mrb[0].mxu0 %v935
        %v1139 = vpop.f32.mrb[0].mxu0
        %v1140 = vadd.f32 0.0, %v1139
        %v1141 = vpop.f32.mrb[0].mxu0
        %1142 = vmatprep.mubr.f32.mxu0 0.0
        %1143 = vmatmul.mubr.f32.gmra.mrb[0].mxu0 %v938
        %v1144 = vpop.f32.mrb[0].mxu0
        %v1145 = vadd.f32 0.0, %v1144
        %v1146 = vpop.f32.mrb[0].mxu0
        %1147 = vmatprep.mubr.f32.mxu0 0.0
        %1148 = vmatmul.mubr.f32.gmra.mrb[0].mxu0 %v941
        %v1149 = vpop.f32.mrb[0].mxu0
        %v1150 = vadd.f32 0.0, %v1149
        %v1151 = vpop.f32.mrb[0].mxu0
        %1152 = vdwg.mxu0
        %v1153 = vsel %vm298, %v1010, -inf
        %1154 = vmax.xlane.f32.xlu0 %v1153
        %v1155 = vpop.xlane.xlu0 %1154
        %v1156 = vsel %vm298, %v1015, -inf
        %1157 = vmax.xlane.f32.xlu0 %v1156
        %v1158 = vpop.xlane.xlu0 %1157
        %v1159 = vsel %vm298, %v1020, -inf
        %1160 = vmax.xlane.f32.xlu0 %v1159
        %v1161 = vpop.xlane.xlu0 %1160
        %v1162 = vsel %vm298, %v1025, -inf
        %1163 = vmax.xlane.f32.xlu0 %v1162
        %v1164 = vpop.xlane.xlu0 %1163
        %v1165 = vsel %vm298, %v1030, -inf
        %1166 = vmax.xlane.f32.xlu0 %v1165
        %v1167 = vpop.xlane.xlu0 %1166
        %v1168 = vsel %vm298, %v1035, -inf
        %1169 = vmax.xlane.f32.xlu0 %v1168
        %v1170 = vpop.xlane.xlu0 %1169
        %v1171 = vsel %vm298, %v1040, -inf
        %1172 = vmax.xlane.f32.xlu0 %v1171
        %v1173 = vpop.xlane.xlu0 %1172
        %v1174 = vsel %vm298, %v1045, -inf
        %1175 = vmax.xlane.f32.xlu0 %v1174
        %v1176 = vpop.xlane.xlu0 %1175
        %v1177 = vsel %vm298, %v1115, -inf
        %1178 = vmax.xlane.f32.xlu0 %v1177
        %v1179 = vpop.xlane.xlu0 %1178
        %v1180 = vsel %vm298, %v1120, -inf
        %1181 = vmax.xlane.f32.xlu0 %v1180
        %v1182 = vpop.xlane.xlu0 %1181
        %v1183 = vsel %vm298, %v1125, -inf
        %1184 = vmax.xlane.f32.xlu0 %v1183
        %v1185 = vpop.xlane.xlu0 %1184
        %v1186 = vsel %vm298, %v1130, -inf
        %1187 = vmax.xlane.f32.xlu0 %v1186
        %v1188 = vpop.xlane.xlu0 %1187
        %v1189 = vsel %vm298, %v1135, -inf
        %1190 = vmax.xlane.f32.xlu0 %v1189
        %v1191 = vpop.xlane.xlu0 %1190
        %v1192 = vsel %vm298, %v1140, -inf
        %1193 = vmax.xlane.f32.xlu0 %v1192
        %v1194 = vpop.xlane.xlu0 %1193
        %v1195 = vsel %vm298, %v1145, -inf
        %1196 = vmax.xlane.f32.xlu0 %v1195
        %v1197 = vpop.xlane.xlu0 %1196
        %v1198 = vsel %vm298, %v1150, -inf
        %1199 = vmax.xlane.f32.xlu0 %v1198
        %v1200 = vpop.xlane.xlu0 %1199
        %vm1201 = vcmp.eq.f32.partialorder %v1010, %v1155
        %vm1202 = vcmp.eq.f32.partialorder %v1015, %v1158
        %vm1203 = vcmp.eq.f32.partialorder %v1020, %v1161
        %vm1204 = vcmp.eq.f32.partialorder %v1025, %v1164
        %vm1205 = vcmp.eq.f32.partialorder %v1030, %v1167
        %vm1206 = vcmp.eq.f32.partialorder %v1035, %v1170
        %vm1207 = vcmp.eq.f32.partialorder %v1040, %v1173
        %vm1208 = vcmp.eq.f32.partialorder %v1045, %v1176
        %v1209 = vsel %vm1201, %v322, 64.0
        %v1210 = vsel %vm1202, %v322, 64.0
        %v1211 = vsel %vm1203, %v322, 64.0
        %v1212 = vsel %vm1204, %v322, 64.0
        %v1213 = vsel %vm1205, %v322, 64.0
        %v1214 = vsel %vm1206, %v322, 64.0
        %v1215 = vsel %vm1207, %v322, 64.0
        %v1216 = vsel %vm1208, %v322, 64.0
        %v1217 = vsel %vm298, %v1209, inf
        %1218 = vmin.xlane.f32.xlu0 %v1217
        %v1219 = vpop.xlane.xlu0 %1218
        %v1220 = vsel %vm298, %v1210, inf
        %1221 = vmin.xlane.f32.xlu0 %v1220
        %v1222 = vpop.xlane.xlu0 %1221
        %v1223 = vsel %vm298, %v1211, inf
        %1224 = vmin.xlane.f32.xlu0 %v1223
        %v1225 = vpop.xlane.xlu0 %1224
        %v1226 = vsel %vm298, %v1212, inf
        %1227 = vmin.xlane.f32.xlu0 %v1226
        %v1228 = vpop.xlane.xlu0 %1227
        %v1229 = vsel %vm298, %v1213, inf
        %1230 = vmin.xlane.f32.xlu0 %v1229
        %v1231 = vpop.xlane.xlu0 %1230
        %v1232 = vsel %vm298, %v1214, inf
        %1233 = vmin.xlane.f32.xlu0 %v1232
        %v1234 = vpop.xlane.xlu0 %1233
        %v1235 = vsel %vm298, %v1215, inf
        %1236 = vmin.xlane.f32.xlu0 %v1235
        %v1237 = vpop.xlane.xlu0 %1236
        %v1238 = vsel %vm298, %v1216, inf
        %1239 = vmin.xlane.f32.xlu0 %v1238
        %v1240 = vpop.xlane.xlu0 %1239
        %vm1241 = vcmp.eq.f32.partialorder %v1115, %v1179
        %vm1242 = vcmp.eq.f32.partialorder %v1120, %v1182
        %vm1243 = vcmp.eq.f32.partialorder %v1125, %v1185
        %vm1244 = vcmp.eq.f32.partialorder %v1130, %v1188
        %vm1245 = vcmp.eq.f32.partialorder %v1135, %v1191
        %vm1246 = vcmp.eq.f32.partialorder %v1140, %v1194
        %vm1247 = vcmp.eq.f32.partialorder %v1145, %v1197
        %vm1248 = vcmp.eq.f32.partialorder %v1150, %v1200
        %v1249 = vsel %vm1241, %v322, 64.0
        %v1250 = vsel %vm1242, %v322, 64.0
        %v1251 = vsel %vm1243, %v322, 64.0
        %v1252 = vsel %vm1244, %v322, 64.0
        %v1253 = vsel %vm1245, %v322, 64.0
        %v1254 = vsel %vm1246, %v322, 64.0
        %v1255 = vsel %vm1247, %v322, 64.0
        %v1256 = vsel %vm1248, %v322, 64.0
        %v1257 = vsel %vm298, %v1249, inf
        %1258 = vmin.xlane.f32.xlu0 %v1257
        %v1259 = vpop.xlane.xlu0 %1258
        %v1260 = vsel %vm298, %v1250, inf
        %1261 = vmin.xlane.f32.xlu0 %v1260
        %v1262 = vpop.xlane.xlu0 %1261
        %v1263 = vsel %vm298, %v1251, inf
        %1264 = vmin.xlane.f32.xlu0 %v1263
        %v1265 = vpop.xlane.xlu0 %1264
        %v1266 = vsel %vm298, %v1252, inf
        %1267 = vmin.xlane.f32.xlu0 %v1266
        %v1268 = vpop.xlane.xlu0 %1267
        %v1269 = vsel %vm298, %v1253, inf
        %1270 = vmin.xlane.f32.xlu0 %v1269
        %v1271 = vpop.xlane.xlu0 %1270
        %v1272 = vsel %vm298, %v1254, inf
        %1273 = vmin.xlane.f32.xlu0 %v1272
        %v1274 = vpop.xlane.xlu0 %1273
        %v1275 = vsel %vm298, %v1255, inf
        %1276 = vmin.xlane.f32.xlu0 %v1275
        %v1277 = vpop.xlane.xlu0 %1276
        %v1278 = vsel %vm298, %v1256, inf
        %1279 = vmin.xlane.f32.xlu0 %v1278
        %v1280 = vpop.xlane.xlu0 %1279
        %vm1281 = vcmp.gt.f32.partialorder %v1155, %v1179
        %vm1282 = vcmp.gt.f32.partialorder %v1158, %v1182
        %vm1283 = vcmp.gt.f32.partialorder %v1161, %v1185
        %vm1284 = vcmp.gt.f32.partialorder %v1164, %v1188
        %vm1285 = vcmp.gt.f32.partialorder %v1167, %v1191
        %vm1286 = vcmp.gt.f32.partialorder %v1170, %v1194
        %vm1287 = vcmp.gt.f32.partialorder %v1173, %v1197
        %vm1288 = vcmp.gt.f32.partialorder %v1176, %v1200
        %vm1289 = vcmp.eq.f32.partialorder %v1155, %v1179
        %vm1290 = vcmp.eq.f32.partialorder %v1158, %v1182
        %vm1291 = vcmp.eq.f32.partialorder %v1161, %v1185
        %vm1292 = vcmp.eq.f32.partialorder %v1164, %v1188
        %vm1293 = vcmp.eq.f32.partialorder %v1167, %v1191
        %vm1294 = vcmp.eq.f32.partialorder %v1170, %v1194
        %vm1295 = vcmp.eq.f32.partialorder %v1173, %v1197
        %vm1296 = vcmp.eq.f32.partialorder %v1176, %v1200
        %vm1297 = vcmp.le.f32.partialorder %v1219, %v1259
        %vm1298 = vcmp.le.f32.partialorder %v1222, %v1262
        %vm1299 = vcmp.le.f32.partialorder %v1225, %v1265
        %vm1300 = vcmp.le.f32.partialorder %v1228, %v1268
        %vm1301 = vcmp.le.f32.partialorder %v1231, %v1271
        %vm1302 = vcmp.le.f32.partialorder %v1234, %v1274
        %vm1303 = vcmp.le.f32.partialorder %v1237, %v1277
        %vm1304 = vcmp.le.f32.partialorder %v1240, %v1280
        %vm1305 = vmand %vm1289, %vm1297
        %vm1306 = vmand %vm1290, %vm1298
        %vm1307 = vmand %vm1291, %vm1299
        %vm1308 = vmand %vm1292, %vm1300
        %vm1309 = vmand %vm1293, %vm1301
        %vm1310 = vmand %vm1294, %vm1302
        %vm1311 = vmand %vm1295, %vm1303
        %vm1312 = vmand %vm1296, %vm1304
        %vm1313 = vmor %vm1281, %vm1305
        %vm1314 = vmor %vm1282, %vm1306
        %vm1315 = vmor %vm1283, %vm1307
        %vm1316 = vmor %vm1284, %vm1308
        %vm1317 = vmor %vm1285, %vm1309
        %vm1318 = vmor %vm1286, %vm1310
        %vm1319 = vmor %vm1287, %vm1311
        %vm1320 = vmor %vm1288, %vm1312
        %vm1321 = vcmp.eq.f32.partialorder %v322, %v1219
        %vm1322 = vcmp.eq.f32.partialorder %v322, %v1222
        %vm1323 = vcmp.eq.f32.partialorder %v322, %v1225
        %vm1324 = vcmp.eq.f32.partialorder %v322, %v1228
        %vm1325 = vcmp.eq.f32.partialorder %v322, %v1231
        %vm1326 = vcmp.eq.f32.partialorder %v322, %v1234
        %vm1327 = vcmp.eq.f32.partialorder %v322, %v1237
        %vm1328 = vcmp.eq.f32.partialorder %v322, %v1240
        %v1329 = vsel %vm1313, 1, 0
        %v1330 = vsel %vm1314, 1, 0
        %v1331 = vsel %vm1315, 1, 0
        %v1332 = vsel %vm1316, 1, 0
        %v1333 = vsel %vm1317, 1, 0
        %v1334 = vsel %vm1318, 1, 0
        %v1335 = vsel %vm1319, 1, 0
        %v1336 = vsel %vm1320, 1, 0
        %vm1337 = vcmp.eq.s32.totalorder %v1329, 1
        %vm1338 = vcmp.eq.s32.totalorder %v1330, 1
        %vm1339 = vcmp.eq.s32.totalorder %v1331, 1
        %vm1340 = vcmp.eq.s32.totalorder %v1332, 1
        %vm1341 = vcmp.eq.s32.totalorder %v1333, 1
        %vm1342 = vcmp.eq.s32.totalorder %v1334, 1
        %vm1343 = vcmp.eq.s32.totalorder %v1335, 1
        %vm1344 = vcmp.eq.s32.totalorder %v1336, 1
        %vm1345 = vmand %vm1321, %vm1337
        %vm1346 = vmand %vm1322, %vm1338
        %vm1347 = vmand %vm1323, %vm1339
        %vm1348 = vmand %vm1324, %vm1340
        %vm1349 = vmand %vm1325, %vm1341
        %vm1350 = vmand %vm1326, %vm1342
        %vm1351 = vmand %vm1327, %vm1343
        %vm1352 = vmand %vm1328, %vm1344
        %v1353 = vsel %vm1345, 1, 0
        %v1354 = vsel %vm1346, 1, 0
        %v1355 = vsel %vm1347, 1, 0
        %v1356 = vsel %vm1348, 1, 0
        %v1357 = vsel %vm1349, 1, 0
        %v1358 = vsel %vm1350, 1, 0
        %v1359 = vsel %vm1351, 1, 0
        %v1360 = vsel %vm1352, 1, 0
        %v1361 = vcvt.s32.f32 %v1353
        %v1362 = vcvt.s32.f32 %v1354
        %v1363 = vcvt.s32.f32 %v1355
        %v1364 = vcvt.s32.f32 %v1356
        %v1365 = vcvt.s32.f32 %v1357
        %v1366 = vcvt.s32.f32 %v1358
        %v1367 = vcvt.s32.f32 %v1359
        %v1368 = vcvt.s32.f32 %v1360
        %vm1369 = vcmp.eq.f32.partialorder %v322, %v1259
        %vm1370 = vcmp.eq.f32.partialorder %v322, %v1262
        %vm1371 = vcmp.eq.f32.partialorder %v322, %v1265
        %vm1372 = vcmp.eq.f32.partialorder %v322, %v1268
        %vm1373 = vcmp.eq.f32.partialorder %v322, %v1271
        %vm1374 = vcmp.eq.f32.partialorder %v322, %v1274
        %vm1375 = vcmp.eq.f32.partialorder %v322, %v1277
        %vm1376 = vcmp.eq.f32.partialorder %v322, %v1280
        %vm1377 = vmxor %vm1313, 1
        %vm1378 = vmxor %vm1314, 1
        %vm1379 = vmxor %vm1315, 1
        %vm1380 = vmxor %vm1316, 1
        %vm1381 = vmxor %vm1317, 1
        %vm1382 = vmxor %vm1318, 1
        %vm1383 = vmxor %vm1319, 1
        %vm1384 = vmxor %vm1320, 1
        %v1385 = vsel %vm1377, 1, 0
        %v1386 = vsel %vm1378, 1, 0
        %v1387 = vsel %vm1379, 1, 0
        %v1388 = vsel %vm1380, 1, 0
        %v1389 = vsel %vm1381, 1, 0
        %v1390 = vsel %vm1382, 1, 0
        %v1391 = vsel %vm1383, 1, 0
        %v1392 = vsel %vm1384, 1, 0
        %vm1393 = vcmp.eq.s32.totalorder %v1385, 1
        %vm1394 = vcmp.eq.s32.totalorder %v1386, 1
        %vm1395 = vcmp.eq.s32.totalorder %v1387, 1
        %vm1396 = vcmp.eq.s32.totalorder %v1388, 1
        %vm1397 = vcmp.eq.s32.totalorder %v1389, 1
        %vm1398 = vcmp.eq.s32.totalorder %v1390, 1
        %vm1399 = vcmp.eq.s32.totalorder %v1391, 1
        %vm1400 = vcmp.eq.s32.totalorder %v1392, 1
        %vm1401 = vmand %vm1369, %vm1393
        %vm1402 = vmand %vm1370, %vm1394
        %vm1403 = vmand %vm1371, %vm1395
        %vm1404 = vmand %vm1372, %vm1396
        %vm1405 = vmand %vm1373, %vm1397
        %vm1406 = vmand %vm1374, %vm1398
        %vm1407 = vmand %vm1375, %vm1399
        %vm1408 = vmand %vm1376, %vm1400
        %v1409 = vsel %vm1401, 1, 0
        %v1410 = vsel %vm1402, 1, 0
        %v1411 = vsel %vm1403, 1, 0
        %v1412 = vsel %vm1404, 1, 0
        %v1413 = vsel %vm1405, 1, 0
        %v1414 = vsel %vm1406, 1, 0
        %v1415 = vsel %vm1407, 1, 0
        %v1416 = vsel %vm1408, 1, 0
        %v1417 = vcvt.s32.f32 %v1409
        %v1418 = vcvt.s32.f32 %v1410
        %v1419 = vcvt.s32.f32 %v1411
        %v1420 = vcvt.s32.f32 %v1412
        %v1421 = vcvt.s32.f32 %v1413
        %v1422 = vcvt.s32.f32 %v1414
        %v1423 = vcvt.s32.f32 %v1415
        %v1424 = vcvt.s32.f32 %v1416
        %v1426 = vsel %vm298, %v875, 0
        %1428 = vmatprep.subr.mxu0 0.0
        %1429 = vmatpush1.msra.mxu0 %v1361
        %1430 = vmatprep.subr.mxu0 0.0
        %1431 = vmatpush1.msra.mxu0 %v1362
        %1432 = vmatprep.subr.mxu0 0.0
        %1433 = vmatpush1.msra.mxu0 %v1363
        %1434 = vmatprep.subr.mxu0 0.0
        %1435 = vmatpush1.msra.mxu0 %v1364
        %1436 = vmatprep.subr.mxu0 0.0
        %1437 = vmatpush1.msra.mxu0 %v1365
        %1438 = vmatprep.subr.mxu0 0.0
        %1439 = vmatpush1.msra.mxu0 %v1366
        %1440 = vmatprep.subr.mxu0 0.0
        %1441 = vmatpush1.msra.mxu0 %v1367
        %1442 = vmatprep.subr.mxu0 0.0
        %1443 = vmatpush1.msra.mxu0 %v1368
        %1444 = vmatprep.subr.mxu0 0.0
        %1445 = vmatpush1.msra.mxu0 0.0
        %1446 = vmatprep.subr.mxu0 0.0
        %1447 = vmatpush1.msra.mxu0 0.0
        %1448 = vmatprep.subr.mxu0 0.0
        %1449 = vmatpush1.msra.mxu0 0.0
        %1450 = vmatprep.subr.mxu0 0.0
        %1451 = vmatpush1.msra.mxu0 0.0
        %1452 = vmatprep.subr.mxu0 0.0
        %1453 = vmatpush1.msra.mxu0 0.0
        %1454 = vmatprep.subr.mxu0 0.0
        %1455 = vmatpush1.msra.mxu0 0.0
        %1456 = vmatprep.subr.mxu0 0.0
        %1457 = vmatpush1.msra.mxu0 0.0
        %1458 = vmatprep.subr.mxu0 0.0
        %1459 = vmatpush1.msra.mxu0 0.0
        %1460 = vmatprep.subr.mxu0 0.0
        %1461 = vmatpush1.msra.mxu0 0.0
        %1462 = vmatprep.subr.mxu0 0.0
        %1463 = vmatpush1.msra.mxu0 0.0
        %1464 = vmatprep.subr.mxu0 0.0
        %1465 = vmatpush1.msra.mxu0 0.0
        %1466 = vmatprep.subr.mxu0 0.0
        %1467 = vmatpush1.msra.mxu0 0.0
        %1468 = vmatprep.subr.mxu0 0.0
        %1469 = vmatpush1.msra.mxu0 0.0
        %1470 = vmatprep.subr.mxu0 0.0
        %1471 = vmatpush1.msra.mxu0 0.0
        %1472 = vmatprep.subr.mxu0 0.0
        %1473 = vmatpush1.msra.mxu0 0.0
        %1474 = vmatprep.subr.mxu0 0.0
        %1475 = vmatpush1.msra.mxu0 0.0
        %1476 = vmatprep.subr.mxu0 0.0
        %1477 = vmatpush1.msra.mxu0 0.0
        %1478 = vmatprep.subr.mxu0 0.0
        %1479 = vmatpush1.msra.mxu0 0.0
        %1480 = vmatprep.subr.mxu0 0.0
        %1481 = vmatpush1.msra.mxu0 0.0
        %1482 = vmatprep.subr.mxu0 0.0
        %1483 = vmatpush1.msra.mxu0 0.0
        %1484 = vmatprep.subr.mxu0 0.0
        %1485 = vmatpush1.msra.mxu0 0.0
        %1486 = vmatprep.subr.mxu0 0.0
        %1487 = vmatpush1.msra.mxu0 0.0
        %1488 = vmatprep.subr.mxu0 0.0
        %1489 = vmatpush1.msra.mxu0 0.0
        %1490 = vmatprep.subr.mxu0 0.0
        %1491 = vmatpush1.msra.mxu0 0.0
        %1492 = vmatprep.mubr.f32.mxu0 0.0
        %1493 = vmatmul.mubr.f32.gmra.mrb[0].mxu0 %v1426
        %v1494 = vpop.f32.mrb[0].mxu0
        %v1495 = vadd.f32 0.0, %v1494
        %v1496 = vpop.f32.mrb[0].mxu0
        %1497 = vdwg.mxu0
        %v1499 = vsel %vm298, %v323, 0
        %1501 = vmatprep.subr.mxu0 0.0
        %1502 = vmatpush1.msra.mxu0 %v810
        %1503 = vmatprep.subr.mxu0 0.0
        %1504 = vmatpush1.msra.mxu0 %v811
        %1505 = vmatprep.subr.mxu0 0.0
        %1506 = vmatpush1.msra.mxu0 %v812
        %1507 = vmatprep.subr.mxu0 0.0
        %1508 = vmatpush1.msra.mxu0 %v813
        %1509 = vmatprep.subr.mxu0 0.0
        %1510 = vmatpush1.msra.mxu0 %v814
        %1511 = vmatprep.subr.mxu0 0.0
        %1512 = vmatpush1.msra.mxu0 %v815
        %1513 = vmatprep.subr.mxu0 0.0
        %1514 = vmatpush1.msra.mxu0 %v816
        %1515 = vmatprep.subr.mxu0 0.0
        %1516 = vmatpush1.msra.mxu0 %v817
        %1517 = vmatprep.subr.mxu0 0.0
        %1518 = vmatpush1.msra.mxu0 0.0
        %1519 = vmatprep.subr.mxu0 0.0
        %1520 = vmatpush1.msra.mxu0 0.0
        %1521 = vmatprep.subr.mxu0 0.0
        %1522 = vmatpush1.msra.mxu0 0.0
        %1523 = vmatprep.subr.mxu0 0.0
        %1524 = vmatpush1.msra.mxu0 0.0
        %1525 = vmatprep.subr.mxu0 0.0
        %1526 = vmatpush1.msra.mxu0 0.0
        %1527 = vmatprep.subr.mxu0 0.0
        %1528 = vmatpush1.msra.mxu0 0.0
        %1529 = vmatprep.subr.mxu0 0.0
        %1530 = vmatpush1.msra.mxu0 0.0
        %1531 = vmatprep.subr.mxu0 0.0
        %1532 = vmatpush1.msra.mxu0 0.0
        %1533 = vmatprep.subr.mxu0 0.0
        %1534 = vmatpush1.msra.mxu0 0.0
        %1535 = vmatprep.subr.mxu0 0.0
        %1536 = vmatpush1.msra.mxu0 0.0
        %1537 = vmatprep.subr.mxu0 0.0
        %1538 = vmatpush1.msra.mxu0 0.0
        %1539 = vmatprep.subr.mxu0 0.0
        %1540 = vmatpush1.msra.mxu0 0.0
        %1541 = vmatprep.subr.mxu0 0.0
        %1542 = vmatpush1.msra.mxu0 0.0
        %1543 = vmatprep.subr.mxu0 0.0
        %1544 = vmatpush1.msra.mxu0 0.0
        %1545 = vmatprep.subr.mxu0 0.0
        %1546 = vmatpush1.msra.mxu0 0.0
        %1547 = vmatprep.subr.mxu0 0.0
        %1548 = vmatpush1.msra.mxu0 0.0
        %1549 = vmatprep.subr.mxu0 0.0
        %1550 = vmatpush1.msra.mxu0 0.0
        %1551 = vmatprep.subr.mxu0 0.0
        %1552 = vmatpush1.msra.mxu0 0.0
        %1553 = vmatprep.subr.mxu0 0.0
        %1554 = vmatpush1.msra.mxu0 0.0
        %1555 = vmatprep.subr.mxu0 0.0
        %1556 = vmatpush1.msra.mxu0 0.0
        %1557 = vmatprep.subr.mxu0 0.0
        %1558 = vmatpush1.msra.mxu0 0.0
        %1559 = vmatprep.subr.mxu0 0.0
        %1560 = vmatpush1.msra.mxu0 0.0
        %1561 = vmatprep.subr.mxu0 0.0
        %1562 = vmatpush1.msra.mxu0 0.0
        %1563 = vmatprep.subr.mxu0 0.0
        %1564 = vmatpush1.msra.mxu0 0.0
        %1565 = vmatprep.mubr.f32.mxu0 0.0
        %1566 = vmatmul.mubr.f32.gmra.mrb[0].mxu0 %v1499
        %v1567 = vpop.f32.mrb[0].mxu0
        %v1568 = vadd.f32 %v1495, %v1567
        %v1569 = vpop.f32.mrb[0].mxu0
        %1570 = vdwg.mxu0
        %1571 = vmatprep.subr.mxu0 0.0
        %1572 = vmatpush1.msra.mxu0 %v1417
        %1573 = vmatprep.subr.mxu0 0.0
        %1574 = vmatpush1.msra.mxu0 %v1418
        %1575 = vmatprep.subr.mxu0 0.0
        %1576 = vmatpush1.msra.mxu0 %v1419
        %1577 = vmatprep.subr.mxu0 0.0
        %1578 = vmatpush1.msra.mxu0 %v1420
        %1579 = vmatprep.subr.mxu0 0.0
        %1580 = vmatpush1.msra.mxu0 %v1421
        %1581 = vmatprep.subr.mxu0 0.0
        %1582 = vmatpush1.msra.mxu0 %v1422
        %1583 = vmatprep.subr.mxu0 0.0
        %1584 = vmatpush1.msra.mxu0 %v1423
        %1585 = vmatprep.subr.mxu0 0.0
        %1586 = vmatpush1.msra.mxu0 %v1424
        %1587 = vmatprep.subr.mxu0 0.0
        %1588 = vmatpush1.msra.mxu0 0.0
        %1589 = vmatprep.subr.mxu0 0.0
        %1590 = vmatpush1.msra.mxu0 0.0
        %1591 = vmatprep.subr.mxu0 0.0
        %1592 = vmatpush1.msra.mxu0 0.0
        %1593 = vmatprep.subr.mxu0 0.0
        %1594 = vmatpush1.msra.mxu0 0.0
        %1595 = vmatprep.subr.mxu0 0.0
        %1596 = vmatpush1.msra.mxu0 0.0
        %1597 = vmatprep.subr.mxu0 0.0
        %1598 = vmatpush1.msra.mxu0 0.0
        %1599 = vmatprep.subr.mxu0 0.0
        %1600 = vmatpush1.msra.mxu0 0.0
        %1601 = vmatprep.subr.mxu0 0.0
        %1602 = vmatpush1.msra.mxu0 0.0
        %1603 = vmatprep.subr.mxu0 0.0
        %1604 = vmatpush1.msra.mxu0 0.0
        %1605 = vmatprep.subr.mxu0 0.0
        %1606 = vmatpush1.msra.mxu0 0.0
        %1607 = vmatprep.subr.mxu0 0.0
        %1608 = vmatpush1.msra.mxu0 0.0
        %1609 = vmatprep.subr.mxu0 0.0
        %1610 = vmatpush1.msra.mxu0 0.0
        %1611 = vmatprep.subr.mxu0 0.0
        %1612 = vmatpush1.msra.mxu0 0.0
        %1613 = vmatprep.subr.mxu0 0.0
        %1614 = vmatpush1.msra.mxu0 0.0
        %1615 = vmatprep.subr.mxu0 0.0
        %1616 = vmatpush1.msra.mxu0 0.0
        %1617 = vmatprep.subr.mxu0 0.0
        %1618 = vmatpush1.msra.mxu0 0.0
        %1619 = vmatprep.subr.mxu0 0.0
        %1620 = vmatpush1.msra.mxu0 0.0
        %1621 = vmatprep.subr.mxu0 0.0
        %1622 = vmatpush1.msra.mxu0 0.0
        %1623 = vmatprep.subr.mxu0 0.0
        %1624 = vmatpush1.msra.mxu0 0.0
        %1625 = vmatprep.subr.mxu0 0.0
        %1626 = vmatpush1.msra.mxu0 0.0
        %1627 = vmatprep.subr.mxu0 0.0
        %1628 = vmatpush1.msra.mxu0 0.0
        %1629 = vmatprep.subr.mxu0 0.0
        %1630 = vmatpush1.msra.mxu0 0.0
        %1631 = vmatprep.subr.mxu0 0.0
        %1632 = vmatpush1.msra.mxu0 0.0
        %1633 = vmatprep.subr.mxu0 0.0
        %1634 = vmatpush1.msra.mxu0 0.0
        %1635 = vmatprep.mubr.f32.mxu0 0.0
        %1636 = vmatmul.mubr.f32.gmra.mrb[0].mxu0 %v1426
        %v1637 = vpop.f32.mrb[0].mxu0
        %v1638 = vadd.f32 0.0, %v1637
        %v1639 = vpop.f32.mrb[0].mxu0
        %1640 = vdwg.mxu0
        %1641 = vmatprep.subr.mxu0 0.0
        %1642 = vmatpush1.msra.mxu0 %v866
        %1643 = vmatprep.subr.mxu0 0.0
        %1644 = vmatpush1.msra.mxu0 %v867
        %1645 = vmatprep.subr.mxu0 0.0
        %1646 = vmatpush1.msra.mxu0 %v868
        %1647 = vmatprep.subr.mxu0 0.0
        %1648 = vmatpush1.msra.mxu0 %v869
        %1649 = vmatprep.subr.mxu0 0.0
        %1650 = vmatpush1.msra.mxu0 %v870
        %1651 = vmatprep.subr.mxu0 0.0
        %1652 = vmatpush1.msra.mxu0 %v871
        %1653 = vmatprep.subr.mxu0 0.0
        %1654 = vmatpush1.msra.mxu0 %v872
        %1655 = vmatprep.subr.mxu0 0.0
        %1656 = vmatpush1.msra.mxu0 %v873
        %1657 = vmatprep.subr.mxu0 0.0
        %1658 = vmatpush1.msra.mxu0 0.0
        %1659 = vmatprep.subr.mxu0 0.0
        %1660 = vmatpush1.msra.mxu0 0.0
        %1661 = vmatprep.subr.mxu0 0.0
        %1662 = vmatpush1.msra.mxu0 0.0
        %1663 = vmatprep.subr.mxu0 0.0
        %1664 = vmatpush1.msra.mxu0 0.0
        %1665 = vmatprep.subr.mxu0 0.0
        %1666 = vmatpush1.msra.mxu0 0.0
        %1667 = vmatprep.subr.mxu0 0.0
        %1668 = vmatpush1.msra.mxu0 0.0
        %1669 = vmatprep.subr.mxu0 0.0
        %1670 = vmatpush1.msra.mxu0 0.0
        %1671 = vmatprep.subr.mxu0 0.0
        %1672 = vmatpush1.msra.mxu0 0.0
        %1673 = vmatprep.subr.mxu0 0.0
        %1674 = vmatpush1.msra.mxu0 0.0
        %1675 = vmatprep.subr.mxu0 0.0
        %1676 = vmatpush1.msra.mxu0 0.0
        %1677 = vmatprep.subr.mxu0 0.0
        %1678 = vmatpush1.msra.mxu0 0.0
        %1679 = vmatprep.subr.mxu0 0.0
        %1680 = vmatpush1.msra.mxu0 0.0
        %1681 = vmatprep.subr.mxu0 0.0
        %1682 = vmatpush1.msra.mxu0 0.0
        %1683 = vmatprep.subr.mxu0 0.0
        %1684 = vmatpush1.msra.mxu0 0.0
        %1685 = vmatprep.subr.mxu0 0.0
        %1686 = vmatpush1.msra.mxu0 0.0
        %1687 = vmatprep.subr.mxu0 0.0
        %1688 = vmatpush1.msra.mxu0 0.0
        %1689 = vmatprep.subr.mxu0 0.0
        %1690 = vmatpush1.msra.mxu0 0.0
        %1691 = vmatprep.subr.mxu0 0.0
        %1692 = vmatpush1.msra.mxu0 0.0
        %1693 = vmatprep.subr.mxu0 0.0
        %1694 = vmatpush1.msra.mxu0 0.0
        %1695 = vmatprep.subr.mxu0 0.0
        %1696 = vmatpush1.msra.mxu0 0.0
        %1697 = vmatprep.subr.mxu0 0.0
        %1698 = vmatpush1.msra.mxu0 0.0
        %1699 = vmatprep.subr.mxu0 0.0
        %1700 = vmatpush1.msra.mxu0 0.0
        %1701 = vmatprep.subr.mxu0 0.0
        %1702 = vmatpush1.msra.mxu0 0.0
        %1703 = vmatprep.subr.mxu0 0.0
        %1704 = vmatpush1.msra.mxu0 0.0
        %1705 = vmatprep.mubr.f32.mxu0 0.0
        %1706 = vmatmul.mubr.f32.gmra.mrb[0].mxu0 %v1499
        %v1707 = vpop.f32.mrb[0].mxu0
        %v1708 = vadd.f32 %v1638, %v1707
        %v1709 = vpop.f32.mrb[0].mxu0
        %1710 = vdwg.mxu0
        %v1712 = vsel %vm298, 1.0, 0
        %1714 = vmatprep.subr.mxu0 0.0
        %1715 = vmatpush1.msra.mxu0 %v1361
        %1716 = vmatprep.subr.mxu0 0.0
        %1717 = vmatpush1.msra.mxu0 %v1362
        %1718 = vmatprep.subr.mxu0 0.0
        %1719 = vmatpush1.msra.mxu0 %v1363
        %1720 = vmatprep.subr.mxu0 0.0
        %1721 = vmatpush1.msra.mxu0 %v1364
        %1722 = vmatprep.subr.mxu0 0.0
        %1723 = vmatpush1.msra.mxu0 %v1365
        %1724 = vmatprep.subr.mxu0 0.0
        %1725 = vmatpush1.msra.mxu0 %v1366
        %1726 = vmatprep.subr.mxu0 0.0
        %1727 = vmatpush1.msra.mxu0 %v1367
        %1728 = vmatprep.subr.mxu0 0.0
        %1729 = vmatpush1.msra.mxu0 %v1368
        %1730 = vmatprep.subr.mxu0 0.0
        %1731 = vmatpush1.msra.mxu0 0.0
        %1732 = vmatprep.subr.mxu0 0.0
        %1733 = vmatpush1.msra.mxu0 0.0
        %1734 = vmatprep.subr.mxu0 0.0
        %1735 = vmatpush1.msra.mxu0 0.0
        %1736 = vmatprep.subr.mxu0 0.0
        %1737 = vmatpush1.msra.mxu0 0.0
        %1738 = vmatprep.subr.mxu0 0.0
        %1739 = vmatpush1.msra.mxu0 0.0
        %1740 = vmatprep.subr.mxu0 0.0
        %1741 = vmatpush1.msra.mxu0 0.0
        %1742 = vmatprep.subr.mxu0 0.0
        %1743 = vmatpush1.msra.mxu0 0.0
        %1744 = vmatprep.subr.mxu0 0.0
        %1745 = vmatpush1.msra.mxu0 0.0
        %1746 = vmatprep.subr.mxu0 0.0
        %1747 = vmatpush1.msra.mxu0 0.0
        %1748 = vmatprep.subr.mxu0 0.0
        %1749 = vmatpush1.msra.mxu0 0.0
        %1750 = vmatprep.subr.mxu0 0.0
        %1751 = vmatpush1.msra.mxu0 0.0
        %1752 = vmatprep.subr.mxu0 0.0
        %1753 = vmatpush1.msra.mxu0 0.0
        %1754 = vmatprep.subr.mxu0 0.0
        %1755 = vmatpush1.msra.mxu0 0.0
        %1756 = vmatprep.subr.mxu0 0.0
        %1757 = vmatpush1.msra.mxu0 0.0
        %1758 = vmatprep.subr.mxu0 0.0
        %1759 = vmatpush1.msra.mxu0 0.0
        %1760 = vmatprep.subr.mxu0 0.0
        %1761 = vmatpush1.msra.mxu0 0.0
        %1762 = vmatprep.subr.mxu0 0.0
        %1763 = vmatpush1.msra.mxu0 0.0
        %1764 = vmatprep.subr.mxu0 0.0
        %1765 = vmatpush1.msra.mxu0 0.0
        %1766 = vmatprep.subr.mxu0 0.0
        %1767 = vmatpush1.msra.mxu0 0.0
        %1768 = vmatprep.subr.mxu0 0.0
        %1769 = vmatpush1.msra.mxu0 0.0
        %1770 = vmatprep.subr.mxu0 0.0
        %1771 = vmatpush1.msra.mxu0 0.0
        %1772 = vmatprep.subr.mxu0 0.0
        %1773 = vmatpush1.msra.mxu0 0.0
        %1774 = vmatprep.subr.mxu0 0.0
        %1775 = vmatpush1.msra.mxu0 0.0
        %1776 = vmatprep.subr.mxu0 0.0
        %1777 = vmatpush1.msra.mxu0 0.0
        %1778 = vmatprep.mubr.f32.mxu0 0.0
        %1779 = vmatmul.mubr.f32.gmra.mrb[0].mxu0 %v1712
        %v1780 = vpop.f32.mrb[0].mxu0
        %v1781 = vadd.f32 0.0, %v1780
        %v1782 = vpop.f32.mrb[0].mxu0
        %1783 = vdwg.mxu0
        %1784 = vmatprep.subr.mxu0 0.0
        %1785 = vmatpush1.msra.mxu0 %v810
        %1786 = vmatprep.subr.mxu0 0.0
        %1787 = vmatpush1.msra.mxu0 %v811
        %1788 = vmatprep.subr.mxu0 0.0
        %1789 = vmatpush1.msra.mxu0 %v812
        %1790 = vmatprep.subr.mxu0 0.0
        %1791 = vmatpush1.msra.mxu0 %v813
        %1792 = vmatprep.subr.mxu0 0.0
        %1793 = vmatpush1.msra.mxu0 %v814
        %1794 = vmatprep.subr.mxu0 0.0
        %1795 = vmatpush1.msra.mxu0 %v815
        %1796 = vmatprep.subr.mxu0 0.0
        %1797 = vmatpush1.msra.mxu0 %v816
        %1798 = vmatprep.subr.mxu0 0.0
        %1799 = vmatpush1.msra.mxu0 %v817
        %1800 = vmatprep.subr.mxu0 0.0
        %1801 = vmatpush1.msra.mxu0 0.0
        %1802 = vmatprep.subr.mxu0 0.0
        %1803 = vmatpush1.msra.mxu0 0.0
        %1804 = vmatprep.subr.mxu0 0.0
        %1805 = vmatpush1.msra.mxu0 0.0
        %1806 = vmatprep.subr.mxu0 0.0
        %1807 = vmatpush1.msra.mxu0 0.0
        %1808 = vmatprep.subr.mxu0 0.0
        %1809 = vmatpush1.msra.mxu0 0.0
        %1810 = vmatprep.subr.mxu0 0.0
        %1811 = vmatpush1.msra.mxu0 0.0
        %1812 = vmatprep.subr.mxu0 0.0
        %1813 = vmatpush1.msra.mxu0 0.0
        %1814 = vmatprep.subr.mxu0 0.0
        %1815 = vmatpush1.msra.mxu0 0.0
        %1816 = vmatprep.subr.mxu0 0.0
        %1817 = vmatpush1.msra.mxu0 0.0
        %1818 = vmatprep.subr.mxu0 0.0
        %1819 = vmatpush1.msra.mxu0 0.0
        %1820 = vmatprep.subr.mxu0 0.0
        %1821 = vmatpush1.msra.mxu0 0.0
        %1822 = vmatprep.subr.mxu0 0.0
        %1823 = vmatpush1.msra.mxu0 0.0
        %1824 = vmatprep.subr.mxu0 0.0
        %1825 = vmatpush1.msra.mxu0 0.0
        %1826 = vmatprep.subr.mxu0 0.0
        %1827 = vmatpush1.msra.mxu0 0.0
        %1828 = vmatprep.subr.mxu0 0.0
        %1829 = vmatpush1.msra.mxu0 0.0
        %1830 = vmatprep.subr.mxu0 0.0
        %1831 = vmatpush1.msra.mxu0 0.0
        %1832 = vmatprep.subr.mxu0 0.0
        %1833 = vmatpush1.msra.mxu0 0.0
        %1834 = vmatprep.subr.mxu0 0.0
        %1835 = vmatpush1.msra.mxu0 0.0
        %1836 = vmatprep.subr.mxu0 0.0
        %1837 = vmatpush1.msra.mxu0 0.0
        %1838 = vmatprep.subr.mxu0 0.0
        %1839 = vmatpush1.msra.mxu0 0.0
        %1840 = vmatprep.subr.mxu0 0.0
        %1841 = vmatpush1.msra.mxu0 0.0
        %1842 = vmatprep.subr.mxu0 0.0
        %1843 = vmatpush1.msra.mxu0 0.0
        %1844 = vmatprep.subr.mxu0 0.0
        %1845 = vmatpush1.msra.mxu0 0.0
        %1846 = vmatprep.subr.mxu0 0.0
        %1847 = vmatpush1.msra.mxu0 0.0
        %1848 = vmatprep.mubr.f32.mxu0 0.0
        %1849 = vmatmul.mubr.f32.gmra.mrb[0].mxu0 %v1712
        %v1850 = vpop.f32.mrb[0].mxu0
        %v1851 = vadd.f32 %v1781, %v1850
        %v1852 = vpop.f32.mrb[0].mxu0
        %1853 = vdwg.mxu0
        %1854 = vmatprep.subr.mxu0 0.0
        %1855 = vmatpush1.msra.mxu0 %v1417
        %1856 = vmatprep.subr.mxu0 0.0
        %1857 = vmatpush1.msra.mxu0 %v1418
        %1858 = vmatprep.subr.mxu0 0.0
        %1859 = vmatpush1.msra.mxu0 %v1419
        %1860 = vmatprep.subr.mxu0 0.0
        %1861 = vmatpush1.msra.mxu0 %v1420
        %1862 = vmatprep.subr.mxu0 0.0
        %1863 = vmatpush1.msra.mxu0 %v1421
        %1864 = vmatprep.subr.mxu0 0.0
        %1865 = vmatpush1.msra.mxu0 %v1422
        %1866 = vmatprep.subr.mxu0 0.0
        %1867 = vmatpush1.msra.mxu0 %v1423
        %1868 = vmatprep.subr.mxu0 0.0
        %1869 = vmatpush1.msra.mxu0 %v1424
        %1870 = vmatprep.subr.mxu0 0.0
        %1871 = vmatpush1.msra.mxu0 0.0
        %1872 = vmatprep.subr.mxu0 0.0
        %1873 = vmatpush1.msra.mxu0 0.0
        %1874 = vmatprep.subr.mxu0 0.0
        %1875 = vmatpush1.msra.mxu0 0.0
        %1876 = vmatprep.subr.mxu0 0.0
        %1877 = vmatpush1.msra.mxu0 0.0
        %1878 = vmatprep.subr.mxu0 0.0
        %1879 = vmatpush1.msra.mxu0 0.0
        %1880 = vmatprep.subr.mxu0 0.0
        %1881 = vmatpush1.msra.mxu0 0.0
        %1882 = vmatprep.subr.mxu0 0.0
        %1883 = vmatpush1.msra.mxu0 0.0
        %1884 = vmatprep.subr.mxu0 0.0
        %1885 = vmatpush1.msra.mxu0 0.0
        %1886 = vmatprep.subr.mxu0 0.0
        %1887 = vmatpush1.msra.mxu0 0.0
        %1888 = vmatprep.subr.mxu0 0.0
        %1889 = vmatpush1.msra.mxu0 0.0
        %1890 = vmatprep.subr.mxu0 0.0
        %1891 = vmatpush1.msra.mxu0 0.0
        %1892 = vmatprep.subr.mxu0 0.0
        %1893 = vmatpush1.msra.mxu0 0.0
        %1894 = vmatprep.subr.mxu0 0.0
        %1895 = vmatpush1.msra.mxu0 0.0
        %1896 = vmatprep.subr.mxu0 0.0
        %1897 = vmatpush1.msra.mxu0 0.0
        %1898 = vmatprep.subr.mxu0 0.0
        %1899 = vmatpush1.msra.mxu0 0.0
        %1900 = vmatprep.subr.mxu0 0.0
        %1901 = vmatpush1.msra.mxu0 0.0
        %1902 = vmatprep.subr.mxu0 0.0
        %1903 = vmatpush1.msra.mxu0 0.0
        %1904 = vmatprep.subr.mxu0 0.0
        %1905 = vmatpush1.msra.mxu0 0.0
        %1906 = vmatprep.subr.mxu0 0.0
        %1907 = vmatpush1.msra.mxu0 0.0
        %1908 = vmatprep.subr.mxu0 0.0
        %1909 = vmatpush1.msra.mxu0 0.0
        %1910 = vmatprep.subr.mxu0 0.0
        %1911 = vmatpush1.msra.mxu0 0.0
        %1912 = vmatprep.subr.mxu0 0.0
        %1913 = vmatpush1.msra.mxu0 0.0
        %1914 = vmatprep.subr.mxu0 0.0
        %1915 = vmatpush1.msra.mxu0 0.0
        %1916 = vmatprep.subr.mxu0 0.0
        %1917 = vmatpush1.msra.mxu0 0.0
        %1918 = vmatprep.mubr.f32.mxu0 0.0
        %1919 = vmatmul.mubr.f32.gmra.mrb[0].mxu0 %v1712
        %v1920 = vpop.f32.mrb[0].mxu0
        %v1921 = vadd.f32 0.0, %v1920
        %v1922 = vpop.f32.mrb[0].mxu0
        %1923 = vdwg.mxu0
        %1924 = vmatprep.subr.mxu0 0.0
        %1925 = vmatpush1.msra.mxu0 %v866
        %1926 = vmatprep.subr.mxu0 0.0
        %1927 = vmatpush1.msra.mxu0 %v867
        %1928 = vmatprep.subr.mxu0 0.0
        %1929 = vmatpush1.msra.mxu0 %v868
        %1930 = vmatprep.subr.mxu0 0.0
        %1931 = vmatpush1.msra.mxu0 %v869
        %1932 = vmatprep.subr.mxu0 0.0
        %1933 = vmatpush1.msra.mxu0 %v870
        %1934 = vmatprep.subr.mxu0 0.0
        %1935 = vmatpush1.msra.mxu0 %v871
        %1936 = vmatprep.subr.mxu0 0.0
        %1937 = vmatpush1.msra.mxu0 %v872
        %1938 = vmatprep.subr.mxu0 0.0
        %1939 = vmatpush1.msra.mxu0 %v873
        %1940 = vmatprep.subr.mxu0 0.0
        %1941 = vmatpush1.msra.mxu0 0.0
        %1942 = vmatprep.subr.mxu0 0.0
        %1943 = vmatpush1.msra.mxu0 0.0
        %1944 = vmatprep.subr.mxu0 0.0
        %1945 = vmatpush1.msra.mxu0 0.0
        %1946 = vmatprep.subr.mxu0 0.0
        %1947 = vmatpush1.msra.mxu0 0.0
        %1948 = vmatprep.subr.mxu0 0.0
        %1949 = vmatpush1.msra.mxu0 0.0
        %1950 = vmatprep.subr.mxu0 0.0
        %1951 = vmatpush1.msra.mxu0 0.0
        %1952 = vmatprep.subr.mxu0 0.0
        %1953 = vmatpush1.msra.mxu0 0.0
        %1954 = vmatprep.subr.mxu0 0.0
        %1955 = vmatpush1.msra.mxu0 0.0
        %1956 = vmatprep.subr.mxu0 0.0
        %1957 = vmatpush1.msra.mxu0 0.0
        %1958 = vmatprep.subr.mxu0 0.0
        %1959 = vmatpush1.msra.mxu0 0.0
        %1960 = vmatprep.subr.mxu0 0.0
        %1961 = vmatpush1.msra.mxu0 0.0
        %1962 = vmatprep.subr.mxu0 0.0
        %1963 = vmatpush1.msra.mxu0 0.0
        %1964 = vmatprep.subr.mxu0 0.0
        %1965 = vmatpush1.msra.mxu0 0.0
        %1966 = vmatprep.subr.mxu0 0.0
        %1967 = vmatpush1.msra.mxu0 0.0
        %1968 = vmatprep.subr.mxu0 0.0
        %1969 = vmatpush1.msra.mxu0 0.0
        %1970 = vmatprep.subr.mxu0 0.0
        %1971 = vmatpush1.msra.mxu0 0.0
        %1972 = vmatprep.subr.mxu0 0.0
        %1973 = vmatpush1.msra.mxu0 0.0
        %1974 = vmatprep.subr.mxu0 0.0
        %1975 = vmatpush1.msra.mxu0 0.0
        %1976 = vmatprep.subr.mxu0 0.0
        %1977 = vmatpush1.msra.mxu0 0.0
        %1978 = vmatprep.subr.mxu0 0.0
        %1979 = vmatpush1.msra.mxu0 0.0
        %1980 = vmatprep.subr.mxu0 0.0
        %1981 = vmatpush1.msra.mxu0 0.0
        %1982 = vmatprep.subr.mxu0 0.0
        %1983 = vmatpush1.msra.mxu0 0.0
        %1984 = vmatprep.subr.mxu0 0.0
        %1985 = vmatpush1.msra.mxu0 0.0
        %1986 = vmatprep.subr.mxu0 0.0
        %1987 = vmatpush1.msra.mxu0 0.0
        %1988 = vmatprep.mubr.f32.mxu0 0.0
        %1989 = vmatmul.mubr.f32.gmra.mrb[0].mxu0 %v1712
        %v1990 = vpop.f32.mrb[0].mxu0
        %v1991 = vadd.f32 %v1921, %v1990
        %v1992 = vpop.f32.mrb[0].mxu0
        %1993 = vdwg.mxu0
        %v1994 = vadd.f32 %v294, %v1568
        %v1995 = vadd.f32 %v1851, 1.0
        %v1996 = vlaneseq
        %v1997 = vshrl.u32 %v1996, 7
        %v1998 = vsub.s32 0, %v1997
        %v1999 = vrot.slane %v1995, %v1998
        %v2000 = vrcp.pop %v1999
        %v2001 = vmul.f32 %v1994, %v2000
        %v2002 = vadd.f32 %v296, %v1708
        %v2003 = vadd.f32 %v1991, 1.0
        %v2004 = vlaneseq
        %v2005 = vshrl.u32 %v2004, 7
        %v2006 = vsub.s32 0, %v2005
        %v2007 = vrot.slane %v2003, %v2006
        %v2008 = vrcp.pop %v2007
        %v2009 = vmul.f32 %v2002, %v2008
        %v2010 = vmul.f32 %v2001, %v2001
        %v2011 = vsel %vm298, %v2010, 0.0
        %v2012 = vrot.slane %v2011, 4
        %v2013 = vadd.f32 %v2011, %v2012
        %v2014 = vrot.slane %v2013, 2
        %v2015 = vadd.f32 %v2013, %v2014
        %v2016 = vrot.slane %v2015, 1
        %v2017 = vadd.f32 %v2015, %v2016
        %v2018 = vadd.f32 %v2017, 1e-30
        %v2019 = vrsqrt.pop %v2018
        %v2020 = vmul.f32 %v2001, %v2019
        %2021 = vxpose.xlu0.b32.start [1/16] %v2020, 128
        %2022 = vxpose.xlu0.b32.cont [2/16] 0.0, 128
        %2023 = vxpose.xlu0.b32.cont [3/16] 0.0, 128
        %2024 = vxpose.xlu0.b32.cont [4/16] 0.0, 128
        %2025 = vxpose.xlu0.b32.cont [5/16] 0.0, 128
        %2026 = vxpose.xlu0.b32.cont [6/16] 0.0, 128
        %2027 = vxpose.xlu0.b32.cont [7/16] 0.0, 128
        %2028 = vxpose.xlu0.b32.cont [8/16] 0.0, 128
        %2029 = vxpose.xlu0.b32.cont [9/16] 0.0, 128
        %2030 = vxpose.xlu0.b32.cont [10/16] 0.0, 128
        %2031 = vxpose.xlu0.b32.cont [11/16] 0.0, 128
        %2032 = vxpose.xlu0.b32.cont [12/16] 0.0, 128
        %2033 = vxpose.xlu0.b32.cont [13/16] 0.0, 128
        %2034 = vxpose.xlu0.b32.cont [14/16] 0.0, 128
        %2035 = vxpose.xlu0.b32.cont [15/16] 0.0, 128
        %2036 = vxpose.xlu0.b32.end [16/16] 0.0, 128
        %v2037 = vpop.trf.xlu0
        %v2038 = vpop.trf.xlu0
        %v2039 = vpop.trf.xlu0
        %v2040 = vpop.trf.xlu0
        %v2041 = vpop.trf.xlu0
        %v2042 = vpop.trf.xlu0
        %v2043 = vpop.trf.xlu0
        %v2044 = vpop.trf.xlu0
        %v2045 = vpop.trf.xlu0
        %v2046 = vpop.trf.xlu0
        %v2047 = vpop.trf.xlu0
        %v2048 = vpop.trf.xlu0
        %v2049 = vpop.trf.xlu0
        %v2050 = vpop.trf.xlu0
        %v2051 = vpop.trf.xlu0
        %v2052 = vpop.trf.xlu0
        %v2053 = vmul.f32 %v2009, %v2009
        %v2054 = vsel %vm298, %v2053, 0.0
        %v2055 = vrot.slane %v2054, 4
        %v2056 = vadd.f32 %v2054, %v2055
        %v2057 = vrot.slane %v2056, 2
        %v2058 = vadd.f32 %v2056, %v2057
        %v2059 = vrot.slane %v2058, 1
        %v2060 = vadd.f32 %v2058, %v2059
        %v2061 = vadd.f32 %v2060, 1e-30
        %v2062 = vrsqrt.pop %v2061
        %v2063 = vmul.f32 %v2009, %v2062
        %v2065 = vsel %vm367, %v2037, 0
        %v2068 = vsel %vm367, %v2038, 0
        %v2071 = vsel %vm367, %v2039, 0
        %v2074 = vsel %vm367, %v2040, 0
        %v2077 = vsel %vm367, %v2041, 0
        %v2080 = vsel %vm367, %v2042, 0
        %v2083 = vsel %vm367, %v2043, 0
        %v2086 = vsel %vm367, %v2044, 0
        %2088 = vmatprep.subr.mxu0 0.0
        %2089 = vmatpush1.msra.mxu0 %v2063
        %2090 = vmatprep.subr.mxu0 0.0
        %2091 = vmatpush1.msra.mxu0 0.0
        %2092 = vmatprep.subr.mxu0 0.0
        %2093 = vmatpush1.msra.mxu0 0.0
        %2094 = vmatprep.subr.mxu0 0.0
        %2095 = vmatpush1.msra.mxu0 0.0
        %2096 = vmatprep.subr.mxu0 0.0
        %2097 = vmatpush1.msra.mxu0 0.0
        %2098 = vmatprep.subr.mxu0 0.0
        %2099 = vmatpush1.msra.mxu0 0.0
        %2100 = vmatprep.subr.mxu0 0.0
        %2101 = vmatpush1.msra.mxu0 0.0
        %2102 = vmatprep.subr.mxu0 0.0
        %2103 = vmatpush1.msra.mxu0 0.0
        %2104 = vmatprep.subr.mxu0 0.0
        %2105 = vmatpush1.msra.mxu0 0.0
        %2106 = vmatprep.subr.mxu0 0.0
        %2107 = vmatpush1.msra.mxu0 0.0
        %2108 = vmatprep.subr.mxu0 0.0
        %2109 = vmatpush1.msra.mxu0 0.0
        %2110 = vmatprep.subr.mxu0 0.0
        %2111 = vmatpush1.msra.mxu0 0.0
        %2112 = vmatprep.subr.mxu0 0.0
        %2113 = vmatpush1.msra.mxu0 0.0
        %2114 = vmatprep.subr.mxu0 0.0
        %2115 = vmatpush1.msra.mxu0 0.0
        %2116 = vmatprep.subr.mxu0 0.0
        %2117 = vmatpush1.msra.mxu0 0.0
        %2118 = vmatprep.subr.mxu0 0.0
        %2119 = vmatpush1.msra.mxu0 0.0
        %2120 = vmatprep.subr.mxu0 0.0
        %2121 = vmatpush1.msra.mxu0 0.0
        %2122 = vmatprep.subr.mxu0 0.0
        %2123 = vmatpush1.msra.mxu0 0.0
        %2124 = vmatprep.subr.mxu0 0.0
        %2125 = vmatpush1.msra.mxu0 0.0
        %2126 = vmatprep.subr.mxu0 0.0
        %2127 = vmatpush1.msra.mxu0 0.0
        %2128 = vmatprep.subr.mxu0 0.0
        %2129 = vmatpush1.msra.mxu0 0.0
        %2130 = vmatprep.subr.mxu0 0.0
        %2131 = vmatpush1.msra.mxu0 0.0
        %2132 = vmatprep.subr.mxu0 0.0
        %2133 = vmatpush1.msra.mxu0 0.0
        %2134 = vmatprep.subr.mxu0 0.0
        %2135 = vmatpush1.msra.mxu0 0.0
        %2136 = vmatprep.subr.mxu0 0.0
        %2137 = vmatpush1.msra.mxu0 0.0
        %2138 = vmatprep.subr.mxu0 0.0
        %2139 = vmatpush1.msra.mxu0 0.0
        %2140 = vmatprep.subr.mxu0 0.0
        %2141 = vmatpush1.msra.mxu0 0.0
        %2142 = vmatprep.subr.mxu0 0.0
        %2143 = vmatpush1.msra.mxu0 0.0
        %2144 = vmatprep.subr.mxu0 0.0
        %2145 = vmatpush1.msra.mxu0 0.0
        %2146 = vmatprep.subr.mxu0 0.0
        %2147 = vmatpush1.msra.mxu0 0.0
        %2148 = vmatprep.subr.mxu0 0.0
        %2149 = vmatpush1.msra.mxu0 0.0
        %2150 = vmatprep.subr.mxu0 0.0
        %2151 = vmatpush1.msra.mxu0 0.0
        %2152 = vmatprep.mubr.f32.mxu0 0.0
        %2153 = vmatmul.mubr.f32.gmra.mrb[0].mxu0 %v2065
        %v2154 = vpop.f32.mrb[0].mxu0
        %v2155 = vadd.f32 0.0, %v2154
        %v2156 = vpop.f32.mrb[0].mxu0
        %2157 = vmatprep.mubr.f32.mxu0 0.0
        %2158 = vmatmul.mubr.f32.gmra.mrb[0].mxu0 %v2068
        %v2159 = vpop.f32.mrb[0].mxu0
        %v2160 = vadd.f32 0.0, %v2159
        %v2161 = vpop.f32.mrb[0].mxu0
        %2162 = vmatprep.mubr.f32.mxu0 0.0
        %2163 = vmatmul.mubr.f32.gmra.mrb[0].mxu0 %v2071
        %v2164 = vpop.f32.mrb[0].mxu0
        %v2165 = vadd.f32 0.0, %v2164
        %v2166 = vpop.f32.mrb[0].mxu0
        %2167 = vmatprep.mubr.f32.mxu0 0.0
        %2168 = vmatmul.mubr.f32.gmra.mrb[0].mxu0 %v2074
        %v2169 = vpop.f32.mrb[0].mxu0
        %v2170 = vadd.f32 0.0, %v2169
        %v2171 = vpop.f32.mrb[0].mxu0
        %2172 = vmatprep.mubr.f32.mxu0 0.0
        %2173 = vmatmul.mubr.f32.gmra.mrb[0].mxu0 %v2077
        %v2174 = vpop.f32.mrb[0].mxu0
        %v2175 = vadd.f32 0.0, %v2174
        %v2176 = vpop.f32.mrb[0].mxu0
        %2177 = vmatprep.mubr.f32.mxu0 0.0
        %2178 = vmatmul.mubr.f32.gmra.mrb[0].mxu0 %v2080
        %v2179 = vpop.f32.mrb[0].mxu0
        %v2180 = vadd.f32 0.0, %v2179
        %v2181 = vpop.f32.mrb[0].mxu0
        %2182 = vmatprep.mubr.f32.mxu0 0.0
        %2183 = vmatmul.mubr.f32.gmra.mrb[0].mxu0 %v2083
        %v2184 = vpop.f32.mrb[0].mxu0
        %v2185 = vadd.f32 0.0, %v2184
        %v2186 = vpop.f32.mrb[0].mxu0
        %2187 = vmatprep.mubr.f32.mxu0 0.0
        %2188 = vmatmul.mubr.f32.gmra.mrb[0].mxu0 %v2086
        %v2189 = vpop.f32.mrb[0].mxu0
        %v2190 = vadd.f32 0.0, %v2189
        %v2191 = vpop.f32.mrb[0].mxu0
        %2192 = vdwg.mxu0
        %v2193 = vsel %vm298, %v2155, -inf
        %2194 = vmax.xlane.f32.xlu0 %v2193
        %v2195 = vpop.xlane.xlu0 %2194
        %v2196 = vsel %vm298, %v2160, -inf
        %2197 = vmax.xlane.f32.xlu0 %v2196
        %v2198 = vpop.xlane.xlu0 %2197
        %v2199 = vsel %vm298, %v2165, -inf
        %2200 = vmax.xlane.f32.xlu0 %v2199
        %v2201 = vpop.xlane.xlu0 %2200
        %v2202 = vsel %vm298, %v2170, -inf
        %2203 = vmax.xlane.f32.xlu0 %v2202
        %v2204 = vpop.xlane.xlu0 %2203
        %v2205 = vsel %vm298, %v2175, -inf
        %2206 = vmax.xlane.f32.xlu0 %v2205
        %v2207 = vpop.xlane.xlu0 %2206
        %v2208 = vsel %vm298, %v2180, -inf
        %2209 = vmax.xlane.f32.xlu0 %v2208
        %v2210 = vpop.xlane.xlu0 %2209
        %v2211 = vsel %vm298, %v2185, -inf
        %2212 = vmax.xlane.f32.xlu0 %v2211
        %v2213 = vpop.xlane.xlu0 %2212
        %v2214 = vsel %vm298, %v2190, -inf
        %2215 = vmax.xlane.f32.xlu0 %v2214
        %v2216 = vpop.xlane.xlu0 %2215
        %vm2217 = vcmp.eq.f32.partialorder %v2155, %v2195
        %vm2218 = vcmp.eq.f32.partialorder %v2160, %v2198
        %vm2219 = vcmp.eq.f32.partialorder %v2165, %v2201
        %vm2220 = vcmp.eq.f32.partialorder %v2170, %v2204
        %vm2221 = vcmp.eq.f32.partialorder %v2175, %v2207
        %vm2222 = vcmp.eq.f32.partialorder %v2180, %v2210
        %vm2223 = vcmp.eq.f32.partialorder %v2185, %v2213
        %vm2224 = vcmp.eq.f32.partialorder %v2190, %v2216
        %v2225 = vsel %vm2217, %v322, 64.0
        %v2226 = vsel %vm2218, %v322, 64.0
        %v2227 = vsel %vm2219, %v322, 64.0
        %v2228 = vsel %vm2220, %v322, 64.0
        %v2229 = vsel %vm2221, %v322, 64.0
        %v2230 = vsel %vm2222, %v322, 64.0
        %v2231 = vsel %vm2223, %v322, 64.0
        %v2232 = vsel %vm2224, %v322, 64.0
        %v2233 = vsel %vm298, %v2225, inf
        %2234 = vmin.xlane.f32.xlu0 %v2233
        %v2235 = vpop.xlane.xlu0 %2234
        %v2236 = vsel %vm298, %v2226, inf
        %2237 = vmin.xlane.f32.xlu0 %v2236
        %v2238 = vpop.xlane.xlu0 %2237
        %v2239 = vsel %vm298, %v2227, inf
        %2240 = vmin.xlane.f32.xlu0 %v2239
        %v2241 = vpop.xlane.xlu0 %2240
        %v2242 = vsel %vm298, %v2228, inf
        %2243 = vmin.xlane.f32.xlu0 %v2242
        %v2244 = vpop.xlane.xlu0 %2243
        %v2245 = vsel %vm298, %v2229, inf
        %2246 = vmin.xlane.f32.xlu0 %v2245
        %v2247 = vpop.xlane.xlu0 %2246
        %v2248 = vsel %vm298, %v2230, inf
        %2249 = vmin.xlane.f32.xlu0 %v2248
        %v2250 = vpop.xlane.xlu0 %2249
        %v2251 = vsel %vm298, %v2231, inf
        %2252 = vmin.xlane.f32.xlu0 %v2251
        %v2253 = vpop.xlane.xlu0 %2252
        %v2254 = vsel %vm298, %v2232, inf
        %2255 = vmin.xlane.f32.xlu0 %v2254
        %v2256 = vpop.xlane.xlu0 %2255
        %vm2257 = vcmp.eq.f32.partialorder %v322, %v2235
        %vm2258 = vcmp.eq.f32.partialorder %v322, %v2238
        %vm2259 = vcmp.eq.f32.partialorder %v322, %v2241
        %vm2260 = vcmp.eq.f32.partialorder %v322, %v2244
        %vm2261 = vcmp.eq.f32.partialorder %v322, %v2247
        %vm2262 = vcmp.eq.f32.partialorder %v322, %v2250
        %vm2263 = vcmp.eq.f32.partialorder %v322, %v2253
        %vm2264 = vcmp.eq.f32.partialorder %v322, %v2256
        %v2265 = vsel %vm2257, 1, 0
        %v2266 = vsel %vm2258, 1, 0
        %v2267 = vsel %vm2259, 1, 0
        %v2268 = vsel %vm2260, 1, 0
        %v2269 = vsel %vm2261, 1, 0
        %v2270 = vsel %vm2262, 1, 0
        %v2271 = vsel %vm2263, 1, 0
        %v2272 = vsel %vm2264, 1, 0
        %v2273 = vcvt.s32.f32 %v2265
        %v2274 = vcvt.s32.f32 %v2266
        %v2275 = vcvt.s32.f32 %v2267
        %v2276 = vcvt.s32.f32 %v2268
        %v2277 = vcvt.s32.f32 %v2269
        %v2278 = vcvt.s32.f32 %v2270
        %v2279 = vcvt.s32.f32 %v2271
        %v2280 = vcvt.s32.f32 %v2272
        %v2282 = vsel %vm298, %v2001, 0
        %2284 = vmatprep.subr.mxu0 0.0
        %2285 = vmatpush1.msra.mxu0 %v2273
        %2286 = vmatprep.subr.mxu0 0.0
        %2287 = vmatpush1.msra.mxu0 %v2274
        %2288 = vmatprep.subr.mxu0 0.0
        %2289 = vmatpush1.msra.mxu0 %v2275
        %2290 = vmatprep.subr.mxu0 0.0
        %2291 = vmatpush1.msra.mxu0 %v2276
        %2292 = vmatprep.subr.mxu0 0.0
        %2293 = vmatpush1.msra.mxu0 %v2277
        %2294 = vmatprep.subr.mxu0 0.0
        %2295 = vmatpush1.msra.mxu0 %v2278
        %2296 = vmatprep.subr.mxu0 0.0
        %2297 = vmatpush1.msra.mxu0 %v2279
        %2298 = vmatprep.subr.mxu0 0.0
        %2299 = vmatpush1.msra.mxu0 %v2280
        %2300 = vmatprep.subr.mxu0 0.0
        %2301 = vmatpush1.msra.mxu0 0.0
        %2302 = vmatprep.subr.mxu0 0.0
        %2303 = vmatpush1.msra.mxu0 0.0
        %2304 = vmatprep.subr.mxu0 0.0
        %2305 = vmatpush1.msra.mxu0 0.0
        %2306 = vmatprep.subr.mxu0 0.0
        %2307 = vmatpush1.msra.mxu0 0.0
        %2308 = vmatprep.subr.mxu0 0.0
        %2309 = vmatpush1.msra.mxu0 0.0
        %2310 = vmatprep.subr.mxu0 0.0
        %2311 = vmatpush1.msra.mxu0 0.0
        %2312 = vmatprep.subr.mxu0 0.0
        %2313 = vmatpush1.msra.mxu0 0.0
        %2314 = vmatprep.subr.mxu0 0.0
        %2315 = vmatpush1.msra.mxu0 0.0
        %2316 = vmatprep.subr.mxu0 0.0
        %2317 = vmatpush1.msra.mxu0 0.0
        %2318 = vmatprep.subr.mxu0 0.0
        %2319 = vmatpush1.msra.mxu0 0.0
        %2320 = vmatprep.subr.mxu0 0.0
        %2321 = vmatpush1.msra.mxu0 0.0
        %2322 = vmatprep.subr.mxu0 0.0
        %2323 = vmatpush1.msra.mxu0 0.0
        %2324 = vmatprep.subr.mxu0 0.0
        %2325 = vmatpush1.msra.mxu0 0.0
        %2326 = vmatprep.subr.mxu0 0.0
        %2327 = vmatpush1.msra.mxu0 0.0
        %2328 = vmatprep.subr.mxu0 0.0
        %2329 = vmatpush1.msra.mxu0 0.0
        %2330 = vmatprep.subr.mxu0 0.0
        %2331 = vmatpush1.msra.mxu0 0.0
        %2332 = vmatprep.subr.mxu0 0.0
        %2333 = vmatpush1.msra.mxu0 0.0
        %2334 = vmatprep.subr.mxu0 0.0
        %2335 = vmatpush1.msra.mxu0 0.0
        %2336 = vmatprep.subr.mxu0 0.0
        %2337 = vmatpush1.msra.mxu0 0.0
        %2338 = vmatprep.subr.mxu0 0.0
        %2339 = vmatpush1.msra.mxu0 0.0
        %2340 = vmatprep.subr.mxu0 0.0
        %2341 = vmatpush1.msra.mxu0 0.0
        %2342 = vmatprep.subr.mxu0 0.0
        %2343 = vmatpush1.msra.mxu0 0.0
        %2344 = vmatprep.subr.mxu0 0.0
        %2345 = vmatpush1.msra.mxu0 0.0
        %2346 = vmatprep.subr.mxu0 0.0
        %2347 = vmatpush1.msra.mxu0 0.0
        %2348 = vmatprep.mubr.f32.mxu0 0.0
        %2349 = vmatmul.mubr.f32.gmra.mrb[0].mxu0 %v2282
        %v2350 = vpop.f32.mrb[0].mxu0
        %v2351 = vadd.f32 0.0, %v2350
        %v2352 = vpop.f32.mrb[0].mxu0
        %2353 = vdwg.mxu0
        %v2354 = vadd.f32 %v2009, %v2351
        %2355 = vmatprep.subr.mxu0 0.0
        %2356 = vmatpush1.msra.mxu0 %v2273
        %2357 = vmatprep.subr.mxu0 0.0
        %2358 = vmatpush1.msra.mxu0 %v2274
        %2359 = vmatprep.subr.mxu0 0.0
        %2360 = vmatpush1.msra.mxu0 %v2275
        %2361 = vmatprep.subr.mxu0 0.0
        %2362 = vmatpush1.msra.mxu0 %v2276
        %2363 = vmatprep.subr.mxu0 0.0
        %2364 = vmatpush1.msra.mxu0 %v2277
        %2365 = vmatprep.subr.mxu0 0.0
        %2366 = vmatpush1.msra.mxu0 %v2278
        %2367 = vmatprep.subr.mxu0 0.0
        %2368 = vmatpush1.msra.mxu0 %v2279
        %2369 = vmatprep.subr.mxu0 0.0
        %2370 = vmatpush1.msra.mxu0 %v2280
        %2371 = vmatprep.subr.mxu0 0.0
        %2372 = vmatpush1.msra.mxu0 0.0
        %2373 = vmatprep.subr.mxu0 0.0
        %2374 = vmatpush1.msra.mxu0 0.0
        %2375 = vmatprep.subr.mxu0 0.0
        %2376 = vmatpush1.msra.mxu0 0.0
        %2377 = vmatprep.subr.mxu0 0.0
        %2378 = vmatpush1.msra.mxu0 0.0
        %2379 = vmatprep.subr.mxu0 0.0
        %2380 = vmatpush1.msra.mxu0 0.0
        %2381 = vmatprep.subr.mxu0 0.0
        %2382 = vmatpush1.msra.mxu0 0.0
        %2383 = vmatprep.subr.mxu0 0.0
        %2384 = vmatpush1.msra.mxu0 0.0
        %2385 = vmatprep.subr.mxu0 0.0
        %2386 = vmatpush1.msra.mxu0 0.0
        %2387 = vmatprep.subr.mxu0 0.0
        %2388 = vmatpush1.msra.mxu0 0.0
        %2389 = vmatprep.subr.mxu0 0.0
        %2390 = vmatpush1.msra.mxu0 0.0
        %2391 = vmatprep.subr.mxu0 0.0
        %2392 = vmatpush1.msra.mxu0 0.0
        %2393 = vmatprep.subr.mxu0 0.0
        %2394 = vmatpush1.msra.mxu0 0.0
        %2395 = vmatprep.subr.mxu0 0.0
        %2396 = vmatpush1.msra.mxu0 0.0
        %2397 = vmatprep.subr.mxu0 0.0
        %2398 = vmatpush1.msra.mxu0 0.0
        %2399 = vmatprep.subr.mxu0 0.0
        %2400 = vmatpush1.msra.mxu0 0.0
        %2401 = vmatprep.subr.mxu0 0.0
        %2402 = vmatpush1.msra.mxu0 0.0
        %2403 = vmatprep.subr.mxu0 0.0
        %2404 = vmatpush1.msra.mxu0 0.0
        %2405 = vmatprep.subr.mxu0 0.0
        %2406 = vmatpush1.msra.mxu0 0.0
        %2407 = vmatprep.subr.mxu0 0.0
        %2408 = vmatpush1.msra.mxu0 0.0
        %2409 = vmatprep.subr.mxu0 0.0
        %2410 = vmatpush1.msra.mxu0 0.0
        %2411 = vmatprep.subr.mxu0 0.0
        %2412 = vmatpush1.msra.mxu0 0.0
        %2413 = vmatprep.subr.mxu0 0.0
        %2414 = vmatpush1.msra.mxu0 0.0
        %2415 = vmatprep.subr.mxu0 0.0
        %2416 = vmatpush1.msra.mxu0 0.0
        %2417 = vmatprep.subr.mxu0 0.0
        %2418 = vmatpush1.msra.mxu0 0.0
        %2419 = vmatprep.mubr.f32.mxu0 0.0
        %2420 = vmatmul.mubr.f32.gmra.mrb[0].mxu0 %v1712
        %v2421 = vpop.f32.mrb[0].mxu0
        %v2422 = vadd.f32 1.0, %v2421
        %v2423 = vpop.f32.mrb[0].mxu0
        %2424 = vdwg.mxu0
        %v2425 = vlaneseq
        %v2426 = vshrl.u32 %v2425, 7
        %v2427 = vsub.s32 0, %v2426
        %v2428 = vrot.slane %v2422, %v2427
        %v2429 = vrcp.pop %v2428
        %v2430 = vmul.f32 %v2354, %v2429
        %v2431 = vld [vmem:[#allocation6] sm:$0x1]
        %s2432 = sld [smem:[#allocation11]]
        %s2433 = sld [smem:[#allocation11 + $0x1]]
        %s2434 = sld [smem:[#allocation11 + $0x2]]
        %s2435 = scalar_lea.vmem %s249, 32 [#allocation2]
        %v2436 = vld [vmem:[%s2435] sm:$0xff]
        %v2437 = vstv %s2432
        %v2439 = vsel %vm367, %v2431, 0
        %2441 = vmatprep.subr.mxu0 0.0
        %2442 = vmatpush1.msra.mxu0 %v2436
        %2443 = vmatprep.subr.mxu0 0.0
        %2444 = vmatpush1.msra.mxu0 0.0
        %2445 = vmatprep.subr.mxu0 0.0
        %2446 = vmatpush1.msra.mxu0 0.0
        %2447 = vmatprep.subr.mxu0 0.0
        %2448 = vmatpush1.msra.mxu0 0.0
        %2449 = vmatprep.subr.mxu0 0.0
        %2450 = vmatpush1.msra.mxu0 0.0
        %2451 = vmatprep.subr.mxu0 0.0
        %2452 = vmatpush1.msra.mxu0 0.0
        %2453 = vmatprep.subr.mxu0 0.0
        %2454 = vmatpush1.msra.mxu0 0.0
        %2455 = vmatprep.subr.mxu0 0.0
        %2456 = vmatpush1.msra.mxu0 0.0
        %2457 = vmatprep.subr.mxu0 0.0
        %2458 = vmatpush1.msra.mxu0 0.0
        %2459 = vmatprep.subr.mxu0 0.0
        %2460 = vmatpush1.msra.mxu0 0.0
        %2461 = vmatprep.subr.mxu0 0.0
        %2462 = vmatpush1.msra.mxu0 0.0
        %2463 = vmatprep.subr.mxu0 0.0
        %2464 = vmatpush1.msra.mxu0 0.0
        %2465 = vmatprep.subr.mxu0 0.0
        %2466 = vmatpush1.msra.mxu0 0.0
        %2467 = vmatprep.subr.mxu0 0.0
        %2468 = vmatpush1.msra.mxu0 0.0
        %2469 = vmatprep.subr.mxu0 0.0
        %2470 = vmatpush1.msra.mxu0 0.0
        %2471 = vmatprep.subr.mxu0 0.0
        %2472 = vmatpush1.msra.mxu0 0.0
        %2473 = vmatprep.subr.mxu0 0.0
        %2474 = vmatpush1.msra.mxu0 0.0
        %2475 = vmatprep.subr.mxu0 0.0
        %2476 = vmatpush1.msra.mxu0 0.0
        %2477 = vmatprep.subr.mxu0 0.0
        %2478 = vmatpush1.msra.mxu0 0.0
        %2479 = vmatprep.subr.mxu0 0.0
        %2480 = vmatpush1.msra.mxu0 0.0
        %2481 = vmatprep.subr.mxu0 0.0
        %2482 = vmatpush1.msra.mxu0 0.0
        %2483 = vmatprep.subr.mxu0 0.0
        %2484 = vmatpush1.msra.mxu0 0.0
        %2485 = vmatprep.subr.mxu0 0.0
        %2486 = vmatpush1.msra.mxu0 0.0
        %2487 = vmatprep.subr.mxu0 0.0
        %2488 = vmatpush1.msra.mxu0 0.0
        %2489 = vmatprep.subr.mxu0 0.0
        %2490 = vmatpush1.msra.mxu0 0.0
        %2491 = vmatprep.subr.mxu0 0.0
        %2492 = vmatpush1.msra.mxu0 0.0
        %2493 = vmatprep.subr.mxu0 0.0
        %2494 = vmatpush1.msra.mxu0 0.0
        %2495 = vmatprep.subr.mxu0 0.0
        %2496 = vmatpush1.msra.mxu0 0.0
        %2497 = vmatprep.subr.mxu0 0.0
        %2498 = vmatpush1.msra.mxu0 0.0
        %2499 = vmatprep.subr.mxu0 0.0
        %2500 = vmatpush1.msra.mxu0 0.0
        %2501 = vmatprep.subr.mxu0 0.0
        %2502 = vmatpush1.msra.mxu0 0.0
        %2503 = vmatprep.subr.mxu0 0.0
        %2504 = vmatpush1.msra.mxu0 0.0
        %2505 = vmatprep.mubr.f32.mxu0 0.0
        %2506 = vmatmul.mubr.f32.gmra.mrb[0].mxu0 %v2439
        %v2507 = vpop.f32.mrb[0].mxu0
        %v2508 = vadd.f32 %v2437, %v2507
        %v2509 = vpop.f32.mrb[0].mxu0
        %2510 = vdwg.mxu0
        %v2511 = vxor.u32 %v2508, 2147483648
        %v2512 = vmul.f32 %v2511, 1.442695
        %v2513 = vpow.pop %v2512
        %v2514 = vadd.f32 %v2513, 1.0
        %v2515 = vrcp.pop %v2514
        %v2516 = vmul.f32 1.0, %v2515
        %vm2517 = vcmp.gt.f32.partialorder %v2516, 0.5
        %v2518 = vlaneseq
        %v2519 = vshrl.u32 %v2518, 7
        %v2520 = vsub.s32 0, %v2519
        %v2521 = vrot.slane %v2516, %v2520
        %v2522 = vmul.f32 %v2436, %v2521
        %v2523 = vsel %vm2517, 1, 0
        %v2524 = vlaneseq
        %v2525 = vshrl.u32 %v2524, 7
        %v2526 = vsub.s32 0, %v2525
        %v2527 = vrot.slane %v2523, %v2526
        %vm2528 = vcmp.eq.s32.totalorder %v2527, 1
        %v2529 = vsel %vm2528, %v2522, 0.0
        %v2530 = vadd.f32 %v2529, 0.0
        %s2531 = scalar_lea.vmem %s249, 40 [#allocation2]
        %v2532 = vld [vmem:[%s2531] sm:$0xff]
        %2533 = vmatprep.subr.mxu0 0.0
        %2534 = vmatpush1.msra.mxu0 %v2532
        %2535 = vmatprep.subr.mxu0 0.0
        %2536 = vmatpush1.msra.mxu0 0.0
        %2537 = vmatprep.subr.mxu0 0.0
        %2538 = vmatpush1.msra.mxu0 0.0
        %2539 = vmatprep.subr.mxu0 0.0
        %2540 = vmatpush1.msra.mxu0 0.0
        %2541 = vmatprep.subr.mxu0 0.0
        %2542 = vmatpush1.msra.mxu0 0.0
        %2543 = vmatprep.subr.mxu0 0.0
        %2544 = vmatpush1.msra.mxu0 0.0
        %2545 = vmatprep.subr.mxu0 0.0
        %2546 = vmatpush1.msra.mxu0 0.0
        %2547 = vmatprep.subr.mxu0 0.0
        %2548 = vmatpush1.msra.mxu0 0.0
        %2549 = vmatprep.subr.mxu0 0.0
        %2550 = vmatpush1.msra.mxu0 0.0
        %2551 = vmatprep.subr.mxu0 0.0
        %2552 = vmatpush1.msra.mxu0 0.0
        %2553 = vmatprep.subr.mxu0 0.0
        %2554 = vmatpush1.msra.mxu0 0.0
        %2555 = vmatprep.subr.mxu0 0.0
        %2556 = vmatpush1.msra.mxu0 0.0
        %2557 = vmatprep.subr.mxu0 0.0
        %2558 = vmatpush1.msra.mxu0 0.0
        %2559 = vmatprep.subr.mxu0 0.0
        %2560 = vmatpush1.msra.mxu0 0.0
        %2561 = vmatprep.subr.mxu0 0.0
        %2562 = vmatpush1.msra.mxu0 0.0
        %2563 = vmatprep.subr.mxu0 0.0
        %2564 = vmatpush1.msra.mxu0 0.0
        %2565 = vmatprep.subr.mxu0 0.0
        %2566 = vmatpush1.msra.mxu0 0.0
        %2567 = vmatprep.subr.mxu0 0.0
        %2568 = vmatpush1.msra.mxu0 0.0
        %2569 = vmatprep.subr.mxu0 0.0
        %2570 = vmatpush1.msra.mxu0 0.0
        %2571 = vmatprep.subr.mxu0 0.0
        %2572 = vmatpush1.msra.mxu0 0.0
        %2573 = vmatprep.subr.mxu0 0.0
        %2574 = vmatpush1.msra.mxu0 0.0
        %2575 = vmatprep.subr.mxu0 0.0
        %2576 = vmatpush1.msra.mxu0 0.0
        %2577 = vmatprep.subr.mxu0 0.0
        %2578 = vmatpush1.msra.mxu0 0.0
        %2579 = vmatprep.subr.mxu0 0.0
        %2580 = vmatpush1.msra.mxu0 0.0
        %2581 = vmatprep.subr.mxu0 0.0
        %2582 = vmatpush1.msra.mxu0 0.0
        %2583 = vmatprep.subr.mxu0 0.0
        %2584 = vmatpush1.msra.mxu0 0.0
        %2585 = vmatprep.subr.mxu0 0.0
        %2586 = vmatpush1.msra.mxu0 0.0
        %2587 = vmatprep.subr.mxu0 0.0
        %2588 = vmatpush1.msra.mxu0 0.0
        %2589 = vmatprep.subr.mxu0 0.0
        %2590 = vmatpush1.msra.mxu0 0.0
        %2591 = vmatprep.subr.mxu0 0.0
        %2592 = vmatpush1.msra.mxu0 0.0
        %2593 = vmatprep.subr.mxu0 0.0
        %2594 = vmatpush1.msra.mxu0 0.0
        %2595 = vmatprep.subr.mxu0 0.0
        %2596 = vmatpush1.msra.mxu0 0.0
        %2597 = vmatprep.mubr.f32.mxu0 0.0
        %2598 = vmatmul.mubr.f32.gmra.mrb[0].mxu0 %v2439
        %v2599 = vpop.f32.mrb[0].mxu0
        %v2600 = vadd.f32 %v2437, %v2599
        %v2601 = vpop.f32.mrb[0].mxu0
        %2602 = vdwg.mxu0
        %v2603 = vxor.u32 %v2600, 2147483648
        %v2604 = vmul.f32 %v2603, 1.442695
        %v2605 = vpow.pop %v2604
        %v2606 = vadd.f32 %v2605, 1.0
        %v2607 = vrcp.pop %v2606
        %v2608 = vmul.f32 1.0, %v2607
        %vm2609 = vcmp.gt.f32.partialorder %v2608, 0.5
        %v2610 = vlaneseq
        %v2611 = vshrl.u32 %v2610, 7
        %v2612 = vsub.s32 0, %v2611
        %v2613 = vrot.slane %v2608, %v2612
        %v2614 = vmul.f32 %v2532, %v2613
        %v2615 = vsel %vm2609, 1, 0
        %v2616 = vlaneseq
        %v2617 = vshrl.u32 %v2616, 7
        %v2618 = vsub.s32 0, %v2617
        %v2619 = vrot.slane %v2615, %v2618
        %vm2620 = vcmp.eq.s32.totalorder %v2619, 1
        %v2621 = vsel %vm2620, %v2614, 0.0
        %v2622 = vadd.f32 %v2530, %v2621
        %s2623 = scalar_lea.vmem %s249, 48 [#allocation2]
        %v2624 = vld [vmem:[%s2623] sm:$0xff]
        %2625 = vmatprep.subr.mxu0 0.0
        %2626 = vmatpush1.msra.mxu0 %v2624
        %2627 = vmatprep.subr.mxu0 0.0
        %2628 = vmatpush1.msra.mxu0 0.0
        %2629 = vmatprep.subr.mxu0 0.0
        %2630 = vmatpush1.msra.mxu0 0.0
        %2631 = vmatprep.subr.mxu0 0.0
        %2632 = vmatpush1.msra.mxu0 0.0
        %2633 = vmatprep.subr.mxu0 0.0
        %2634 = vmatpush1.msra.mxu0 0.0
        %2635 = vmatprep.subr.mxu0 0.0
        %2636 = vmatpush1.msra.mxu0 0.0
        %2637 = vmatprep.subr.mxu0 0.0
        %2638 = vmatpush1.msra.mxu0 0.0
        %2639 = vmatprep.subr.mxu0 0.0
        %2640 = vmatpush1.msra.mxu0 0.0
        %2641 = vmatprep.subr.mxu0 0.0
        %2642 = vmatpush1.msra.mxu0 0.0
        %2643 = vmatprep.subr.mxu0 0.0
        %2644 = vmatpush1.msra.mxu0 0.0
        %2645 = vmatprep.subr.mxu0 0.0
        %2646 = vmatpush1.msra.mxu0 0.0
        %2647 = vmatprep.subr.mxu0 0.0
        %2648 = vmatpush1.msra.mxu0 0.0
        %2649 = vmatprep.subr.mxu0 0.0
        %2650 = vmatpush1.msra.mxu0 0.0
        %2651 = vmatprep.subr.mxu0 0.0
        %2652 = vmatpush1.msra.mxu0 0.0
        %2653 = vmatprep.subr.mxu0 0.0
        %2654 = vmatpush1.msra.mxu0 0.0
        %2655 = vmatprep.subr.mxu0 0.0
        %2656 = vmatpush1.msra.mxu0 0.0
        %2657 = vmatprep.subr.mxu0 0.0
        %2658 = vmatpush1.msra.mxu0 0.0
        %2659 = vmatprep.subr.mxu0 0.0
        %2660 = vmatpush1.msra.mxu0 0.0
        %2661 = vmatprep.subr.mxu0 0.0
        %2662 = vmatpush1.msra.mxu0 0.0
        %2663 = vmatprep.subr.mxu0 0.0
        %2664 = vmatpush1.msra.mxu0 0.0
        %2665 = vmatprep.subr.mxu0 0.0
        %2666 = vmatpush1.msra.mxu0 0.0
        %2667 = vmatprep.subr.mxu0 0.0
        %2668 = vmatpush1.msra.mxu0 0.0
        %2669 = vmatprep.subr.mxu0 0.0
        %2670 = vmatpush1.msra.mxu0 0.0
        %2671 = vmatprep.subr.mxu0 0.0
        %2672 = vmatpush1.msra.mxu0 0.0
        %2673 = vmatprep.subr.mxu0 0.0
        %2674 = vmatpush1.msra.mxu0 0.0
        %2675 = vmatprep.subr.mxu0 0.0
        %2676 = vmatpush1.msra.mxu0 0.0
        %2677 = vmatprep.subr.mxu0 0.0
        %2678 = vmatpush1.msra.mxu0 0.0
        %2679 = vmatprep.subr.mxu0 0.0
        %2680 = vmatpush1.msra.mxu0 0.0
        %2681 = vmatprep.subr.mxu0 0.0
        %2682 = vmatpush1.msra.mxu0 0.0
        %2683 = vmatprep.subr.mxu0 0.0
        %2684 = vmatpush1.msra.mxu0 0.0
        %2685 = vmatprep.subr.mxu0 0.0
        %2686 = vmatpush1.msra.mxu0 0.0
        %2687 = vmatprep.subr.mxu0 0.0
        %2688 = vmatpush1.msra.mxu0 0.0
        %2689 = vmatprep.mubr.f32.mxu0 0.0
        %2690 = vmatmul.mubr.f32.gmra.mrb[0].mxu0 %v2439
        %v2691 = vpop.f32.mrb[0].mxu0
        %v2692 = vadd.f32 %v2437, %v2691
        %v2693 = vpop.f32.mrb[0].mxu0
        %2694 = vdwg.mxu0
        %v2695 = vxor.u32 %v2692, 2147483648
        %v2696 = vmul.f32 %v2695, 1.442695
        %v2697 = vpow.pop %v2696
        %v2698 = vadd.f32 %v2697, 1.0
        %v2699 = vrcp.pop %v2698
        %v2700 = vmul.f32 1.0, %v2699
        %vm2701 = vcmp.gt.f32.partialorder %v2700, 0.5
        %v2702 = vlaneseq
        %v2703 = vshrl.u32 %v2702, 7
        %v2704 = vsub.s32 0, %v2703
        %v2705 = vrot.slane %v2700, %v2704
        %v2706 = vmul.f32 %v2624, %v2705
        %v2707 = vsel %vm2701, 1, 0
        %v2708 = vlaneseq
        %v2709 = vshrl.u32 %v2708, 7
        %v2710 = vsub.s32 0, %v2709
        %v2711 = vrot.slane %v2707, %v2710
        %vm2712 = vcmp.eq.s32.totalorder %v2711, 1
        %v2713 = vsel %vm2712, %v2706, 0.0
        %v2714 = vadd.f32 %v2622, %v2713
        %s2715 = scalar_lea.vmem %s249, 56 [#allocation2]
        %v2716 = vld [vmem:[%s2715] sm:$0xff]
        %2717 = vmatprep.subr.mxu0 0.0
        %2718 = vmatpush1.msra.mxu0 %v2716
        %2719 = vmatprep.subr.mxu0 0.0
        %2720 = vmatpush1.msra.mxu0 0.0
        %2721 = vmatprep.subr.mxu0 0.0
        %2722 = vmatpush1.msra.mxu0 0.0
        %2723 = vmatprep.subr.mxu0 0.0
        %2724 = vmatpush1.msra.mxu0 0.0
        %2725 = vmatprep.subr.mxu0 0.0
        %2726 = vmatpush1.msra.mxu0 0.0
        %2727 = vmatprep.subr.mxu0 0.0
        %2728 = vmatpush1.msra.mxu0 0.0
        %2729 = vmatprep.subr.mxu0 0.0
        %2730 = vmatpush1.msra.mxu0 0.0
        %2731 = vmatprep.subr.mxu0 0.0
        %2732 = vmatpush1.msra.mxu0 0.0
        %2733 = vmatprep.subr.mxu0 0.0
        %2734 = vmatpush1.msra.mxu0 0.0
        %2735 = vmatprep.subr.mxu0 0.0
        %2736 = vmatpush1.msra.mxu0 0.0
        %2737 = vmatprep.subr.mxu0 0.0
        %2738 = vmatpush1.msra.mxu0 0.0
        %2739 = vmatprep.subr.mxu0 0.0
        %2740 = vmatpush1.msra.mxu0 0.0
        %2741 = vmatprep.subr.mxu0 0.0
        %2742 = vmatpush1.msra.mxu0 0.0
        %2743 = vmatprep.subr.mxu0 0.0
        %2744 = vmatpush1.msra.mxu0 0.0
        %2745 = vmatprep.subr.mxu0 0.0
        %2746 = vmatpush1.msra.mxu0 0.0
        %2747 = vmatprep.subr.mxu0 0.0
        %2748 = vmatpush1.msra.mxu0 0.0
        %2749 = vmatprep.subr.mxu0 0.0
        %2750 = vmatpush1.msra.mxu0 0.0
        %2751 = vmatprep.subr.mxu0 0.0
        %2752 = vmatpush1.msra.mxu0 0.0
        %2753 = vmatprep.subr.mxu0 0.0
        %2754 = vmatpush1.msra.mxu0 0.0
        %2755 = vmatprep.subr.mxu0 0.0
        %2756 = vmatpush1.msra.mxu0 0.0
        %2757 = vmatprep.subr.mxu0 0.0
        %2758 = vmatpush1.msra.mxu0 0.0
        %2759 = vmatprep.subr.mxu0 0.0
        %2760 = vmatpush1.msra.mxu0 0.0
        %2761 = vmatprep.subr.mxu0 0.0
        %2762 = vmatpush1.msra.mxu0 0.0
        %2763 = vmatprep.subr.mxu0 0.0
        %2764 = vmatpush1.msra.mxu0 0.0
        %2765 = vmatprep.subr.mxu0 0.0
        %2766 = vmatpush1.msra.mxu0 0.0
        %2767 = vmatprep.subr.mxu0 0.0
        %2768 = vmatpush1.msra.mxu0 0.0
        %2769 = vmatprep.subr.mxu0 0.0
        %2770 = vmatpush1.msra.mxu0 0.0
        %2771 = vmatprep.subr.mxu0 0.0
        %2772 = vmatpush1.msra.mxu0 0.0
        %2773 = vmatprep.subr.mxu0 0.0
        %2774 = vmatpush1.msra.mxu0 0.0
        %2775 = vmatprep.subr.mxu0 0.0
        %2776 = vmatpush1.msra.mxu0 0.0
        %2777 = vmatprep.subr.mxu0 0.0
        %2778 = vmatpush1.msra.mxu0 0.0
        %2779 = vmatprep.subr.mxu0 0.0
        %2780 = vmatpush1.msra.mxu0 0.0
        %2781 = vmatprep.mubr.f32.mxu0 0.0
        %2782 = vmatmul.mubr.f32.gmra.mrb[0].mxu0 %v2439
        %v2783 = vpop.f32.mrb[0].mxu0
        %v2784 = vadd.f32 %v2437, %v2783
        %v2785 = vpop.f32.mrb[0].mxu0
        %2786 = vdwg.mxu0
        %v2787 = vxor.u32 %v2784, 2147483648
        %v2788 = vmul.f32 %v2787, 1.442695
        %v2789 = vpow.pop %v2788
        %v2790 = vadd.f32 %v2789, 1.0
        %v2791 = vrcp.pop %v2790
        %v2792 = vmul.f32 1.0, %v2791
        %vm2793 = vcmp.gt.f32.partialorder %v2792, 0.5
        %v2794 = vlaneseq
        %v2795 = vshrl.u32 %v2794, 7
        %v2796 = vsub.s32 0, %v2795
        %v2797 = vrot.slane %v2792, %v2796
        %v2798 = vmul.f32 %v2716, %v2797
        %v2799 = vsel %vm2793, 1, 0
        %v2800 = vlaneseq
        %v2801 = vshrl.u32 %v2800, 7
        %v2802 = vsub.s32 0, %v2801
        %v2803 = vrot.slane %v2799, %v2802
        %vm2804 = vcmp.eq.s32.totalorder %v2803, 1
        %v2805 = vsel %vm2804, %v2798, 0.0
        %v2806 = vadd.f32 %v2714, %v2805
        %v2807 = vmul.f32 %v2806, 0.25
        %v2808 = vstv %s2433
        %v2809 = vmul.f32 %v2808, %v2430
        %v2810 = vstv %s2434
        %v2811 = vmul.f32 %v2810, %v2807
        %v2812 = vadd.f32 %v2809, %v2811
        %v2813 = vld [vmem:[#allocation8] sm:$0xff]
        %v2814 = vld [vmem:[#allocation9] sm:$0xff]
        %2816 = vset.pattern.permute.xlu0 0
        %2817 = vperm.xlu0 %2816, %v2814
        %v2818 = vpop.permute.xlu0 %2817
        %v2821 = vsel %vm367, %v2813, 0
        %2823 = vmatprep.subr.mxu0 0.0
        %2824 = vmatpush1.msra.mxu0 %v2812
        %2825 = vmatprep.subr.mxu0 0.0
        %2826 = vmatpush1.msra.mxu0 0.0
        %2827 = vmatprep.subr.mxu0 0.0
        %2828 = vmatpush1.msra.mxu0 0.0
        %2829 = vmatprep.subr.mxu0 0.0
        %2830 = vmatpush1.msra.mxu0 0.0
        %2831 = vmatprep.subr.mxu0 0.0
        %2832 = vmatpush1.msra.mxu0 0.0
        %2833 = vmatprep.subr.mxu0 0.0
        %2834 = vmatpush1.msra.mxu0 0.0
        %2835 = vmatprep.subr.mxu0 0.0
        %2836 = vmatpush1.msra.mxu0 0.0
        %2837 = vmatprep.subr.mxu0 0.0
        %2838 = vmatpush1.msra.mxu0 0.0
        %2839 = vmatprep.subr.mxu0 0.0
        %2840 = vmatpush1.msra.mxu0 0.0
        %2841 = vmatprep.subr.mxu0 0.0
        %2842 = vmatpush1.msra.mxu0 0.0
        %2843 = vmatprep.subr.mxu0 0.0
        %2844 = vmatpush1.msra.mxu0 0.0
        %2845 = vmatprep.subr.mxu0 0.0
        %2846 = vmatpush1.msra.mxu0 0.0
        %2847 = vmatprep.subr.mxu0 0.0
        %2848 = vmatpush1.msra.mxu0 0.0
        %2849 = vmatprep.subr.mxu0 0.0
        %2850 = vmatpush1.msra.mxu0 0.0
        %2851 = vmatprep.subr.mxu0 0.0
        %2852 = vmatpush1.msra.mxu0 0.0
        %2853 = vmatprep.subr.mxu0 0.0
        %2854 = vmatpush1.msra.mxu0 0.0
        %2855 = vmatprep.subr.mxu0 0.0
        %2856 = vmatpush1.msra.mxu0 0.0
        %2857 = vmatprep.subr.mxu0 0.0
        %2858 = vmatpush1.msra.mxu0 0.0
        %2859 = vmatprep.subr.mxu0 0.0
        %2860 = vmatpush1.msra.mxu0 0.0
        %2861 = vmatprep.subr.mxu0 0.0
        %2862 = vmatpush1.msra.mxu0 0.0
        %2863 = vmatprep.subr.mxu0 0.0
        %2864 = vmatpush1.msra.mxu0 0.0
        %2865 = vmatprep.subr.mxu0 0.0
        %2866 = vmatpush1.msra.mxu0 0.0
        %2867 = vmatprep.subr.mxu0 0.0
        %2868 = vmatpush1.msra.mxu0 0.0
        %2869 = vmatprep.subr.mxu0 0.0
        %2870 = vmatpush1.msra.mxu0 0.0
        %2871 = vmatprep.subr.mxu0 0.0
        %2872 = vmatpush1.msra.mxu0 0.0
        %2873 = vmatprep.subr.mxu0 0.0
        %2874 = vmatpush1.msra.mxu0 0.0
        %2875 = vmatprep.subr.mxu0 0.0
        %2876 = vmatpush1.msra.mxu0 0.0
        %2877 = vmatprep.subr.mxu0 0.0
        %2878 = vmatpush1.msra.mxu0 0.0
        %2879 = vmatprep.subr.mxu0 0.0
        %2880 = vmatpush1.msra.mxu0 0.0
        %2881 = vmatprep.subr.mxu0 0.0
        %2882 = vmatpush1.msra.mxu0 0.0
        %2883 = vmatprep.subr.mxu0 0.0
        %2884 = vmatpush1.msra.mxu0 0.0
        %2885 = vmatprep.subr.mxu0 0.0
        %2886 = vmatpush1.msra.mxu0 0.0
        %2887 = vmatprep.mubr.f32.mxu0 0.0
        %2888 = vmatmul.mubr.f32.gmra.mrb[0].mxu0 %v2821
        %v2889 = vpop.f32.mrb[0].mxu0
        %v2890 = vadd.f32 %v2818, %v2889
        %v2891 = vpop.f32.mrb[0].mxu0
        %2892 = vdwg.mxu0
        %2893 = vst.msk [vmem:[%s292] sm:$0xff] %vm298, %v2890
        %s2894 = sand.u32 %s143, 1
        %s2895 = scalar_lea.sflag [#allocation4], %s2894
        %s2896 = sand.u32 %s143, 1
        %s2897 = smul.addr %s2896, 8
        %s2898 = scalar_lea.vmem [#allocation12], %s2897
        // Predicated region
        $region61: #{xcy2_forward.1} parent=39 // pred_check
          %p2899 = pneg %p153
        $region62: #{xcy2_forward.1} parent=39 // pred_check_branch
          %2901 = sbr.rel (%p2899) target = $region64
        $region63: #{xcy2_forward.1} parent=39 // pred_region
          %s2903 = ssub.s32 128, 128
          %2904 = vsyncadd %s2895, %s2903
          %s2905 = smul.addr %s25, 128
          %s2906 = scalar_lea.hbm %s5, %s2905
          %s2908 = sshll.u32 %s2898, 4
          %s2909 = int_to_ptr.vmem [resolvable:$true] %s2908
          %2911 = dma.vmem_to_hbm [thread:$0]  %s2909, 128, %s2906, %s2895
        $region64: #{xcy2_forward.1} parent=39 // pred_fallthru
          _
      $region40: #{xcy2_forward.1} parent=5 // pred_fallthru
        _
      %p2912 = scmp.le.s32.totalorder 2, %s20
      // Predicated region
      $region65: #{xcy2_forward.1} parent=5 // pred_check
        %p2913 = pneg %p2912
      $region66: #{xcy2_forward.1} parent=5 // pred_check_branch
        %2915 = sbr.rel (%p2913) target = $region68
      $region67: #{xcy2_forward.1} parent=5 // pred_region
        %s2916 = ssub.s32 %s20, 2
        // Predicated region
        $region69: #{xcy2_forward.1} parent=67 // pred_check
          %p2917 = pneg %p159
        $region70: #{xcy2_forward.1} parent=67 // pred_check_branch
          %2919 = sbr.rel (%p2917) target = $region72
        $region71: #{xcy2_forward.1} parent=67 // pred_region
          %s2920 = sand.u32 %s144, 1
          %s2921 = scalar_lea.sflag [#allocation4], %s2920
          %s2922 = sand.u32 %s144, 1
          %s2923 = smul.addr %s2922, 8
          %s2924 = scalar_lea.vmem [#allocation12], %s2923
          %2925 = dma.done %s2921, 128
        $region72: #{xcy2_forward.1} parent=67 // pred_fallthru
          _
      $region68: #{xcy2_forward.1} parent=5 // pred_fallthru
        _
    $region6: #{xcy2_forward.1} parent=1 // loop_footer
      %s24 = sadd.s32 1, %s20
    $region7: #{xcy2_forward.1} parent=1 // loop_footer_branch
      %19 = sbr.rel target = $region3
    $region8: #{xcy2_forward.1} parent=1 // loop_exit
      _
    %2926 = vsyncpa [#allocation3], 1
    %s2927 = scalar_lea.sflag [#allocation3], 1
    %2928 = vsyncpa %s2927, 1
    %2929 = vsyncpa [#allocation7], 1
    %2930 = vsyncpa [#allocation10], 1
    %2931 = vsyncpa [#allocation4], 1
    %s2932 = scalar_lea.sflag [#allocation4], 1
    %2933 = vsyncpa %s2932, 1
    %2934 = vsyncpa [#allocation5], 1
    %s2935 = scalar_lea.sflag [#allocation5], 1
    %2936 = vsyncpa %s2935, 1

</llo_original>
